<compile_context>
chip_gen: v6e
topology: v6e:2x2x1
jax: 0.10.0
libtpu: 0.0.40
codegen_flags: <defaults>
</compile_context>

<pallas_src>
import functools

import jax
import jax.numpy as jnp
import numpy as np
from jax import lax
from jax.experimental import pallas as pl
from jax.experimental.pallas import tpu as pltpu


# --------------------------------------------------------------------------- #
# Helpers
# --------------------------------------------------------------------------- #
def _round_up(x, m):
    return ((x + m - 1) // m) * m


def _pad_gate_blocks(w, h, hp):
    """Pad each of the 4 stacked gate blocks (PyTorch order i,f,g,o) along
    axis 0 from h to hp rows with zeros."""
    if hp == h:
        return w
    pad = [(0, hp - h)] + [(0, 0)] * (w.ndim - 1)
    parts = [jnp.pad(w[k * h:(k + 1) * h], pad) for k in range(4)]
    return jnp.concatenate(parts, axis=0)


def _num_tensorcores():
    """Best-effort TensorCore count per device (v7x: 2).  Safe fallback = 1."""
    try:
        dev = jax.devices()[0]
        for attr in ("num_cores", "core_count"):
            v = getattr(dev, attr, None)
            if v:
                return max(1, min(2, int(v)))
    except Exception:
        pass
    return 1


def _vmem_budget_bytes():
    """Per-generation VMEM budget: ~75% of capacity, capped at 100 MiB
    (v5e/v6e have 128 MiB physical, v7x 64 MiB per TC)."""
    cap = None
    try:
        info = pltpu.get_tpu_info()
        cap = getattr(info, "vmem_capacity_bytes", None)
    except Exception:
        cap = None
    if not cap:
        cap = 64 << 20                      # conservative fallback (v7x per-TC)
    return int(min(cap * 3 // 4, 100 << 20))


def _vmem_footprint(T, block_b, hidden_p, out_p, xp_bytes, w_bytes):
    """Estimated VMEM bytes for one grid step's working set."""
    four_hp = 4 * hidden_p
    return (2 * T * block_b * four_hp * xp_bytes      # double-buffered x_proj slab
            + 2 * hidden_p * four_hp * w_bytes        # W_hh^T (counted dbl-buffered)
            + 2 * hidden_p * out_p * w_bytes          # W_fc^T
            + 2 * four_hp * 4 + 2 * out_p * 4         # biases (f32)
            + 2 * block_b * out_p * 4                 # resident output block
            + 2 * block_b * hidden_p * 4              # h / c scratch
            + 4 * block_b * four_hp * 4)              # live gate tiles headroom


# --------------------------------------------------------------------------- #
# Kernel
# --------------------------------------------------------------------------- #
def _lstm_chunk_kernel(xp_ref, whh_ref, bias_ref, wfc_ref, bfc_ref, out_ref,
                       h_sc, c_sc, *, hidden_p, chunk_t, tail_t):
    """One grid step = one (batch block, time chunk).

    xp_ref  : (T, Bb, 4Hp)  hoisted input projection x @ W_ih^T (mxu/xp dtype)
    whh_ref : (Hp, 4Hp)     recurrent weight (block-invariant -> not re-DMA'd)
    bias_ref: (1, 4Hp)      b_ih + b_hh, f32 (added in-kernel)
    wfc_ref : (Hp, Op)      final linear weight
    bfc_ref : (1, Op)       final linear bias, f32
    out_ref : (Bb, Op)      logits (written only on the LAST time chunk)
    h_sc/c_sc: (Bb, Hp)     f32 state scratch, persists across grid steps

    NOTE: the output block index is constant along the time axis, so out_ref
    stays VMEM-resident across the whole recurrence.  The time axis must stay
    innermost + "arbitrary"; do NOT reorder the grid axes.
    """
    tchunk = pl.program_id(1)
    last = pl.num_programs(1) - 1

    @pl.when(tchunk == 0)
    def _init():
        h_sc[...] = jnp.zeros_like(h_sc)
        c_sc[...] = jnp.zeros_like(c_sc)

    H = hidden_p
    whh = whh_ref[...]          # loaded once per chunk; block-invariant input
    bias = bias_ref[...]        # (1, 4Hp) f32

    def step(t, carry):
        h, c = carry
        # Serial critical path: only the (Bb,Hp)x(Hp,4Hp) recurrent matmul.
        # h is cast to the MXU dtype (bf16 default); use mxu_dtype=float32 for
        # a full-precision recurrence on long sequences.
        gates = (xp_ref[t].astype(jnp.float32) + bias
                 + jnp.dot(h.astype(whh.dtype), whh,
                           preferred_element_type=jnp.float32))
        # PyTorch gate order: input, forget, cell(g), output.
        # Hp % 128 == 0 -> every slice below is lane-aligned (no relayout).
        i_g = jax.nn.sigmoid(gates[:, 0 * H:1 * H])
        f_g = jax.nn.sigmoid(gates[:, 1 * H:2 * H])
        g_g = jnp.tanh(gates[:, 2 * H:3 * H])
        o_g = jax.nn.sigmoid(gates[:, 3 * H:4 * H])
        c_new = f_g * c + i_g * g_g
        h_new = o_g * jnp.tanh(c_new)
        return h_new, c_new

    def run(n_steps):
        h, c = lax.fori_loop(0, n_steps, step, (h_sc[...], c_sc[...]),
                             unroll=min(8, n_steps))
        h_sc[...] = h
        c_sc[...] = c

    if tail_t == chunk_t:
        # chunk_t divides seq_len: single unmasked hot loop, no tail handling.
        run(chunk_t)
    else:
        # Tail handling off the hot path: non-tail chunks run the full loop,
        # only the last chunk runs a (statically) shorter loop.  No per-step
        # masks/selects anywhere.
        @pl.when(tchunk < last)
        def _full():
            run(chunk_t)

        @pl.when(tchunk == last)
        def _tail():
            run(tail_t)

    @pl.when(tchunk == last)
    def _finish():
        logits = (jnp.dot(h_sc[...].astype(wfc_ref.dtype), wfc_ref[...],
                          preferred_element_type=jnp.float32)
                  + bfc_ref[...])
        out_ref[...] = logits.astype(out_ref.dtype)


# --------------------------------------------------------------------------- #
# Wrapper
# --------------------------------------------------------------------------- #
def lstm_forward(text, emb_w, w_ih, w_hh, b_ih, b_hh, w_fc, b_fc,
                 *, chunk_t=None, batch_block=None, mxu_dtype=jnp.bfloat16,
                 xp_dtype=None, vmem_budget_bytes=None):
    """text: [seq_len, batch] int32.  Returns logits [batch, out_dim] (f32)."""
    seq_len, batch = text.shape
    emb_dim = emb_w.shape[1]
    hidden = w_hh.shape[1]
    out_dim = w_fc.shape[0]

    if xp_dtype is None:
        xp_dtype = mxu_dtype

    # Lane-aligned layout: pad hidden (per gate) and out_dim to multiples of 128.
    hidden_p = _round_up(hidden, 128)
    out_p = _round_up(out_dim, 128)
    four_hp = 4 * hidden_p

    # ---- tiling derived from the real VMEM ceiling ---------------------------
    budget = (_vmem_budget_bytes() if vmem_budget_bytes is None
              else int(vmem_budget_bytes))
    xp_bytes = jnp.dtype(xp_dtype).itemsize
    w_bytes = jnp.dtype(mxu_dtype).itemsize

    n_cores = _num_tensorcores()
    if batch_block is None:
        # As few, fat batch blocks as possible (feed the MXU rows), but at
        # least one block per TensorCore and at most 256 rows per block.
        n_blocks = max(n_cores, pl.cdiv(batch, 256))
        n_blocks = min(n_blocks, max(1, batch // 8))
        block_b = pl.cdiv(batch, n_blocks)
    else:
        block_b = batch_block
    block_b = max(8, _round_up(block_b, 8))                 # sublane (8) rule
    while block_b > 8 and _vmem_footprint(1, block_b, hidden_p, out_p,
                                          xp_bytes, w_bytes) > budget:
        block_b = max(8, _round_up(block_b // 2, 8))
    padded_b = _round_up(batch, block_b)
    n_bb = padded_b // block_b

    cap_t = seq_len if chunk_t is None else max(1, min(chunk_t, seq_len))
    T = cap_t
    while T > 1 and _vmem_footprint(T, block_b, hidden_p, out_p,
                                    xp_bytes, w_bytes) > budget:
        T = max(1, T // 2)
    n_time = pl.cdiv(seq_len, T)
    padded_s = n_time * T
    tail_t = seq_len - (n_time - 1) * T                     # static, in [1, T]

    # ---- parameter repacking (once per call, tiny) ----------------------------
    w_ih_p = _pad_gate_blocks(w_ih, hidden, hidden_p)                      # (4Hp, E)
    w_hh_p = _pad_gate_blocks(w_hh, hidden, hidden_p)                      # (4Hp, H)
    w_hh_p = jnp.pad(w_hh_p, ((0, 0), (0, hidden_p - hidden)))             # (4Hp, Hp)
    bias_p = _pad_gate_blocks((b_ih + b_hh).astype(jnp.float32),
                              hidden, hidden_p)                            # (4Hp,)
    w_fc_p = jnp.pad(w_fc, ((0, out_p - out_dim), (0, hidden_p - hidden)))  # (Op, Hp)
    b_fc_p = jnp.pad(b_fc, (0, out_p - out_dim)).astype(jnp.float32)        # (Op,)

    w_ih_t = jnp.transpose(w_ih_p).astype(mxu_dtype)        # (E, 4Hp)
    w_hh_t = jnp.transpose(w_hh_p).astype(mxu_dtype)        # (Hp, 4Hp)
    w_fc_t = jnp.transpose(w_fc_p).astype(mxu_dtype)        # (Hp, Op)
    bias_r = bias_p.reshape(1, four_hp)                     # f32
    b_fc_r = b_fc_p.reshape(1, out_p)                       # f32

    # ---- glue handled by XLA (fused with the big matmul below) ----------------
    # Pad the cheap int32 token tensor, NOT the big projected intermediate.
    if padded_s != seq_len or padded_b != batch:
        text = jnp.pad(text, ((0, padded_s - seq_len), (0, padded_b - batch)))
    # Embedding gather (dropout = identity in eval) + hoisted input projection
    # as one (S*B, E) x (E, 4Hp) matmul.  Streamed to the kernel in the narrow
    # xp_dtype; the f32 bias is re-added inside the kernel.
    embedded = emb_w[text]                                               # (Sp,Bp,E)
    x_flat = embedded.reshape(padded_s * padded_b, emb_dim).astype(mxu_dtype)
    x_proj = (jnp.dot(x_flat, w_ih_t, preferred_element_type=jnp.float32)
              .reshape(padded_s, padded_b, four_hp).astype(xp_dtype))    # (Sp,Bp,4Hp)

    kernel = functools.partial(_lstm_chunk_kernel, hidden_p=hidden_p,
                               chunk_t=T, tail_t=tail_t)

    grid_spec = pltpu.PrefetchScalarGridSpec(
        num_scalar_prefetch=0,
        grid=(n_bb, n_time),      # batch blocks (parallel), time (serial, innermost)
        in_specs=[
            # (T, Bb, 4Hp) slab of the hoisted projection per grid step.
            pl.BlockSpec((T, block_b, four_hp), lambda b, t: (t, b, 0)),
            # Block-invariant weights / biases: same block every step, so the
            # pipeline does not re-DMA them between grid steps.
            pl.BlockSpec((hidden_p, four_hp), lambda b, t: (0, 0)),
            pl.BlockSpec((1, four_hp), lambda b, t: (0, 0)),
            pl.BlockSpec((hidden_p, out_p), lambda b, t: (0, 0)),
            pl.BlockSpec((1, out_p), lambda b, t: (0, 0)),
        ],
        out_specs=pl.BlockSpec((block_b, out_p), lambda b, t: (b, 0)),
        scratch_shapes=[
            pltpu.VMEM((block_b, hidden_p), jnp.float32),    # h
            pltpu.VMEM((block_b, hidden_p), jnp.float32),    # c
        ],
    )

    # Never clamp the scoped VMEM limit below the actual footprint.
    fp = _vmem_footprint(T, block_b, hidden_p, out_p, xp_bytes, w_bytes)
    vmem_limit = int(min(max(fp * 5 // 4, 16 << 20), 128 << 20))

    out = pl.pallas_call(
        kernel,
        out_shape=jax.ShapeDtypeStruct((padded_b, out_p), jnp.float32),
        grid_spec=grid_spec,
        compiler_params=pltpu.CompilerParams(
            dimension_semantics=("parallel", "arbitrary"),
            vmem_limit_bytes=vmem_limit),
    )(x_proj, w_hh_t, bias_r, w_fc_t, b_fc_r)

    return out[:batch, :out_dim]


# --------------------------------------------------------------------------- #
# Pure-JAX reference (PyTorch nn.LSTM + nn.Linear semantics)
# --------------------------------------------------------------------------- #
def lstm_forward_ref(text, emb_w, w_ih, w_hh, b_ih, b_hh, w_fc, b_fc):
    embedded = emb_w[text]                                   # [S, B, E]
    hidden = w_hh.shape[1]
    batch = text.shape[1]

    def step(carry, x_t):
        h, c = carry
        gates = x_t @ w_ih.T + h @ w_hh.T + b_ih + b_hh
        i = jax.nn.sigmoid(gates[:, 0 * hidden:1 * hidden])
        f = jax.nn.sigmoid(gates[:, 1 * hidden:2 * hidden])
        g = jnp.tanh(gates[:, 2 * hidden:3 * hidden])
        o = jax.nn.sigmoid(gates[:, 3 * hidden:4 * hidden])
        c = f * c + i * g
        h = o * jnp.tanh(c)
        return (h, c), None

    h0 = jnp.zeros((batch, hidden), jnp.float32)
    c0 = jnp.zeros((batch, hidden), jnp.float32)
    (h_final, _), _ = jax.lax.scan(step, (h0, c0), embedded)
    return h_final @ w_fc.T + b_fc


if __name__ == "__main__":
    vocab_size = 100
    seq_len = 12          # not a multiple of chunk_t=8 -> exercises the tail chunk
    batch = 16
    emb_dim = 32
    hidden_dim = 32       # < 128 -> exercises lane padding of the gate layout
    out_dim = 4

    key = jax.random.PRNGKey(0)
    keys = jax.random.split(key, 8)

    emb_w = jax.random.normal(keys[0], (vocab_size, emb_dim), jnp.float32) * 0.1
    w_ih = jax.random.normal(keys[1], (4 * hidden_dim, emb_dim), jnp.float32) * 0.1
    w_hh = jax.random.normal(keys[2], (4 * hidden_dim, hidden_dim), jnp.float32) * 0.1
    b_ih = jax.random.normal(keys[3], (4 * hidden_dim,), jnp.float32) * 0.1
    b_hh = jax.random.normal(keys[4], (4 * hidden_dim,), jnp.float32) * 0.1
    w_fc = jax.random.normal(keys[5], (out_dim, hidden_dim), jnp.float32) * 0.1
    b_fc = jax.random.normal(keys[6], (out_dim,), jnp.float32) * 0.1

    text = jax.random.randint(keys[7], (seq_len, batch), 0, vocab_size, jnp.int32)

    ref = jax.block_until_ready(
        lstm_forward_ref(text, emb_w, w_ih, w_hh, b_ih, b_hh, w_fc, b_fc))

    # 1) Full-precision path with an explicit small time chunk (tail-chunk path).
    out_a = jax.block_until_ready(
        lstm_forward(text, emb_w, w_ih, w_hh, b_ih, b_hh, w_fc, b_fc,
                     chunk_t=8, mxu_dtype=jnp.float32))
    np.testing.assert_allclose(np.asarray(out_a), np.asarray(ref),
                               rtol=2e-3, atol=2e-3)

    # 2) Full-precision, auto time chunk, forced 2 batch blocks (parallel axis).
    out_b = jax.block_until_ready(
        lstm_forward(text, emb_w, w_ih, w_hh, b_ih, b_hh, w_fc, b_fc,
                     batch_block=8, mxu_dtype=jnp.float32))
    np.testing.assert_allclose(np.asarray(out_b), np.asarray(ref),
                               rtol=2e-3, atol=2e-3)

    # 3) bf16 MXU / bf16 x_proj stream fast path (f32 accumulation + gate math).
    out_c = jax.block_until_ready(
        lstm_forward(text, emb_w, w_ih, w_hh, b_ih, b_hh, w_fc, b_fc,
                     chunk_t=8, mxu_dtype=jnp.bfloat16))
    np.testing.assert_allclose(np.asarray(out_c), np.asarray(ref),
                               rtol=3e-2, atol=3e-2)

    print("KERNEL_OK")
</pallas_src>

<mosaic_0001>
module attributes {stable_mosaic.version = 11 : i64} {
  func.func @_lstm_chunk_kernel(%arg0: i32, %arg1: i32, %arg2: memref<8x16x512xf32, #tpu.memory_space<vmem>>, %arg3: memref<128x512xf32, #tpu.memory_space<vmem>>, %arg4: memref<1x512xf32, #tpu.memory_space<vmem>>, %arg5: memref<128x128xf32, #tpu.memory_space<vmem>>, %arg6: memref<1x128xf32, #tpu.memory_space<vmem>>, %arg7: memref<16x128xf32, #tpu.memory_space<vmem>>, %arg8: memref<16x128xf32, #tpu.memory_space<vmem>>, %arg9: memref<16x128xf32, #tpu.memory_space<vmem>>) attributes {dimension_semantics = [#tpu.dimension_semantics<parallel>, #tpu.dimension_semantics<arbitrary>], iteration_bounds = array<i64: 1, 2>, scalar_prefetch = 0 : i64, scratch_operands = 2 : i64, tpu.core_type = #tpu.core_type<tc>, window_params = [{transform_indices = @transform_0, window_bounds = array<i64: 8, 16, 512>}, {pipeline_mode = #tpu.pipeline_mode<synchronous>, transform_indices = @transform_1, window_bounds = array<i64: 128, 512>}, {pipeline_mode = #tpu.pipeline_mode<synchronous>, transform_indices = @transform_2, window_bounds = array<i64: 1, 512>}, {pipeline_mode = #tpu.pipeline_mode<synchronous>, transform_indices = @transform_3, window_bounds = array<i64: 128, 128>}, {pipeline_mode = #tpu.pipeline_mode<synchronous>, transform_indices = @transform_4, window_bounds = array<i64: 1, 128>}, {transform_indices = @transform_5, window_bounds = array<i64: 16, 128>}]} {
    %c0_i32 = arith.constant 0 : i32
    %0 = arith.cmpi eq, %arg1, %c0_i32 : i32
    %1 = arith.extui %0 : i1 to i32
    %c0_i32_0 = arith.constant 0 : i32
    %2 = arith.cmpi ne, %1, %c0_i32_0 : i32
    scf.if %2 {
      %cst = arith.constant 0.000000e+00 : f32
      %14 = vector.broadcast %cst : f32 to vector<16x128xf32>
      %c0_9 = arith.constant 0 : index
      %c0_10 = arith.constant 0 : index
      %15 = vector.load %arg8[%c0_9, %c0_10] : memref<16x128xf32, #tpu.memory_space<vmem>>, vector<16x128xf32>
      tpu.vector_store %arg8[%c0_9, %c0_10], %14 {strides = array<i32>} : memref<16x128xf32, #tpu.memory_space<vmem>>, vector<16x128xf32>,
      %cst_11 = arith.constant 0.000000e+00 : f32
      %16 = vector.broadcast %cst_11 : f32 to vector<16x128xf32>
      %c0_12 = arith.constant 0 : index
      %c0_13 = arith.constant 0 : index
      %17 = vector.load %arg9[%c0_12, %c0_13] : memref<16x128xf32, #tpu.memory_space<vmem>>, vector<16x128xf32>
      tpu.vector_store %arg9[%c0_12, %c0_13], %16 {strides = array<i32>} : memref<16x128xf32, #tpu.memory_space<vmem>>, vector<16x128xf32>,
    } else {
    }
    %c0 = arith.constant 0 : index
    %c0_1 = arith.constant 0 : index
    %3 = vector.load %arg3[%c0, %c0_1] : memref<128x512xf32, #tpu.memory_space<vmem>>, vector<128x512xf32>
    %c0_2 = arith.constant 0 : index
    %c0_3 = arith.constant 0 : index
    %4 = vector.load %arg4[%c0_2, %c0_3] : memref<1x512xf32, #tpu.memory_space<vmem>>, vector<1x512xf32>
    %c1_i32 = arith.constant 1 : i32
    %5 = arith.cmpi slt, %arg1, %c1_i32 : i32
    %6 = arith.extui %5 : i1 to i32
    %c0_i32_4 = arith.constant 0 : i32
    %7 = arith.cmpi ne, %6, %c0_i32_4 : i32
    scf.if %7 {
      %c0_9 = arith.constant 0 : index
      %c0_10 = arith.constant 0 : index
      %14 = vector.load %arg8[%c0_9, %c0_10] : memref<16x128xf32, #tpu.memory_space<vmem>>, vector<16x128xf32>
      %c0_11 = arith.constant 0 : index
      %c0_12 = arith.constant 0 : index
      %15 = vector.load %arg9[%c0_11, %c0_12] : memref<16x128xf32, #tpu.memory_space<vmem>>, vector<16x128xf32>
      %c0_i32_13 = arith.constant 0 : i32
      %16 = arith.index_cast %c0_i32_13 : i32 to index
      %c0_14 = arith.constant 0 : index
      %c0_15 = arith.constant 0 : index
      %17 = vector.load %arg2[%16, %c0_14, %c0_15] : memref<8x16x512xf32, #tpu.memory_space<vmem>>, vector<1x16x512xf32>
      %18 = vector.shape_cast %17 : vector<1x16x512xf32> to vector<16x512xf32>
      %19 = vector.broadcast %4 : vector<1x512xf32> to vector<16x512xf32>
      %20 = arith.addf %18, %19 : vector<16x512xf32>
      %cst = arith.constant dense<0.000000e+00> : vector<16x512xf32>
      %21 = tpu.matmul %14, %3, %cst {dimension_numbers = #tpu.dot_dimension_numbers<[1], [0], [0], [1], [0, 0, 1, 1], [], []>} : vector<16x128xf32>, vector<128x512xf32>, vector<16x512xf32> -> vector<16x512xf32>
      %22 = arith.addf %20, %21 : vector<16x512xf32>
      %23 = vector.extract_strided_slice %22 {offsets = [0, 0], sizes = [16, 128], strides = [1, 1]} : vector<16x512xf32> to vector<16x128xf32>
      %24 = arith.negf %23 : vector<16x128xf32>
      %25 = math.exp %24 : vector<16x128xf32>
      %cst_16 = arith.constant 1.000000e+00 : f32
      %26 = vector.broadcast %cst_16 : f32 to vector<16x128xf32>
      %27 = arith.addf %26, %25 : vector<16x128xf32>
      %28 = arith.divf %26, %27 : vector<16x128xf32>
      %29 = vector.extract_strided_slice %22 {offsets = [0, 128], sizes = [16, 128], strides = [1, 1]} : vector<16x512xf32> to vector<16x128xf32>
      %30 = arith.negf %29 : vector<16x128xf32>
      %31 = math.exp %30 : vector<16x128xf32>
      %cst_17 = arith.constant 1.000000e+00 : f32
      %32 = vector.broadcast %cst_17 : f32 to vector<16x128xf32>
      %33 = arith.addf %32, %31 : vector<16x128xf32>
      %34 = arith.divf %32, %33 : vector<16x128xf32>
      %35 = vector.extract_strided_slice %22 {offsets = [0, 256], sizes = [16, 128], strides = [1, 1]} : vector<16x512xf32> to vector<16x128xf32>
      %36 = math.tanh %35 : vector<16x128xf32>
      %37 = vector.extract_strided_slice %22 {offsets = [0, 384], sizes = [16, 128], strides = [1, 1]} : vector<16x512xf32> to vector<16x128xf32>
      %38 = arith.negf %37 : vector<16x128xf32>
      %39 = math.exp %38 : vector<16x128xf32>
      %cst_18 = arith.constant 1.000000e+00 : f32
      %40 = vector.broadcast %cst_18 : f32 to vector<16x128xf32>
      %41 = arith.addf %40, %39 : vector<16x128xf32>
      %42 = arith.divf %40, %41 : vector<16x128xf32>
      %43 = arith.mulf %34, %15 : vector<16x128xf32>
      %44 = arith.mulf %28, %36 : vector<16x128xf32>
      %45 = arith.addf %43, %44 : vector<16x128xf32>
      %46 = math.tanh %45 : vector<16x128xf32>
      %47 = arith.mulf %42, %46 : vector<16x128xf32>
      %c1_i32_19 = arith.constant 1 : i32
      %48 = arith.index_cast %c1_i32_19 : i32 to index
      %c0_20 = arith.constant 0 : index
      %c0_21 = arith.constant 0 : index
      %49 = vector.load %arg2[%48, %c0_20, %c0_21] : memref<8x16x512xf32, #tpu.memory_space<vmem>>, vector<1x16x512xf32>
      %50 = vector.shape_cast %49 : vector<1x16x512xf32> to vector<16x512xf32>
      %51 = vector.broadcast %4 : vector<1x512xf32> to vector<16x512xf32>
      %52 = arith.addf %50, %51 : vector<16x512xf32>
      %cst_22 = arith.constant dense<0.000000e+00> : vector<16x512xf32>
      %53 = tpu.matmul %47, %3, %cst_22 {dimension_numbers = #tpu.dot_dimension_numbers<[1], [0], [0], [1], [0, 0, 1, 1], [], []>} : vector<16x128xf32>, vector<128x512xf32>, vector<16x512xf32> -> vector<16x512xf32>
      %54 = arith.addf %52, %53 : vector<16x512xf32>
      %55 = vector.extract_strided_slice %54 {offsets = [0, 0], sizes = [16, 128], strides = [1, 1]} : vector<16x512xf32> to vector<16x128xf32>
      %56 = arith.negf %55 : vector<16x128xf32>
      %57 = math.exp %56 : vector<16x128xf32>
      %cst_23 = arith.constant 1.000000e+00 : f32
      %58 = vector.broadcast %cst_23 : f32 to vector<16x128xf32>
      %59 = arith.addf %58, %57 : vector<16x128xf32>
      %60 = arith.divf %58, %59 : vector<16x128xf32>
      %61 = vector.extract_strided_slice %54 {offsets = [0, 128], sizes = [16, 128], strides = [1, 1]} : vector<16x512xf32> to vector<16x128xf32>
      %62 = arith.negf %61 : vector<16x128xf32>
      %63 = math.exp %62 : vector<16x128xf32>
      %cst_24 = arith.constant 1.000000e+00 : f32
      %64 = vector.broadcast %cst_24 : f32 to vector<16x128xf32>
      %65 = arith.addf %64, %63 : vector<16x128xf32>
      %66 = arith.divf %64, %65 : vector<16x128xf32>
      %67 = vector.extract_strided_slice %54 {offsets = [0, 256], sizes = [16, 128], strides = [1, 1]} : vector<16x512xf32> to vector<16x128xf32>
      %68 = math.tanh %67 : vector<16x128xf32>
      %69 = vector.extract_strided_slice %54 {offsets = [0, 384], sizes = [16, 128], strides = [1, 1]} : vector<16x512xf32> to vector<16x128xf32>
      %70 = arith.negf %69 : vector<16x128xf32>
      %71 = math.exp %70 : vector<16x128xf32>
      %cst_25 = arith.constant 1.000000e+00 : f32
      %72 = vector.broadcast %cst_25 : f32 to vector<16x128xf32>
      %73 = arith.addf %72, %71 : vector<16x128xf32>
      %74 = arith.divf %72, %73 : vector<16x128xf32>
      %75 = arith.mulf %66, %45 : vector<16x128xf32>
      %76 = arith.mulf %60, %68 : vector<16x128xf32>
      %77 = arith.addf %75, %76 : vector<16x128xf32>
      %78 = math.tanh %77 : vector<16x128xf32>
      %79 = arith.mulf %74, %78 : vector<16x128xf32>
      %c2_i32 = arith.constant 2 : i32
      %80 = arith.index_cast %c2_i32 : i32 to index
      %c0_26 = arith.constant 0 : index
      %c0_27 = arith.constant 0 : index
      %81 = vector.load %arg2[%80, %c0_26, %c0_27] : memref<8x16x512xf32, #tpu.memory_space<vmem>>, vector<1x16x512xf32>
      %82 = vector.shape_cast %81 : vector<1x16x512xf32> to vector<16x512xf32>
      %83 = vector.broadcast %4 : vector<1x512xf32> to vector<16x512xf32>
      %84 = arith.addf %82, %83 : vector<16x512xf32>
      %cst_28 = arith.constant dense<0.000000e+00> : vector<16x512xf32>
      %85 = tpu.matmul %79, %3, %cst_28 {dimension_numbers = #tpu.dot_dimension_numbers<[1], [0], [0], [1], [0, 0, 1, 1], [], []>} : vector<16x128xf32>, vector<128x512xf32>, vector<16x512xf32> -> vector<16x512xf32>
      %86 = arith.addf %84, %85 : vector<16x512xf32>
      %87 = vector.extract_strided_slice %86 {offsets = [0, 0], sizes = [16, 128], strides = [1, 1]} : vector<16x512xf32> to vector<16x128xf32>
      %88 = arith.negf %87 : vector<16x128xf32>
      %89 = math.exp %88 : vector<16x128xf32>
      %cst_29 = arith.constant 1.000000e+00 : f32
      %90 = vector.broadcast %cst_29 : f32 to vector<16x128xf32>
      %91 = arith.addf %90, %89 : vector<16x128xf32>
      %92 = arith.divf %90, %91 : vector<16x128xf32>
      %93 = vector.extract_strided_slice %86 {offsets = [0, 128], sizes = [16, 128], strides = [1, 1]} : vector<16x512xf32> to vector<16x128xf32>
      %94 = arith.negf %93 : vector<16x128xf32>
      %95 = math.exp %94 : vector<16x128xf32>
      %cst_30 = arith.constant 1.000000e+00 : f32
      %96 = vector.broadcast %cst_30 : f32 to vector<16x128xf32>
      %97 = arith.addf %96, %95 : vector<16x128xf32>
      %98 = arith.divf %96, %97 : vector<16x128xf32>
      %99 = vector.extract_strided_slice %86 {offsets = [0, 256], sizes = [16, 128], strides = [1, 1]} : vector<16x512xf32> to vector<16x128xf32>
      %100 = math.tanh %99 : vector<16x128xf32>
      %101 = vector.extract_strided_slice %86 {offsets = [0, 384], sizes = [16, 128], strides = [1, 1]} : vector<16x512xf32> to vector<16x128xf32>
      %102 = arith.negf %101 : vector<16x128xf32>
      %103 = math.exp %102 : vector<16x128xf32>
      %cst_31 = arith.constant 1.000000e+00 : f32
      %104 = vector.broadcast %cst_31 : f32 to vector<16x128xf32>
      %105 = arith.addf %104, %103 : vector<16x128xf32>
      %106 = arith.divf %104, %105 : vector<16x128xf32>
      %107 = arith.mulf %98, %77 : vector<16x128xf32>
      %108 = arith.mulf %92, %100 : vector<16x128xf32>
      %109 = arith.addf %107, %108 : vector<16x128xf32>
      %110 = math.tanh %109 : vector<16x128xf32>
      %111 = arith.mulf %106, %110 : vector<16x128xf32>
      %c3_i32 = arith.constant 3 : i32
      %112 = arith.index_cast %c3_i32 : i32 to index
      %c0_32 = arith.constant 0 : index
      %c0_33 = arith.constant 0 : index
      %113 = vector.load %arg2[%112, %c0_32, %c0_33] : memref<8x16x512xf32, #tpu.memory_space<vmem>>, vector<1x16x512xf32>
      %114 = vector.shape_cast %113 : vector<1x16x512xf32> to vector<16x512xf32>
      %115 = vector.broadcast %4 : vector<1x512xf32> to vector<16x512xf32>
      %116 = arith.addf %114, %115 : vector<16x512xf32>
      %cst_34 = arith.constant dense<0.000000e+00> : vector<16x512xf32>
      %117 = tpu.matmul %111, %3, %cst_34 {dimension_numbers = #tpu.dot_dimension_numbers<[1], [0], [0], [1], [0, 0, 1, 1], [], []>} : vector<16x128xf32>, vector<128x512xf32>, vector<16x512xf32> -> vector<16x512xf32>
      %118 = arith.addf %116, %117 : vector<16x512xf32>
      %119 = vector.extract_strided_slice %118 {offsets = [0, 0], sizes = [16, 128], strides = [1, 1]} : vector<16x512xf32> to vector<16x128xf32>
      %120 = arith.negf %119 : vector<16x128xf32>
      %121 = math.exp %120 : vector<16x128xf32>
      %cst_35 = arith.constant 1.000000e+00 : f32
      %122 = vector.broadcast %cst_35 : f32 to vector<16x128xf32>
      %123 = arith.addf %122, %121 : vector<16x128xf32>
      %124 = arith.divf %122, %123 : vector<16x128xf32>
      %125 = vector.extract_strided_slice %118 {offsets = [0, 128], sizes = [16, 128], strides = [1, 1]} : vector<16x512xf32> to vector<16x128xf32>
      %126 = arith.negf %125 : vector<16x128xf32>
      %127 = math.exp %126 : vector<16x128xf32>
      %cst_36 = arith.constant 1.000000e+00 : f32
      %128 = vector.broadcast %cst_36 : f32 to vector<16x128xf32>
      %129 = arith.addf %128, %127 : vector<16x128xf32>
      %130 = arith.divf %128, %129 : vector<16x128xf32>
      %131 = vector.extract_strided_slice %118 {offsets = [0, 256], sizes = [16, 128], strides = [1, 1]} : vector<16x512xf32> to vector<16x128xf32>
      %132 = math.tanh %131 : vector<16x128xf32>
      %133 = vector.extract_strided_slice %118 {offsets = [0, 384], sizes = [16, 128], strides = [1, 1]} : vector<16x512xf32> to vector<16x128xf32>
      %134 = arith.negf %133 : vector<16x128xf32>
      %135 = math.exp %134 : vector<16x128xf32>
      %cst_37 = arith.constant 1.000000e+00 : f32
      %136 = vector.broadcast %cst_37 : f32 to vector<16x128xf32>
      %137 = arith.addf %136, %135 : vector<16x128xf32>
      %138 = arith.divf %136, %137 : vector<16x128xf32>
      %139 = arith.mulf %130, %109 : vector<16x128xf32>
      %140 = arith.mulf %124, %132 : vector<16x128xf32>
      %141 = arith.addf %139, %140 : vector<16x128xf32>
      %142 = math.tanh %141 : vector<16x128xf32>
      %143 = arith.mulf %138, %142 : vector<16x128xf32>
      %c4_i32 = arith.constant 4 : i32
      %144 = arith.index_cast %c4_i32 : i32 to index
      %c0_38 = arith.constant 0 : index
      %c0_39 = arith.constant 0 : index
      %145 = vector.load %arg2[%144, %c0_38, %c0_39] : memref<8x16x512xf32, #tpu.memory_space<vmem>>, vector<1x16x512xf32>
      %146 = vector.shape_cast %145 : vector<1x16x512xf32> to vector<16x512xf32>
      %147 = vector.broadcast %4 : vector<1x512xf32> to vector<16x512xf32>
      %148 = arith.addf %146, %147 : vector<16x512xf32>
      %cst_40 = arith.constant dense<0.000000e+00> : vector<16x512xf32>
      %149 = tpu.matmul %143, %3, %cst_40 {dimension_numbers = #tpu.dot_dimension_numbers<[1], [0], [0], [1], [0, 0, 1, 1], [], []>} : vector<16x128xf32>, vector<128x512xf32>, vector<16x512xf32> -> vector<16x512xf32>
      %150 = arith.addf %148, %149 : vector<16x512xf32>
      %151 = vector.extract_strided_slice %150 {offsets = [0, 0], sizes = [16, 128], strides = [1, 1]} : vector<16x512xf32> to vector<16x128xf32>
      %152 = arith.negf %151 : vector<16x128xf32>
      %153 = math.exp %152 : vector<16x128xf32>
      %cst_41 = arith.constant 1.000000e+00 : f32
      %154 = vector.broadcast %cst_41 : f32 to vector<16x128xf32>
      %155 = arith.addf %154, %153 : vector<16x128xf32>
      %156 = arith.divf %154, %155 : vector<16x128xf32>
      %157 = vector.extract_strided_slice %150 {offsets = [0, 128], sizes = [16, 128], strides = [1, 1]} : vector<16x512xf32> to vector<16x128xf32>
      %158 = arith.negf %157 : vector<16x128xf32>
      %159 = math.exp %158 : vector<16x128xf32>
      %cst_42 = arith.constant 1.000000e+00 : f32
      %160 = vector.broadcast %cst_42 : f32 to vector<16x128xf32>
      %161 = arith.addf %160, %159 : vector<16x128xf32>
      %162 = arith.divf %160, %161 : vector<16x128xf32>
      %163 = vector.extract_strided_slice %150 {offsets = [0, 256], sizes = [16, 128], strides = [1, 1]} : vector<16x512xf32> to vector<16x128xf32>
      %164 = math.tanh %163 : vector<16x128xf32>
      %165 = vector.extract_strided_slice %150 {offsets = [0, 384], sizes = [16, 128], strides = [1, 1]} : vector<16x512xf32> to vector<16x128xf32>
      %166 = arith.negf %165 : vector<16x128xf32>
      %167 = math.exp %166 : vector<16x128xf32>
      %cst_43 = arith.constant 1.000000e+00 : f32
      %168 = vector.broadcast %cst_43 : f32 to vector<16x128xf32>
      %169 = arith.addf %168, %167 : vector<16x128xf32>
      %170 = arith.divf %168, %169 : vector<16x128xf32>
      %171 = arith.mulf %162, %141 : vector<16x128xf32>
      %172 = arith.mulf %156, %164 : vector<16x128xf32>
      %173 = arith.addf %171, %172 : vector<16x128xf32>
      %174 = math.tanh %173 : vector<16x128xf32>
      %175 = arith.mulf %170, %174 : vector<16x128xf32>
      %c5_i32 = arith.constant 5 : i32
      %176 = arith.index_cast %c5_i32 : i32 to index
      %c0_44 = arith.constant 0 : index
      %c0_45 = arith.constant 0 : index
      %177 = vector.load %arg2[%176, %c0_44, %c0_45] : memref<8x16x512xf32, #tpu.memory_space<vmem>>, vector<1x16x512xf32>
      %178 = vector.shape_cast %177 : vector<1x16x512xf32> to vector<16x512xf32>
      %179 = vector.broadcast %4 : vector<1x512xf32> to vector<16x512xf32>
      %180 = arith.addf %178, %179 : vector<16x512xf32>
      %cst_46 = arith.constant dense<0.000000e+00> : vector<16x512xf32>
      %181 = tpu.matmul %175, %3, %cst_46 {dimension_numbers = #tpu.dot_dimension_numbers<[1], [0], [0], [1], [0, 0, 1, 1], [], []>} : vector<16x128xf32>, vector<128x512xf32>, vector<16x512xf32> -> vector<16x512xf32>
      %182 = arith.addf %180, %181 : vector<16x512xf32>
      %183 = vector.extract_strided_slice %182 {offsets = [0, 0], sizes = [16, 128], strides = [1, 1]} : vector<16x512xf32> to vector<16x128xf32>
      %184 = arith.negf %183 : vector<16x128xf32>
      %185 = math.exp %184 : vector<16x128xf32>
      %cst_47 = arith.constant 1.000000e+00 : f32
      %186 = vector.broadcast %cst_47 : f32 to vector<16x128xf32>
      %187 = arith.addf %186, %185 : vector<16x128xf32>
      %188 = arith.divf %186, %187 : vector<16x128xf32>
      %189 = vector.extract_strided_slice %182 {offsets = [0, 128], sizes = [16, 128], strides = [1, 1]} : vector<16x512xf32> to vector<16x128xf32>
      %190 = arith.negf %189 : vector<16x128xf32>
      %191 = math.exp %190 : vector<16x128xf32>
      %cst_48 = arith.constant 1.000000e+00 : f32
      %192 = vector.broadcast %cst_48 : f32 to vector<16x128xf32>
      %193 = arith.addf %192, %191 : vector<16x128xf32>
      %194 = arith.divf %192, %193 : vector<16x128xf32>
      %195 = vector.extract_strided_slice %182 {offsets = [0, 256], sizes = [16, 128], strides = [1, 1]} : vector<16x512xf32> to vector<16x128xf32>
      %196 = math.tanh %195 : vector<16x128xf32>
      %197 = vector.extract_strided_slice %182 {offsets = [0, 384], sizes = [16, 128], strides = [1, 1]} : vector<16x512xf32> to vector<16x128xf32>
      %198 = arith.negf %197 : vector<16x128xf32>
      %199 = math.exp %198 : vector<16x128xf32>
      %cst_49 = arith.constant 1.000000e+00 : f32
      %200 = vector.broadcast %cst_49 : f32 to vector<16x128xf32>
      %201 = arith.addf %200, %199 : vector<16x128xf32>
      %202 = arith.divf %200, %201 : vector<16x128xf32>
      %203 = arith.mulf %194, %173 : vector<16x128xf32>
      %204 = arith.mulf %188, %196 : vector<16x128xf32>
      %205 = arith.addf %203, %204 : vector<16x128xf32>
      %206 = math.tanh %205 : vector<16x128xf32>
      %207 = arith.mulf %202, %206 : vector<16x128xf32>
      %c6_i32 = arith.constant 6 : i32
      %208 = arith.index_cast %c6_i32 : i32 to index
      %c0_50 = arith.constant 0 : index
      %c0_51 = arith.constant 0 : index
      %209 = vector.load %arg2[%208, %c0_50, %c0_51] : memref<8x16x512xf32, #tpu.memory_space<vmem>>, vector<1x16x512xf32>
      %210 = vector.shape_cast %209 : vector<1x16x512xf32> to vector<16x512xf32>
      %211 = vector.broadcast %4 : vector<1x512xf32> to vector<16x512xf32>
      %212 = arith.addf %210, %211 : vector<16x512xf32>
      %cst_52 = arith.constant dense<0.000000e+00> : vector<16x512xf32>
      %213 = tpu.matmul %207, %3, %cst_52 {dimension_numbers = #tpu.dot_dimension_numbers<[1], [0], [0], [1], [0, 0, 1, 1], [], []>} : vector<16x128xf32>, vector<128x512xf32>, vector<16x512xf32> -> vector<16x512xf32>
      %214 = arith.addf %212, %213 : vector<16x512xf32>
      %215 = vector.extract_strided_slice %214 {offsets = [0, 0], sizes = [16, 128], strides = [1, 1]} : vector<16x512xf32> to vector<16x128xf32>
      %216 = arith.negf %215 : vector<16x128xf32>
      %217 = math.exp %216 : vector<16x128xf32>
      %cst_53 = arith.constant 1.000000e+00 : f32
      %218 = vector.broadcast %cst_53 : f32 to vector<16x128xf32>
      %219 = arith.addf %218, %217 : vector<16x128xf32>
      %220 = arith.divf %218, %219 : vector<16x128xf32>
      %221 = vector.extract_strided_slice %214 {offsets = [0, 128], sizes = [16, 128], strides = [1, 1]} : vector<16x512xf32> to vector<16x128xf32>
      %222 = arith.negf %221 : vector<16x128xf32>
      %223 = math.exp %222 : vector<16x128xf32>
      %cst_54 = arith.constant 1.000000e+00 : f32
      %224 = vector.broadcast %cst_54 : f32 to vector<16x128xf32>
      %225 = arith.addf %224, %223 : vector<16x128xf32>
      %226 = arith.divf %224, %225 : vector<16x128xf32>
      %227 = vector.extract_strided_slice %214 {offsets = [0, 256], sizes = [16, 128], strides = [1, 1]} : vector<16x512xf32> to vector<16x128xf32>
      %228 = math.tanh %227 : vector<16x128xf32>
      %229 = vector.extract_strided_slice %214 {offsets = [0, 384], sizes = [16, 128], strides = [1, 1]} : vector<16x512xf32> to vector<16x128xf32>
      %230 = arith.negf %229 : vector<16x128xf32>
      %231 = math.exp %230 : vector<16x128xf32>
      %cst_55 = arith.constant 1.000000e+00 : f32
      %232 = vector.broadcast %cst_55 : f32 to vector<16x128xf32>
      %233 = arith.addf %232, %231 : vector<16x128xf32>
      %234 = arith.divf %232, %233 : vector<16x128xf32>
      %235 = arith.mulf %226, %205 : vector<16x128xf32>
      %236 = arith.mulf %220, %228 : vector<16x128xf32>
      %237 = arith.addf %235, %236 : vector<16x128xf32>
      %238 = math.tanh %237 : vector<16x128xf32>
      %239 = arith.mulf %234, %238 : vector<16x128xf32>
      %c7_i32 = arith.constant 7 : i32
      %240 = arith.index_cast %c7_i32 : i32 to index
      %c0_56 = arith.constant 0 : index
      %c0_57 = arith.constant 0 : index
      %241 = vector.load %arg2[%240, %c0_56, %c0_57] : memref<8x16x512xf32, #tpu.memory_space<vmem>>, vector<1x16x512xf32>
      %242 = vector.shape_cast %241 : vector<1x16x512xf32> to vector<16x512xf32>
      %243 = vector.broadcast %4 : vector<1x512xf32> to vector<16x512xf32>
      %244 = arith.addf %242, %243 : vector<16x512xf32>
      %cst_58 = arith.constant dense<0.000000e+00> : vector<16x512xf32>
      %245 = tpu.matmul %239, %3, %cst_58 {dimension_numbers = #tpu.dot_dimension_numbers<[1], [0], [0], [1], [0, 0, 1, 1], [], []>} : vector<16x128xf32>, vector<128x512xf32>, vector<16x512xf32> -> vector<16x512xf32>
      %246 = arith.addf %244, %245 : vector<16x512xf32>
      %247 = vector.extract_strided_slice %246 {offsets = [0, 0], sizes = [16, 128], strides = [1, 1]} : vector<16x512xf32> to vector<16x128xf32>
      %248 = arith.negf %247 : vector<16x128xf32>
      %249 = math.exp %248 : vector<16x128xf32>
      %cst_59 = arith.constant 1.000000e+00 : f32
      %250 = vector.broadcast %cst_59 : f32 to vector<16x128xf32>
      %251 = arith.addf %250, %249 : vector<16x128xf32>
      %252 = arith.divf %250, %251 : vector<16x128xf32>
      %253 = vector.extract_strided_slice %246 {offsets = [0, 128], sizes = [16, 128], strides = [1, 1]} : vector<16x512xf32> to vector<16x128xf32>
      %254 = arith.negf %253 : vector<16x128xf32>
      %255 = math.exp %254 : vector<16x128xf32>
      %cst_60 = arith.constant 1.000000e+00 : f32
      %256 = vector.broadcast %cst_60 : f32 to vector<16x128xf32>
      %257 = arith.addf %256, %255 : vector<16x128xf32>
      %258 = arith.divf %256, %257 : vector<16x128xf32>
      %259 = vector.extract_strided_slice %246 {offsets = [0, 256], sizes = [16, 128], strides = [1, 1]} : vector<16x512xf32> to vector<16x128xf32>
      %260 = math.tanh %259 : vector<16x128xf32>
      %261 = vector.extract_strided_slice %246 {offsets = [0, 384], sizes = [16, 128], strides = [1, 1]} : vector<16x512xf32> to vector<16x128xf32>
      %262 = arith.negf %261 : vector<16x128xf32>
      %263 = math.exp %262 : vector<16x128xf32>
      %cst_61 = arith.constant 1.000000e+00 : f32
      %264 = vector.broadcast %cst_61 : f32 to vector<16x128xf32>
      %265 = arith.addf %264, %263 : vector<16x128xf32>
      %266 = arith.divf %264, %265 : vector<16x128xf32>
      %267 = arith.mulf %258, %237 : vector<16x128xf32>
      %268 = arith.mulf %252, %260 : vector<16x128xf32>
      %269 = arith.addf %267, %268 : vector<16x128xf32>
      %270 = math.tanh %269 : vector<16x128xf32>
      %271 = arith.mulf %266, %270 : vector<16x128xf32>
      %c8_i32 = arith.constant 8 : i32
      %c0_62 = arith.constant 0 : index
      %c0_63 = arith.constant 0 : index
      %272 = vector.load %arg8[%c0_62, %c0_63] : memref<16x128xf32, #tpu.memory_space<vmem>>, vector<16x128xf32>
      tpu.vector_store %arg8[%c0_62, %c0_63], %271 {strides = array<i32>} : memref<16x128xf32, #tpu.memory_space<vmem>>, vector<16x128xf32>,
      %c0_64 = arith.constant 0 : index
      %c0_65 = arith.constant 0 : index
      %273 = vector.load %arg9[%c0_64, %c0_65] : memref<16x128xf32, #tpu.memory_space<vmem>>, vector<16x128xf32>
      tpu.vector_store %arg9[%c0_64, %c0_65], %269 {strides = array<i32>} : memref<16x128xf32, #tpu.memory_space<vmem>>, vector<16x128xf32>,
    } else {
    }
    %c1_i32_5 = arith.constant 1 : i32
    %8 = arith.cmpi eq, %arg1, %c1_i32_5 : i32
    %9 = arith.extui %8 : i1 to i32
    %c0_i32_6 = arith.constant 0 : i32
    %10 = arith.cmpi ne, %9, %c0_i32_6 : i32
    scf.if %10 {
      %c0_9 = arith.constant 0 : index
      %c0_10 = arith.constant 0 : index
      %14 = vector.load %arg8[%c0_9, %c0_10] : memref<16x128xf32, #tpu.memory_space<vmem>>, vector<16x128xf32>
      %c0_11 = arith.constant 0 : index
      %c0_12 = arith.constant 0 : index
      %15 = vector.load %arg9[%c0_11, %c0_12] : memref<16x128xf32, #tpu.memory_space<vmem>>, vector<16x128xf32>
      %c0_i32_13 = arith.constant 0 : i32
      %16 = arith.index_cast %c0_i32_13 : i32 to index
      %c0_14 = arith.constant 0 : index
      %c0_15 = arith.constant 0 : index
      %17 = vector.load %arg2[%16, %c0_14, %c0_15] : memref<8x16x512xf32, #tpu.memory_space<vmem>>, vector<1x16x512xf32>
      %18 = vector.shape_cast %17 : vector<1x16x512xf32> to vector<16x512xf32>
      %19 = vector.broadcast %4 : vector<1x512xf32> to vector<16x512xf32>
      %20 = arith.addf %18, %19 : vector<16x512xf32>
      %cst = arith.constant dense<0.000000e+00> : vector<16x512xf32>
      %21 = tpu.matmul %14, %3, %cst {dimension_numbers = #tpu.dot_dimension_numbers<[1], [0], [0], [1], [0, 0, 1, 1], [], []>} : vector<16x128xf32>, vector<128x512xf32>, vector<16x512xf32> -> vector<16x512xf32>
      %22 = arith.addf %20, %21 : vector<16x512xf32>
      %23 = vector.extract_strided_slice %22 {offsets = [0, 0], sizes = [16, 128], strides = [1, 1]} : vector<16x512xf32> to vector<16x128xf32>
      %24 = arith.negf %23 : vector<16x128xf32>
      %25 = math.exp %24 : vector<16x128xf32>
      %cst_16 = arith.constant 1.000000e+00 : f32
      %26 = vector.broadcast %cst_16 : f32 to vector<16x128xf32>
      %27 = arith.addf %26, %25 : vector<16x128xf32>
      %28 = arith.divf %26, %27 : vector<16x128xf32>
      %29 = vector.extract_strided_slice %22 {offsets = [0, 128], sizes = [16, 128], strides = [1, 1]} : vector<16x512xf32> to vector<16x128xf32>
      %30 = arith.negf %29 : vector<16x128xf32>
      %31 = math.exp %30 : vector<16x128xf32>
      %cst_17 = arith.constant 1.000000e+00 : f32
      %32 = vector.broadcast %cst_17 : f32 to vector<16x128xf32>
      %33 = arith.addf %32, %31 : vector<16x128xf32>
      %34 = arith.divf %32, %33 : vector<16x128xf32>
      %35 = vector.extract_strided_slice %22 {offsets = [0, 256], sizes = [16, 128], strides = [1, 1]} : vector<16x512xf32> to vector<16x128xf32>
      %36 = math.tanh %35 : vector<16x128xf32>
      %37 = vector.extract_strided_slice %22 {offsets = [0, 384], sizes = [16, 128], strides = [1, 1]} : vector<16x512xf32> to vector<16x128xf32>
      %38 = arith.negf %37 : vector<16x128xf32>
      %39 = math.exp %38 : vector<16x128xf32>
      %cst_18 = arith.constant 1.000000e+00 : f32
      %40 = vector.broadcast %cst_18 : f32 to vector<16x128xf32>
      %41 = arith.addf %40, %39 : vector<16x128xf32>
      %42 = arith.divf %40, %41 : vector<16x128xf32>
      %43 = arith.mulf %34, %15 : vector<16x128xf32>
      %44 = arith.mulf %28, %36 : vector<16x128xf32>
      %45 = arith.addf %43, %44 : vector<16x128xf32>
      %46 = math.tanh %45 : vector<16x128xf32>
      %47 = arith.mulf %42, %46 : vector<16x128xf32>
      %c1_i32_19 = arith.constant 1 : i32
      %48 = arith.index_cast %c1_i32_19 : i32 to index
      %c0_20 = arith.constant 0 : index
      %c0_21 = arith.constant 0 : index
      %49 = vector.load %arg2[%48, %c0_20, %c0_21] : memref<8x16x512xf32, #tpu.memory_space<vmem>>, vector<1x16x512xf32>
      %50 = vector.shape_cast %49 : vector<1x16x512xf32> to vector<16x512xf32>
      %51 = vector.broadcast %4 : vector<1x512xf32> to vector<16x512xf32>
      %52 = arith.addf %50, %51 : vector<16x512xf32>
      %cst_22 = arith.constant dense<0.000000e+00> : vector<16x512xf32>
      %53 = tpu.matmul %47, %3, %cst_22 {dimension_numbers = #tpu.dot_dimension_numbers<[1], [0], [0], [1], [0, 0, 1, 1], [], []>} : vector<16x128xf32>, vector<128x512xf32>, vector<16x512xf32> -> vector<16x512xf32>
      %54 = arith.addf %52, %53 : vector<16x512xf32>
      %55 = vector.extract_strided_slice %54 {offsets = [0, 0], sizes = [16, 128], strides = [1, 1]} : vector<16x512xf32> to vector<16x128xf32>
      %56 = arith.negf %55 : vector<16x128xf32>
      %57 = math.exp %56 : vector<16x128xf32>
      %cst_23 = arith.constant 1.000000e+00 : f32
      %58 = vector.broadcast %cst_23 : f32 to vector<16x128xf32>
      %59 = arith.addf %58, %57 : vector<16x128xf32>
      %60 = arith.divf %58, %59 : vector<16x128xf32>
      %61 = vector.extract_strided_slice %54 {offsets = [0, 128], sizes = [16, 128], strides = [1, 1]} : vector<16x512xf32> to vector<16x128xf32>
      %62 = arith.negf %61 : vector<16x128xf32>
      %63 = math.exp %62 : vector<16x128xf32>
      %cst_24 = arith.constant 1.000000e+00 : f32
      %64 = vector.broadcast %cst_24 : f32 to vector<16x128xf32>
      %65 = arith.addf %64, %63 : vector<16x128xf32>
      %66 = arith.divf %64, %65 : vector<16x128xf32>
      %67 = vector.extract_strided_slice %54 {offsets = [0, 256], sizes = [16, 128], strides = [1, 1]} : vector<16x512xf32> to vector<16x128xf32>
      %68 = math.tanh %67 : vector<16x128xf32>
      %69 = vector.extract_strided_slice %54 {offsets = [0, 384], sizes = [16, 128], strides = [1, 1]} : vector<16x512xf32> to vector<16x128xf32>
      %70 = arith.negf %69 : vector<16x128xf32>
      %71 = math.exp %70 : vector<16x128xf32>
      %cst_25 = arith.constant 1.000000e+00 : f32
      %72 = vector.broadcast %cst_25 : f32 to vector<16x128xf32>
      %73 = arith.addf %72, %71 : vector<16x128xf32>
      %74 = arith.divf %72, %73 : vector<16x128xf32>
      %75 = arith.mulf %66, %45 : vector<16x128xf32>
      %76 = arith.mulf %60, %68 : vector<16x128xf32>
      %77 = arith.addf %75, %76 : vector<16x128xf32>
      %78 = math.tanh %77 : vector<16x128xf32>
      %79 = arith.mulf %74, %78 : vector<16x128xf32>
      %c2_i32 = arith.constant 2 : i32
      %80 = arith.index_cast %c2_i32 : i32 to index
      %c0_26 = arith.constant 0 : index
      %c0_27 = arith.constant 0 : index
      %81 = vector.load %arg2[%80, %c0_26, %c0_27] : memref<8x16x512xf32, #tpu.memory_space<vmem>>, vector<1x16x512xf32>
      %82 = vector.shape_cast %81 : vector<1x16x512xf32> to vector<16x512xf32>
      %83 = vector.broadcast %4 : vector<1x512xf32> to vector<16x512xf32>
      %84 = arith.addf %82, %83 : vector<16x512xf32>
      %cst_28 = arith.constant dense<0.000000e+00> : vector<16x512xf32>
      %85 = tpu.matmul %79, %3, %cst_28 {dimension_numbers = #tpu.dot_dimension_numbers<[1], [0], [0], [1], [0, 0, 1, 1], [], []>} : vector<16x128xf32>, vector<128x512xf32>, vector<16x512xf32> -> vector<16x512xf32>
      %86 = arith.addf %84, %85 : vector<16x512xf32>
      %87 = vector.extract_strided_slice %86 {offsets = [0, 0], sizes = [16, 128], strides = [1, 1]} : vector<16x512xf32> to vector<16x128xf32>
      %88 = arith.negf %87 : vector<16x128xf32>
      %89 = math.exp %88 : vector<16x128xf32>
      %cst_29 = arith.constant 1.000000e+00 : f32
      %90 = vector.broadcast %cst_29 : f32 to vector<16x128xf32>
      %91 = arith.addf %90, %89 : vector<16x128xf32>
      %92 = arith.divf %90, %91 : vector<16x128xf32>
      %93 = vector.extract_strided_slice %86 {offsets = [0, 128], sizes = [16, 128], strides = [1, 1]} : vector<16x512xf32> to vector<16x128xf32>
      %94 = arith.negf %93 : vector<16x128xf32>
      %95 = math.exp %94 : vector<16x128xf32>
      %cst_30 = arith.constant 1.000000e+00 : f32
      %96 = vector.broadcast %cst_30 : f32 to vector<16x128xf32>
      %97 = arith.addf %96, %95 : vector<16x128xf32>
      %98 = arith.divf %96, %97 : vector<16x128xf32>
      %99 = vector.extract_strided_slice %86 {offsets = [0, 256], sizes = [16, 128], strides = [1, 1]} : vector<16x512xf32> to vector<16x128xf32>
      %100 = math.tanh %99 : vector<16x128xf32>
      %101 = vector.extract_strided_slice %86 {offsets = [0, 384], sizes = [16, 128], strides = [1, 1]} : vector<16x512xf32> to vector<16x128xf32>
      %102 = arith.negf %101 : vector<16x128xf32>
      %103 = math.exp %102 : vector<16x128xf32>
      %cst_31 = arith.constant 1.000000e+00 : f32
      %104 = vector.broadcast %cst_31 : f32 to vector<16x128xf32>
      %105 = arith.addf %104, %103 : vector<16x128xf32>
      %106 = arith.divf %104, %105 : vector<16x128xf32>
      %107 = arith.mulf %98, %77 : vector<16x128xf32>
      %108 = arith.mulf %92, %100 : vector<16x128xf32>
      %109 = arith.addf %107, %108 : vector<16x128xf32>
      %110 = math.tanh %109 : vector<16x128xf32>
      %111 = arith.mulf %106, %110 : vector<16x128xf32>
      %c3_i32 = arith.constant 3 : i32
      %112 = arith.index_cast %c3_i32 : i32 to index
      %c0_32 = arith.constant 0 : index
      %c0_33 = arith.constant 0 : index
      %113 = vector.load %arg2[%112, %c0_32, %c0_33] : memref<8x16x512xf32, #tpu.memory_space<vmem>>, vector<1x16x512xf32>
      %114 = vector.shape_cast %113 : vector<1x16x512xf32> to vector<16x512xf32>
      %115 = vector.broadcast %4 : vector<1x512xf32> to vector<16x512xf32>
      %116 = arith.addf %114, %115 : vector<16x512xf32>
      %cst_34 = arith.constant dense<0.000000e+00> : vector<16x512xf32>
      %117 = tpu.matmul %111, %3, %cst_34 {dimension_numbers = #tpu.dot_dimension_numbers<[1], [0], [0], [1], [0, 0, 1, 1], [], []>} : vector<16x128xf32>, vector<128x512xf32>, vector<16x512xf32> -> vector<16x512xf32>
      %118 = arith.addf %116, %117 : vector<16x512xf32>
      %119 = vector.extract_strided_slice %118 {offsets = [0, 0], sizes = [16, 128], strides = [1, 1]} : vector<16x512xf32> to vector<16x128xf32>
      %120 = arith.negf %119 : vector<16x128xf32>
      %121 = math.exp %120 : vector<16x128xf32>
      %cst_35 = arith.constant 1.000000e+00 : f32
      %122 = vector.broadcast %cst_35 : f32 to vector<16x128xf32>
      %123 = arith.addf %122, %121 : vector<16x128xf32>
      %124 = arith.divf %122, %123 : vector<16x128xf32>
      %125 = vector.extract_strided_slice %118 {offsets = [0, 128], sizes = [16, 128], strides = [1, 1]} : vector<16x512xf32> to vector<16x128xf32>
      %126 = arith.negf %125 : vector<16x128xf32>
      %127 = math.exp %126 : vector<16x128xf32>
      %cst_36 = arith.constant 1.000000e+00 : f32
      %128 = vector.broadcast %cst_36 : f32 to vector<16x128xf32>
      %129 = arith.addf %128, %127 : vector<16x128xf32>
      %130 = arith.divf %128, %129 : vector<16x128xf32>
      %131 = vector.extract_strided_slice %118 {offsets = [0, 256], sizes = [16, 128], strides = [1, 1]} : vector<16x512xf32> to vector<16x128xf32>
      %132 = math.tanh %131 : vector<16x128xf32>
      %133 = vector.extract_strided_slice %118 {offsets = [0, 384], sizes = [16, 128], strides = [1, 1]} : vector<16x512xf32> to vector<16x128xf32>
      %134 = arith.negf %133 : vector<16x128xf32>
      %135 = math.exp %134 : vector<16x128xf32>
      %cst_37 = arith.constant 1.000000e+00 : f32
      %136 = vector.broadcast %cst_37 : f32 to vector<16x128xf32>
      %137 = arith.addf %136, %135 : vector<16x128xf32>
      %138 = arith.divf %136, %137 : vector<16x128xf32>
      %139 = arith.mulf %130, %109 : vector<16x128xf32>
      %140 = arith.mulf %124, %132 : vector<16x128xf32>
      %141 = arith.addf %139, %140 : vector<16x128xf32>
      %142 = math.tanh %141 : vector<16x128xf32>
      %143 = arith.mulf %138, %142 : vector<16x128xf32>
      %c4_i32 = arith.constant 4 : i32
      %c0_38 = arith.constant 0 : index
      %c0_39 = arith.constant 0 : index
      %144 = vector.load %arg8[%c0_38, %c0_39] : memref<16x128xf32, #tpu.memory_space<vmem>>, vector<16x128xf32>
      tpu.vector_store %arg8[%c0_38, %c0_39], %143 {strides = array<i32>} : memref<16x128xf32, #tpu.memory_space<vmem>>, vector<16x128xf32>,
      %c0_40 = arith.constant 0 : index
      %c0_41 = arith.constant 0 : index
      %145 = vector.load %arg9[%c0_40, %c0_41] : memref<16x128xf32, #tpu.memory_space<vmem>>, vector<16x128xf32>
      tpu.vector_store %arg9[%c0_40, %c0_41], %141 {strides = array<i32>} : memref<16x128xf32, #tpu.memory_space<vmem>>, vector<16x128xf32>,
    } else {
    }
    %c1_i32_7 = arith.constant 1 : i32
    %11 = arith.cmpi eq, %arg1, %c1_i32_7 : i32
    %12 = arith.extui %11 : i1 to i32
    %c0_i32_8 = arith.constant 0 : i32
    %13 = arith.cmpi ne, %12, %c0_i32_8 : i32
    scf.if %13 {
      %c0_9 = arith.constant 0 : index
      %c0_10 = arith.constant 0 : index
      %14 = vector.load %arg8[%c0_9, %c0_10] : memref<16x128xf32, #tpu.memory_space<vmem>>, vector<16x128xf32>
      %c0_11 = arith.constant 0 : index
      %c0_12 = arith.constant 0 : index
      %15 = vector.load %arg5[%c0_11, %c0_12] : memref<128x128xf32, #tpu.memory_space<vmem>>, vector<128x128xf32>
      %cst = arith.constant dense<0.000000e+00> : vector<16x128xf32>
      %16 = tpu.matmul %14, %15, %cst {dimension_numbers = #tpu.dot_dimension_numbers<[1], [0], [0], [1], [0, 0, 1, 1], [], []>} : vector<16x128xf32>, vector<128x128xf32>, vector<16x128xf32> -> vector<16x128xf32>
      %c0_13 = arith.constant 0 : index
      %c0_14 = arith.constant 0 : index
      %17 = vector.load %arg6[%c0_13, %c0_14] : memref<1x128xf32, #tpu.memory_space<vmem>>, vector<1x128xf32>
      %18 = vector.broadcast %17 : vector<1x128xf32> to vector<16x128xf32>
      %19 = arith.addf %16, %18 : vector<16x128xf32>
      %c0_15 = arith.constant 0 : index
      %c0_16 = arith.constant 0 : index
      %20 = vector.load %arg7[%c0_15, %c0_16] : memref<16x128xf32, #tpu.memory_space<vmem>>, vector<16x128xf32>
      tpu.vector_store %arg7[%c0_15, %c0_16], %19 {strides = array<i32>} : memref<16x128xf32, #tpu.memory_space<vmem>>, vector<16x128xf32>,
    } else {
    }
    return
  }
  func.func @transform_0(%arg0: i32, %arg1: i32) -> (i32, i32, i32) {
    %c0_i32 = arith.constant 0 : i32
    %c0_i32_0 = arith.constant 0 : i32
    return %arg1, %arg0, %c0_i32 : i32, i32, i32
  }
  func.func @transform_1(%arg0: i32, %arg1: i32) -> (i32, i32) {
    %c0_i32 = arith.constant 0 : i32
    %c0_i32_0 = arith.constant 0 : i32
    %c0_i32_1 = arith.constant 0 : i32
    return %c0_i32, %c0_i32_0 : i32, i32
  }
  func.func @transform_2(%arg0: i32, %arg1: i32) -> (i32, i32) {
    %c0_i32 = arith.constant 0 : i32
    %c0_i32_0 = arith.constant 0 : i32
    %c0_i32_1 = arith.constant 0 : i32
    return %c0_i32, %c0_i32_0 : i32, i32
  }
  func.func @transform_3(%arg0: i32, %arg1: i32) -> (i32, i32) {
    %c0_i32 = arith.constant 0 : i32
    %c0_i32_0 = arith.constant 0 : i32
    %c0_i32_1 = arith.constant 0 : i32
    return %c0_i32, %c0_i32_0 : i32, i32
  }
  func.func @transform_4(%arg0: i32, %arg1: i32) -> (i32, i32) {
    %c0_i32 = arith.constant 0 : i32
    %c0_i32_0 = arith.constant 0 : i32
    %c0_i32_1 = arith.constant 0 : i32
    return %c0_i32, %c0_i32_0 : i32, i32
  }
  func.func @transform_5(%arg0: i32, %arg1: i32) -> (i32, i32) {
    %c0_i32 = arith.constant 0 : i32
    %c0_i32_0 = arith.constant 0 : i32
    return %arg0, %c0_i32 : i32, i32
  }
}

</mosaic_0001>

<llo_original>
// kernel: tpu_custom_call.1
$region0: #{tpu_custom_call.1}
  #allocation0 [shape = 'u32[]', space=smem, size = 0x4, offset = 0x4, fixed_abs, tag = 'smem constant byte address 0x4 - core index']
  #allocation1 [shape = 'u32[144,128]{1,0:T(1,128)}', space=vmem, size = 0x12000, scoped, tag = 'internal scratch']
  #allocation2 [shape = 'f32[16,128]{1,0:T(8,128)}', space=vmem, size = 0x2000, scoped, tag = 'scratch operand']
  #allocation3 [shape = 'f32[16,128]{1,0:T(8,128)}', space=vmem, size = 0x2000, scoped, tag = 'scratch operand']
  %s0 = inlined_call_operand.hbm [shape: f32[16,16,512], index: 0, kind: input, shape index: {}]
  %s1 = inlined_call_operand.hbm [shape: f32[128,512], index: 1, kind: input, shape index: {}]
  %s2 = inlined_call_operand.hbm [shape: f32[1,512], index: 2, kind: input, shape index: {}]
  %s3 = inlined_call_operand.hbm [shape: f32[128,128], index: 3, kind: input, shape index: {}]
  %s4 = inlined_call_operand.vmem [shape: f32[1,128], index: 4, kind: input, shape index: {}]
  %s5 = inlined_call_operand.hbm [shape: f32[16,128], index: 5, kind: output, shape index: {}]
  %s6 = sld [smem:[#allocation0]]
  $region81: #{tpu_custom_call.1} parent=0
    _
  %s8 = ssub.s32 1, %s6
  %s9 = scalar_select 0, %s8, %s6
  $region1: #{tpu_custom_call.1} parent=0
    #allocation4 [shape = 'u8[524288]{0}', space=vmem, size = 0x80000, scoped, tag = 'input window, operand 0']
    #allocation5 [shape = 's32[2]{0}', space=sflag, size = 0x8, scoped, tag = 'scoped memory for tpu_custom_call.1']
    #allocation6 [shape = 's32[2]{0}', space=sflag, size = 0x8, scoped, tag = 'scoped memory for tpu_custom_call.1']
    #allocation7 [shape = 'u8[262144]{0}', space=vmem, size = 0x40000, scoped, tag = 'input window, operand 1, single buffered']
    #allocation8 [shape = 's32[1]{0}', space=sflag, size = 0x4, scoped, tag = 'scoped memory for tpu_custom_call.1']
    #allocation9 [shape = 'u8[2048]{0}', space=vmem, size = 0x800, scoped, tag = 'input window, operand 2, single buffered']
    #allocation10 [shape = 'u8[65536]{0}', space=vmem, size = 0x10000, scoped, tag = 'input window, operand 3, single buffered']
    #allocation11 [shape = 's32[1]{0}', space=sflag, size = 0x4, scoped, tag = 'scoped memory for tpu_custom_call.1']
    #allocation12 [shape = 'u8[8192]{0}', space=vmem, size = 0x2000, scoped, tag = 'output window, operand 0, single buffered']
    %10 = vsyncpa [#allocation5], 0
    %s11 = scalar_lea.sflag [#allocation5], 1
    %12 = vsyncpa %s11, 0
    %13 = vsyncpa [#allocation8], 0
    %14 = vsyncpa [#allocation11], 0
    %15 = vsyncpa [#allocation6], 0
    loop: start=0, step=1, limit=4
    $region2: #{tpu_custom_call.1} parent=1 // loop_pre_header
      _
    $region3: #{tpu_custom_call.1} parent=1 // loop_header
      %s17 = sphi 0, %s21
      %p18 = scmp.ge.s32.totalorder %s17, 4
      %s24 = sphi 0, %s36
      %s25 = sphi 0, %s32
      %s26 = sphi 0, %s24
      %s27 = sphi 0, %s25
      %s28 = sphi 0, %s26
      %s29 = sphi 0, %s27
      %s41 = sphi 0, %s43
      %s44 = sphi 0, %s41
      %s45 = sphi 0, %s44
      %s61 = sphi 0, %s45
      %s65 = sphi 0, %s65
      %s67 = sphi 0, %s65
      %s68 = sphi 0, %s67
      %s82 = sphi 0, %s68
      %s86 = sphi 0, %s86
      %s88 = sphi 0, %s86
      %s89 = sphi 0, %s88
      %s103 = sphi 0, %s89
      %s107 = sphi 0, %s107
      %s109 = sphi 0, %s107
      %s110 = sphi 0, %s109
      %s124 = sphi 0, %s110
      %s128 = sphi 0, %s128
      %s130 = sphi 0, %s128
      %s131 = sphi 0, %s130
      %s145 = sphi 0, %s131
      %s151 = sphi 0, %s153
      %s154 = sphi 0, %s151
      %s155 = sphi 0, %s154
      %s171 = sphi 0, %s155
    $region4: #{tpu_custom_call.1} parent=1 // loop_header_branch
      %20 = sbr.rel (%p18) target = $region8
    $region5: #{tpu_custom_call.1} parent=1 // loop_body
      %s22 = ssub.s32 %s17, 1
      %s23 = ssub.s32 %s17, 2
      %s30 = sadd.s32 1, %s25
      %p31 = scmp.ge.s32.totalorder %s30, 2
      %s32 = scalar_select %p31, 0, %s30
      %s33 = sadd.s32 1, %s24
      %s34 = scalar_select %p31, %s33, %s24
      %p35 = scmp.ge.s32.totalorder %s34, 1
      %s36 = scalar_select %p35, 0, %s34
      %s37 = ssub.s32 %s25, %s32
      %s38 = ssub.s32 %s24, %s36
      %s39 = sor.u32 %s37, %s38
      %p40 = scmp.eq.s32.totalorder %s39, 0
      %s42 = sadd.s32 %s41, 1
      %s43 = scalar_select %p40, %s41, %s42
      %p46 = pneg %p40
      %p47 = scmp.eq.s32.totalorder %s17, 1
      %p48 = por %p46, %p47
      %p49 = scmp.ne.s32.totalorder %s41, %s44
      %p50 = scmp.eq.s32.totalorder %s17, 0
      %p51 = por %p49, %p50
      %p52 = scmp.ne.s32.totalorder %s41, %s44
      %p53 = scmp.eq.s32.totalorder %s22, 1
      %p54 = por %p52, %p53
      %p55 = scmp.ne.s32.totalorder %s44, %s45
      %p56 = scmp.eq.s32.totalorder %s22, 0
      %p57 = por %p55, %p56
      %p58 = scmp.ne.s32.totalorder %s44, %s45
      %p59 = scmp.eq.s32.totalorder %s23, 1
      %p60 = por %p58, %p59
      %p62 = scmp.ne.s32.totalorder %s45, %s61
      %p63 = scmp.eq.s32.totalorder %s23, 0
      %p64 = por %p62, %p63
      %s66 = sadd.s32 %s65, 1
      %p69 = scmp.eq.s32.totalorder %s17, 1
      %p70 = scmp.ne.s32.totalorder %s65, %s67
      %p71 = scmp.eq.s32.totalorder %s17, 0
      %p72 = por %p70, %p71
      %p73 = scmp.ne.s32.totalorder %s65, %s67
      %p74 = scmp.eq.s32.totalorder %s22, 1
      %p75 = por %p73, %p74
      %p76 = scmp.ne.s32.totalorder %s67, %s68
      %p77 = scmp.eq.s32.totalorder %s22, 0
      %p78 = por %p76, %p77
      %p79 = scmp.ne.s32.totalorder %s67, %s68
      %p80 = scmp.eq.s32.totalorder %s23, 1
      %p81 = por %p79, %p80
      %p83 = scmp.ne.s32.totalorder %s68, %s82
      %p84 = scmp.eq.s32.totalorder %s23, 0
      %p85 = por %p83, %p84
      %s87 = sadd.s32 %s86, 1
      %p90 = scmp.eq.s32.totalorder %s17, 1
      %p91 = scmp.ne.s32.totalorder %s86, %s88
      %p92 = scmp.eq.s32.totalorder %s17, 0
      %p93 = por %p91, %p92
      %p94 = scmp.ne.s32.totalorder %s86, %s88
      %p95 = scmp.eq.s32.totalorder %s22, 1
      %p96 = por %p94, %p95
      %p97 = scmp.ne.s32.totalorder %s88, %s89
      %p98 = scmp.eq.s32.totalorder %s22, 0
      %p99 = por %p97, %p98
      %p100 = scmp.ne.s32.totalorder %s88, %s89
      %p101 = scmp.eq.s32.totalorder %s23, 1
      %p102 = por %p100, %p101
      %p104 = scmp.ne.s32.totalorder %s89, %s103
      %p105 = scmp.eq.s32.totalorder %s23, 0
      %p106 = por %p104, %p105
      %s108 = sadd.s32 %s107, 1
      %p111 = scmp.eq.s32.totalorder %s17, 1
      %p112 = scmp.ne.s32.totalorder %s107, %s109
      %p113 = scmp.eq.s32.totalorder %s17, 0
      %p114 = por %p112, %p113
      %p115 = scmp.ne.s32.totalorder %s107, %s109
      %p116 = scmp.eq.s32.totalorder %s22, 1
      %p117 = por %p115, %p116
      %p118 = scmp.ne.s32.totalorder %s109, %s110
      %p119 = scmp.eq.s32.totalorder %s22, 0
      %p120 = por %p118, %p119
      %p121 = scmp.ne.s32.totalorder %s109, %s110
      %p122 = scmp.eq.s32.totalorder %s23, 1
      %p123 = por %p121, %p122
      %p125 = scmp.ne.s32.totalorder %s110, %s124
      %p126 = scmp.eq.s32.totalorder %s23, 0
      %p127 = por %p125, %p126
      %s129 = sadd.s32 %s128, 1
      %p132 = scmp.eq.s32.totalorder %s17, 1
      %p133 = scmp.ne.s32.totalorder %s128, %s130
      %p134 = scmp.eq.s32.totalorder %s17, 0
      %p135 = por %p133, %p134
      %p136 = scmp.ne.s32.totalorder %s128, %s130
      %p137 = scmp.eq.s32.totalorder %s22, 1
      %p138 = por %p136, %p137
      %p139 = scmp.ne.s32.totalorder %s130, %s131
      %p140 = scmp.eq.s32.totalorder %s22, 0
      %p141 = por %p139, %p140
      %p142 = scmp.ne.s32.totalorder %s130, %s131
      %p143 = scmp.eq.s32.totalorder %s23, 1
      %p144 = por %p142, %p143
      %p146 = scmp.ne.s32.totalorder %s131, %s145
      %p147 = scmp.eq.s32.totalorder %s23, 0
      %p148 = por %p146, %p147
      %s149 = ssub.s32 %s24, %s36
      %p150 = scmp.eq.s32.totalorder %s149, 0
      %s152 = sadd.s32 %s151, 1
      %s153 = scalar_select %p150, %s151, %s152
      %p156 = pneg %p150
      %p157 = scmp.eq.s32.totalorder %s17, 1
      %p158 = por %p156, %p157
      %p159 = scmp.ne.s32.totalorder %s151, %s154
      %p160 = scmp.eq.s32.totalorder %s17, 0
      %p161 = por %p159, %p160
      %p162 = scmp.ne.s32.totalorder %s151, %s154
      %p163 = scmp.eq.s32.totalorder %s22, 1
      %p164 = por %p162, %p163
      %p165 = scmp.ne.s32.totalorder %s154, %s155
      %p166 = scmp.eq.s32.totalorder %s22, 0
      %p167 = por %p165, %p166
      %p168 = scmp.ne.s32.totalorder %s154, %s155
      %p169 = scmp.eq.s32.totalorder %s23, 1
      %p170 = por %p168, %p169
      %p172 = scmp.ne.s32.totalorder %s155, %s171
      %p173 = scmp.eq.s32.totalorder %s23, 0
      %p174 = por %p172, %p173
      %p175 = scmp.le.s32.totalorder 1, %s17
      %p176 = scmp.lt.s32.totalorder %s17, 3
      %p177 = pnand %p175, %p176
      %p178 = pneg %p177
      // Predicated region
      $region9: #{tpu_custom_call.1} parent=5 // pred_check
        _
      $region10: #{tpu_custom_call.1} parent=5 // pred_check_branch
        %180 = sbr.rel (%p177) target = $region12
      $region11: #{tpu_custom_call.1} parent=5 // pred_region
        %s181 = ssub.s32 %s17, 1
        // Predicated region
        $region13: #{tpu_custom_call.1} parent=11 // pred_check
          %p182 = pneg %p78
        $region14: #{tpu_custom_call.1} parent=11 // pred_check_branch
          %184 = sbr.rel (%p182) target = $region16
        $region15: #{tpu_custom_call.1} parent=11 // pred_region
          %s186 = ssub.s32 8192, 8192
          %187 = vsyncadd [#allocation8], %s186
          %s188 = sshll.u32 [#allocation7], 4
          %s189 = int_to_ptr.vmem [resolvable:$true] %s188
          %194 = dma.hbm_to_vmem [thread:$0]  %s1, 8192, %s189, [#allocation8], 512, 512, 32
        $region16: #{tpu_custom_call.1} parent=11 // pred_fallthru
          _
        // Predicated region
        $region17: #{tpu_custom_call.1} parent=11 // pred_check
          %p195 = pneg %p99
        $region18: #{tpu_custom_call.1} parent=11 // pred_check_branch
          %197 = sbr.rel (%p195) target = $region20
        $region19: #{tpu_custom_call.1} parent=11 // pred_region
          %s199 = ssub.s32 64, 64
          %200 = vsyncadd [#allocation8], %s199
          %s202 = sshll.u32 [#allocation9], 4
          %s203 = int_to_ptr.vmem [resolvable:$true] %s202
          %205 = dma.hbm_to_vmem [thread:$0]  %s2, 64, %s203, [#allocation8]
        $region20: #{tpu_custom_call.1} parent=11 // pred_fallthru
          _
        // Predicated region
        $region21: #{tpu_custom_call.1} parent=11 // pred_check
          %p206 = pneg %p120
        $region22: #{tpu_custom_call.1} parent=11 // pred_check_branch
          %208 = sbr.rel (%p206) target = $region24
        $region23: #{tpu_custom_call.1} parent=11 // pred_region
          %s210 = ssub.s32 2048, 2048
          %211 = vsyncadd [#allocation11], %s210
          %s212 = sshll.u32 [#allocation10], 4
          %s213 = int_to_ptr.vmem [resolvable:$true] %s212
          %218 = dma.hbm_to_vmem [thread:$0]  %s3, 2048, %s213, [#allocation11], 128, 128, 8
        $region24: #{tpu_custom_call.1} parent=11 // pred_fallthru
          _
        // Predicated region
        $region25: #{tpu_custom_call.1} parent=11 // pred_check
          %p219 = pneg %p141
        $region26: #{tpu_custom_call.1} parent=11 // pred_check_branch
          %221 = sbr.rel (%p219) target = $region28
        $region27: #{tpu_custom_call.1} parent=11 // pred_region
          _
        $region28: #{tpu_custom_call.1} parent=11 // pred_fallthru
          _
      $region12: #{tpu_custom_call.1} parent=5 // pred_fallthru
        _
      %p222 = scmp.lt.s32.totalorder %s17, 2
      // Predicated region
      $region29: #{tpu_custom_call.1} parent=5 // pred_check
        %p223 = pneg %p222
      $region30: #{tpu_custom_call.1} parent=5 // pred_check_branch
        %225 = sbr.rel (%p223) target = $region32
      $region31: #{tpu_custom_call.1} parent=5 // pred_region
        // Predicated region
        $region33: #{tpu_custom_call.1} parent=31 // pred_check
          %p226 = pneg %p51
        $region34: #{tpu_custom_call.1} parent=31 // pred_check_branch
          %228 = sbr.rel (%p226) target = $region36
        $region35: #{tpu_custom_call.1} parent=31 // pred_region
          %s229 = sand.u32 %s41, 1
          %s230 = scalar_lea.sflag [#allocation5], %s229
          %s231 = sand.u32 %s41, 1
          %s232 = smul.addr %s231, 512
          %s233 = scalar_lea.vmem [#allocation4], %s232
          %s234 = smul.u32 8, %s25
          %s235 = smul.u32 2, %s24
          %s237 = ssub.s32 8192, 8192
          %238 = vsyncadd %s230, %s237
          %s239 = smul.addr %s235, 4
          %s240 = smul.addr %s234, 8
          %s241 = sadd.s32 %s239, %s240
          %s242 = smul.addr %s241, 128
          %s243 = scalar_lea.hbm %s0, %s242
          %s244 = sshll.u32 %s233, 4
          %s245 = int_to_ptr.vmem [resolvable:$true] %s244
          %250 = dma.hbm_to_vmem [thread:$0]  %s243, 8192, %s245, %s230, 512, 512, 32
        $region36: #{tpu_custom_call.1} parent=31 // pred_fallthru
          _
      $region32: #{tpu_custom_call.1} parent=5 // pred_fallthru
        _
      %p251 = scmp.le.s32.totalorder 1, %s17
      %p252 = scmp.lt.s32.totalorder %s17, 3
      %p253 = pnand %p251, %p252
      %p254 = pneg %p253
      // Predicated region
      $region37: #{tpu_custom_call.1} parent=5 // pred_check
        _
      $region38: #{tpu_custom_call.1} parent=5 // pred_check_branch
        %256 = sbr.rel (%p253) target = $region40
      $region39: #{tpu_custom_call.1} parent=5 // pred_region
        %s257 = ssub.s32 %s17, 1
        %s258 = sand.u32 %s44, 1
        %s259 = scalar_lea.sflag [#allocation5], %s258
        %s260 = sand.u32 %s44, 1
        %s261 = smul.addr %s260, 512
        %s262 = scalar_lea.vmem [#allocation4], %s261
        // Predicated region
        $region41: #{tpu_custom_call.1} parent=39 // pred_check
          %p263 = pneg %p57
        $region42: #{tpu_custom_call.1} parent=39 // pred_check_branch
          %265 = sbr.rel (%p263) target = $region44
        $region43: #{tpu_custom_call.1} parent=39 // pred_region
          %266 = dma.done %s259, 8192
        $region44: #{tpu_custom_call.1} parent=39 // pred_fallthru
          _
        // Predicated region
        $region45: #{tpu_custom_call.1} parent=39 // pred_check
          %p267 = pneg %p78
        $region46: #{tpu_custom_call.1} parent=39 // pred_check_branch
          %269 = sbr.rel (%p267) target = $region48
        $region47: #{tpu_custom_call.1} parent=39 // pred_region
          %270 = dma.done [#allocation8], 8192
        $region48: #{tpu_custom_call.1} parent=39 // pred_fallthru
          _
        // Predicated region
        $region49: #{tpu_custom_call.1} parent=39 // pred_check
          %p271 = pneg %p99
        $region50: #{tpu_custom_call.1} parent=39 // pred_check_branch
          %273 = sbr.rel (%p271) target = $region52
        $region51: #{tpu_custom_call.1} parent=39 // pred_region
          %274 = dma.done [#allocation8], 64
        $region52: #{tpu_custom_call.1} parent=39 // pred_fallthru
          _
        // Predicated region
        $region53: #{tpu_custom_call.1} parent=39 // pred_check
          %p275 = pneg %p120
        $region54: #{tpu_custom_call.1} parent=39 // pred_check_branch
          %277 = sbr.rel (%p275) target = $region56
        $region55: #{tpu_custom_call.1} parent=39 // pred_region
          %278 = dma.done [#allocation11], 2048
        $region56: #{tpu_custom_call.1} parent=39 // pred_fallthru
          _
        %s279 = sand.u32 %s44, 1
        %s280 = scalar_lea.sflag [#allocation5], %s279
        %s281 = sand.u32 %s44, 1
        %s282 = smul.addr %s281, 512
        %s283 = scalar_lea.vmem [#allocation4], %s282
        %p284 = pneg %p57
        %p285 = pneg %p54
        %p286 = pneg %p78
        %p287 = pneg %p75
        %p288 = pneg %p99
        %p289 = pneg %p96
        %p290 = pneg %p120
        %p291 = pneg %p117
        %p292 = pneg %p141
        %p293 = pneg %p138
        %p294 = pneg %p167
        %p295 = pneg %p164
        %s296 = smul.u32 8, %s27
        %s297 = smul.u32 2, %s26
        %s298 = smul.u32 2, %s26
        %p299 = scmp.eq.s32.totalorder %s27, 0
        // Predicated region
        $region57: #{tpu_custom_call.1} parent=39 // pred_check
          %p300 = pneg %p299
        $region58: #{tpu_custom_call.1} parent=39 // pred_check_branch
          %302 = sbr.rel (%p300) target = $region60
        $region59: #{tpu_custom_call.1} parent=39 // pred_region
          %303 = vst [vmem:[#allocation2] sm:$0xff] 0.0
          %304 = vst [vmem:[#allocation2 + $0x8] sm:$0xff] 0.0
          %305 = vst [vmem:[#allocation3] sm:$0xff] 0.0
          %306 = vst [vmem:[#allocation3 + $0x8] sm:$0xff] 0.0
        $region60: #{tpu_custom_call.1} parent=39 // pred_fallthru
          _
        %v307 = vld [vmem:[#allocation7] sm:$0xff]
        %v308 = vld [vmem:[#allocation7 + $0x8] sm:$0xff]
        %v309 = vld [vmem:[#allocation7 + $0x10] sm:$0xff]
        %v310 = vld [vmem:[#allocation7 + $0x18] sm:$0xff]
        %v311 = vld [vmem:[#allocation7 + $0x20] sm:$0xff]
        %v312 = vld [vmem:[#allocation7 + $0x28] sm:$0xff]
        %v313 = vld [vmem:[#allocation7 + $0x30] sm:$0xff]
        %v314 = vld [vmem:[#allocation7 + $0x38] sm:$0xff]
        %v315 = vld [vmem:[#allocation7 + $0x40] sm:$0xff]
        %v316 = vld [vmem:[#allocation7 + $0x48] sm:$0xff]
        %v317 = vld [vmem:[#allocation7 + $0x50] sm:$0xff]
        %v318 = vld [vmem:[#allocation7 + $0x58] sm:$0xff]
        %v319 = vld [vmem:[#allocation7 + $0x60] sm:$0xff]
        %v320 = vld [vmem:[#allocation7 + $0x68] sm:$0xff]
        %v321 = vld [vmem:[#allocation7 + $0x70] sm:$0xff]
        %v322 = vld [vmem:[#allocation7 + $0x78] sm:$0xff]
        %v323 = vld [vmem:[#allocation7 + $0x80] sm:$0xff]
        %v324 = vld [vmem:[#allocation7 + $0x88] sm:$0xff]
        %v325 = vld [vmem:[#allocation7 + $0x90] sm:$0xff]
        %v326 = vld [vmem:[#allocation7 + $0x98] sm:$0xff]
        %v327 = vld [vmem:[#allocation7 + $0xa0] sm:$0xff]
        %v328 = vld [vmem:[#allocation7 + $0xa8] sm:$0xff]
        %v329 = vld [vmem:[#allocation7 + $0xb0] sm:$0xff]
        %v330 = vld [vmem:[#allocation7 + $0xb8] sm:$0xff]
        %v331 = vld [vmem:[#allocation7 + $0xc0] sm:$0xff]
        %v332 = vld [vmem:[#allocation7 + $0xc8] sm:$0xff]
        %v333 = vld [vmem:[#allocation7 + $0xd0] sm:$0xff]
        %v334 = vld [vmem:[#allocation7 + $0xd8] sm:$0xff]
        %v335 = vld [vmem:[#allocation7 + $0xe0] sm:$0xff]
        %v336 = vld [vmem:[#allocation7 + $0xe8] sm:$0xff]
        %v337 = vld [vmem:[#allocation7 + $0xf0] sm:$0xff]
        %v338 = vld [vmem:[#allocation7 + $0xf8] sm:$0xff]
        %v339 = vld [vmem:[#allocation7 + $0x100] sm:$0xff]
        %v340 = vld [vmem:[#allocation7 + $0x108] sm:$0xff]
        %v341 = vld [vmem:[#allocation7 + $0x110] sm:$0xff]
        %v342 = vld [vmem:[#allocation7 + $0x118] sm:$0xff]
        %v343 = vld [vmem:[#allocation7 + $0x120] sm:$0xff]
        %v344 = vld [vmem:[#allocation7 + $0x128] sm:$0xff]
        %v345 = vld [vmem:[#allocation7 + $0x130] sm:$0xff]
        %v346 = vld [vmem:[#allocation7 + $0x138] sm:$0xff]
        %v347 = vld [vmem:[#allocation7 + $0x140] sm:$0xff]
        %v348 = vld [vmem:[#allocation7 + $0x148] sm:$0xff]
        %v349 = vld [vmem:[#allocation7 + $0x150] sm:$0xff]
        %v350 = vld [vmem:[#allocation7 + $0x158] sm:$0xff]
        %v351 = vld [vmem:[#allocation7 + $0x160] sm:$0xff]
        %v352 = vld [vmem:[#allocation7 + $0x168] sm:$0xff]
        %v353 = vld [vmem:[#allocation7 + $0x170] sm:$0xff]
        %v354 = vld [vmem:[#allocation7 + $0x178] sm:$0xff]
        %v355 = vld [vmem:[#allocation7 + $0x180] sm:$0xff]
        %v356 = vld [vmem:[#allocation7 + $0x188] sm:$0xff]
        %v357 = vld [vmem:[#allocation7 + $0x190] sm:$0xff]
        %v358 = vld [vmem:[#allocation7 + $0x198] sm:$0xff]
        %v359 = vld [vmem:[#allocation7 + $0x1a0] sm:$0xff]
        %v360 = vld [vmem:[#allocation7 + $0x1a8] sm:$0xff]
        %v361 = vld [vmem:[#allocation7 + $0x1b0] sm:$0xff]
        %v362 = vld [vmem:[#allocation7 + $0x1b8] sm:$0xff]
        %v363 = vld [vmem:[#allocation7 + $0x1c0] sm:$0xff]
        %v364 = vld [vmem:[#allocation7 + $0x1c8] sm:$0xff]
        %v365 = vld [vmem:[#allocation7 + $0x1d0] sm:$0xff]
        %v366 = vld [vmem:[#allocation7 + $0x1d8] sm:$0xff]
        %v367 = vld [vmem:[#allocation7 + $0x1e0] sm:$0xff]
        %v368 = vld [vmem:[#allocation7 + $0x1e8] sm:$0xff]
        %v369 = vld [vmem:[#allocation7 + $0x1f0] sm:$0xff]
        %v370 = vld [vmem:[#allocation7 + $0x1f8] sm:$0xff]
        %v371 = vld [vmem:[#allocation9] sm:$0xf]
        %p372 = scmp.lt.s32.totalorder %s27, 1
        // Predicated region
        $region61: #{tpu_custom_call.1} parent=39 // pred_check
          %p373 = pneg %p372
        $region62: #{tpu_custom_call.1} parent=39 // pred_check_branch
          %375 = sbr.rel (%p373) target = $region64
        $region63: #{tpu_custom_call.1} parent=39 // pred_region
          %v376 = vld [vmem:[#allocation2] sm:$0xff]
          %v377 = vld [vmem:[#allocation2 + $0x8] sm:$0xff]
          %v378 = vld [vmem:[#allocation3] sm:$0xff]
          %v379 = vld [vmem:[#allocation3 + $0x8] sm:$0xff]
          %v380 = vld [vmem:[%s262] sm:$0xff]
          %v381 = vld [vmem:[%s262 + $0x8] sm:$0xff]
          %v382 = vld [vmem:[%s262 + $0x10] sm:$0xff]
          %v383 = vld [vmem:[%s262 + $0x18] sm:$0xff]
          %v384 = vld [vmem:[%s262 + $0x20] sm:$0xff]
          %v385 = vld [vmem:[%s262 + $0x28] sm:$0xff]
          %v386 = vld [vmem:[%s262 + $0x30] sm:$0xff]
          %v387 = vld [vmem:[%s262 + $0x38] sm:$0xff]
          %v389 = vlaneseq
          %v390 = vshrl.u32 %v389, 7
          %v391 = vsub.s32 0, %v390
          %v392 = vrot.slane %v371, %v391
          %v393 = vlaneseq
          %v394 = vshrl.u32 %v393, 7
          %v395 = vsub.s32 1, %v394
          %v396 = vrot.slane %v371, %v395
          %v397 = vlaneseq
          %v398 = vshrl.u32 %v397, 7
          %v399 = vsub.s32 2, %v398
          %v400 = vrot.slane %v371, %v399
          %v401 = vlaneseq
          %v402 = vshrl.u32 %v401, 7
          %v403 = vsub.s32 3, %v402
          %v404 = vrot.slane %v371, %v403
          %v409 = vadd.f32 %v380, %v392
          %v410 = vadd.f32 %v381, %v396
          %v411 = vadd.f32 %v382, %v400
          %v412 = vadd.f32 %v383, %v404
          %v413 = vadd.f32 %v384, %v392
          %v414 = vadd.f32 %v385, %v396
          %v415 = vadd.f32 %v386, %v400
          %v416 = vadd.f32 %v387, %v404
          %417 = vmatprep.subr.mxu0 %v368
          %418 = vmatpush1.msra.mxu0 %v367
          %419 = vmatprep.subr.mxu0 %v364
          %420 = vmatpush1.msra.mxu0 %v363
          %421 = vmatprep.subr.mxu0 %v360
          %422 = vmatpush1.msra.mxu0 %v359
          %423 = vmatprep.subr.mxu0 %v356
          %424 = vmatpush1.msra.mxu0 %v355
          %425 = vmatprep.subr.mxu0 %v352
          %426 = vmatpush1.msra.mxu0 %v351
          %427 = vmatprep.subr.mxu0 %v348
          %428 = vmatpush1.msra.mxu0 %v347
          %429 = vmatprep.subr.mxu0 %v344
          %430 = vmatpush1.msra.mxu0 %v343
          %431 = vmatprep.subr.mxu0 %v340
          %432 = vmatpush1.msra.mxu0 %v339
          %433 = vmatprep.subr.mxu0 %v336
          %434 = vmatpush1.msra.mxu0 %v335
          %435 = vmatprep.subr.mxu0 %v332
          %436 = vmatpush1.msra.mxu0 %v331
          %437 = vmatprep.subr.mxu0 %v328
          %438 = vmatpush1.msra.mxu0 %v327
          %439 = vmatprep.subr.mxu0 %v324
          %440 = vmatpush1.msra.mxu0 %v323
          %441 = vmatprep.subr.mxu0 %v320
          %442 = vmatpush1.msra.mxu0 %v319
          %443 = vmatprep.subr.mxu0 %v316
          %444 = vmatpush1.msra.mxu0 %v315
          %445 = vmatprep.subr.mxu0 %v312
          %446 = vmatpush1.msra.mxu0 %v311
          %447 = vmatprep.subr.mxu0 %v308
          %448 = vmatpush1.msra.mxu0 %v307
          %449 = vmatprep.subr.mxu0 0.0
          %450 = vmatpush2.msra.mxu0 0.0
          %451 = vmatprep.subr.mxu0 0.0
          %452 = vmatpush2.msra.mxu0 0.0
          %453 = vmatprep.subr.mxu0 0.0
          %454 = vmatpush2.msra.mxu0 0.0
          %455 = vmatprep.subr.mxu0 0.0
          %456 = vmatpush2.msra.mxu0 0.0
          %457 = vmatprep.subr.mxu0 0.0
          %458 = vmatpush2.msra.mxu0 0.0
          %459 = vmatprep.subr.mxu0 0.0
          %460 = vmatpush2.msra.mxu0 0.0
          %461 = vmatprep.subr.mxu0 0.0
          %462 = vmatpush2.msra.mxu0 0.0
          %463 = vmatprep.subr.mxu0 0.0
          %464 = vmatpush2.msra.mxu0 0.0
          %465 = vmatprep.subr.mxu0 0.0
          %466 = vmatpush2.msra.mxu0 0.0
          %467 = vmatprep.subr.mxu0 0.0
          %468 = vmatpush2.msra.mxu0 0.0
          %469 = vmatprep.subr.mxu0 0.0
          %470 = vmatpush2.msra.mxu0 0.0
          %471 = vmatprep.subr.mxu0 0.0
          %472 = vmatpush2.msra.mxu0 0.0
          %473 = vmatprep.subr.mxu0 0.0
          %474 = vmatpush2.msra.mxu0 0.0
          %475 = vmatprep.subr.mxu0 0.0
          %476 = vmatpush2.msra.mxu0 0.0
          %477 = vmatprep.subr.mxu0 0.0
          %478 = vmatpush2.msra.mxu0 0.0
          %479 = vmatprep.subr.mxu0 0.0
          %480 = vmatpush2.msra.mxu0 0.0
          %481 = vmatprep.mubr.f32.mxu0 0.0
          %482 = vmatmul.mubr.f32.gmra.mxu0 %v376
          %v483 = vpop.f32.mrf.mxu0
          %v484 = vadd.f32 0.0, %v483
          %v485 = vpop.f32.mrf.mxu0
          %v486 = vadd.f32 0.0, %v485
          %487 = vmatprep.mubr.f32.mxu0 0.0
          %488 = vmatmul.mubr.f32.gmra.mxu0 %v377
          %v489 = vpop.f32.mrf.mxu0
          %v490 = vadd.f32 0.0, %v489
          %v491 = vpop.f32.mrf.mxu0
          %v492 = vadd.f32 0.0, %v491
          %493 = vdwg.mxu0
          %494 = vmatprep.subr.mxu0 %v370
          %495 = vmatpush1.msra.mxu0 %v369
          %496 = vmatprep.subr.mxu0 %v366
          %497 = vmatpush1.msra.mxu0 %v365
          %498 = vmatprep.subr.mxu0 %v362
          %499 = vmatpush1.msra.mxu0 %v361
          %500 = vmatprep.subr.mxu0 %v358
          %501 = vmatpush1.msra.mxu0 %v357
          %502 = vmatprep.subr.mxu0 %v354
          %503 = vmatpush1.msra.mxu0 %v353
          %504 = vmatprep.subr.mxu0 %v350
          %505 = vmatpush1.msra.mxu0 %v349
          %506 = vmatprep.subr.mxu0 %v346
          %507 = vmatpush1.msra.mxu0 %v345
          %508 = vmatprep.subr.mxu0 %v342
          %509 = vmatpush1.msra.mxu0 %v341
          %510 = vmatprep.subr.mxu0 %v338
          %511 = vmatpush1.msra.mxu0 %v337
          %512 = vmatprep.subr.mxu0 %v334
          %513 = vmatpush1.msra.mxu0 %v333
          %514 = vmatprep.subr.mxu0 %v330
          %515 = vmatpush1.msra.mxu0 %v329
          %516 = vmatprep.subr.mxu0 %v326
          %517 = vmatpush1.msra.mxu0 %v325
          %518 = vmatprep.subr.mxu0 %v322
          %519 = vmatpush1.msra.mxu0 %v321
          %520 = vmatprep.subr.mxu0 %v318
          %521 = vmatpush1.msra.mxu0 %v317
          %522 = vmatprep.subr.mxu0 %v314
          %523 = vmatpush1.msra.mxu0 %v313
          %524 = vmatprep.subr.mxu0 %v310
          %525 = vmatpush1.msra.mxu0 %v309
          %526 = vmatprep.subr.mxu0 0.0
          %527 = vmatpush2.msra.mxu0 0.0
          %528 = vmatprep.subr.mxu0 0.0
          %529 = vmatpush2.msra.mxu0 0.0
          %530 = vmatprep.subr.mxu0 0.0
          %531 = vmatpush2.msra.mxu0 0.0
          %532 = vmatprep.subr.mxu0 0.0
          %533 = vmatpush2.msra.mxu0 0.0
          %534 = vmatprep.subr.mxu0 0.0
          %535 = vmatpush2.msra.mxu0 0.0
          %536 = vmatprep.subr.mxu0 0.0
          %537 = vmatpush2.msra.mxu0 0.0
          %538 = vmatprep.subr.mxu0 0.0
          %539 = vmatpush2.msra.mxu0 0.0
          %540 = vmatprep.subr.mxu0 0.0
          %541 = vmatpush2.msra.mxu0 0.0
          %542 = vmatprep.subr.mxu0 0.0
          %543 = vmatpush2.msra.mxu0 0.0
          %544 = vmatprep.subr.mxu0 0.0
          %545 = vmatpush2.msra.mxu0 0.0
          %546 = vmatprep.subr.mxu0 0.0
          %547 = vmatpush2.msra.mxu0 0.0
          %548 = vmatprep.subr.mxu0 0.0
          %549 = vmatpush2.msra.mxu0 0.0
          %550 = vmatprep.subr.mxu0 0.0
          %551 = vmatpush2.msra.mxu0 0.0
          %552 = vmatprep.subr.mxu0 0.0
          %553 = vmatpush2.msra.mxu0 0.0
          %554 = vmatprep.subr.mxu0 0.0
          %555 = vmatpush2.msra.mxu0 0.0
          %556 = vmatprep.subr.mxu0 0.0
          %557 = vmatpush2.msra.mxu0 0.0
          %558 = vmatprep.mubr.f32.mxu0 0.0
          %559 = vmatmul.mubr.f32.gmra.mxu0 %v376
          %v560 = vpop.f32.mrf.mxu0
          %v561 = vadd.f32 0.0, %v560
          %v562 = vpop.f32.mrf.mxu0
          %v563 = vadd.f32 0.0, %v562
          %564 = vmatprep.mubr.f32.mxu0 0.0
          %565 = vmatmul.mubr.f32.gmra.mxu0 %v377
          %v566 = vpop.f32.mrf.mxu0
          %v567 = vadd.f32 0.0, %v566
          %v568 = vpop.f32.mrf.mxu0
          %v569 = vadd.f32 0.0, %v568
          %570 = vdwg.mxu0
          %v571 = vadd.f32 %v409, %v484
          %v572 = vadd.f32 %v410, %v486
          %v573 = vadd.f32 %v411, %v561
          %v574 = vadd.f32 %v412, %v563
          %v575 = vadd.f32 %v413, %v490
          %v576 = vadd.f32 %v414, %v492
          %v577 = vadd.f32 %v415, %v567
          %v578 = vadd.f32 %v416, %v569
          %v579 = vxor.u32 %v571, 2147483648
          %v580 = vxor.u32 %v575, 2147483648
          %v581 = vmul.f32 %v579, 1.442695
          %v582 = vpow.pop %v581
          %v583 = vmul.f32 %v580, 1.442695
          %v584 = vpow.pop %v583
          %v585 = vadd.f32 %v582, 1.0
          %v586 = vadd.f32 %v584, 1.0
          %v587 = vrcp.pop %v585
          %v588 = vmul.f32 1.0, %v587
          %v589 = vrcp.pop %v586
          %v590 = vmul.f32 1.0, %v589
          %v591 = vxor.u32 %v572, 2147483648
          %v592 = vxor.u32 %v576, 2147483648
          %v593 = vmul.f32 %v591, 1.442695
          %v594 = vpow.pop %v593
          %v595 = vmul.f32 %v592, 1.442695
          %v596 = vpow.pop %v595
          %v597 = vadd.f32 %v594, 1.0
          %v598 = vadd.f32 %v596, 1.0
          %v599 = vrcp.pop %v597
          %v600 = vmul.f32 1.0, %v599
          %v601 = vrcp.pop %v598
          %v602 = vmul.f32 1.0, %v601
          %v603 = vtanh.pop %v573
          %v604 = vtanh.pop %v577
          %v605 = vxor.u32 %v574, 2147483648
          %v606 = vxor.u32 %v578, 2147483648
          %v607 = vmul.f32 %v605, 1.442695
          %v608 = vpow.pop %v607
          %v609 = vmul.f32 %v606, 1.442695
          %v610 = vpow.pop %v609
          %v611 = vadd.f32 %v608, 1.0
          %v612 = vadd.f32 %v610, 1.0
          %v613 = vrcp.pop %v611
          %v614 = vmul.f32 1.0, %v613
          %v615 = vrcp.pop %v612
          %v616 = vmul.f32 1.0, %v615
          %v617 = vmul.f32 %v600, %v378
          %v618 = vmul.f32 %v602, %v379
          %v619 = vmul.f32 %v588, %v603
          %v620 = vmul.f32 %v590, %v604
          %v621 = vadd.f32 %v617, %v619
          %v622 = vadd.f32 %v618, %v620
          %v623 = vtanh.pop %v621
          %v624 = vtanh.pop %v622
          %v625 = vmul.f32 %v614, %v623
          %v626 = vmul.f32 %v616, %v624
          %s627 = scalar_lea.vmem %s262, 64 [#allocation4]
          %v628 = vld [vmem:[%s627] sm:$0xff]
          %v629 = vld [vmem:[%s627 + $0x8] sm:$0xff]
          %v630 = vld [vmem:[%s627 + $0x10] sm:$0xff]
          %v631 = vld [vmem:[%s627 + $0x18] sm:$0xff]
          %v632 = vld [vmem:[%s627 + $0x20] sm:$0xff]
          %v633 = vld [vmem:[%s627 + $0x28] sm:$0xff]
          %v634 = vld [vmem:[%s627 + $0x30] sm:$0xff]
          %v635 = vld [vmem:[%s627 + $0x38] sm:$0xff]
          %v636 = vadd.f32 %v628, %v392
          %v637 = vadd.f32 %v629, %v396
          %v638 = vadd.f32 %v630, %v400
          %v639 = vadd.f32 %v631, %v404
          %v640 = vadd.f32 %v632, %v392
          %v641 = vadd.f32 %v633, %v396
          %v642 = vadd.f32 %v634, %v400
          %v643 = vadd.f32 %v635, %v404
          %644 = vmatprep.subr.mxu0 %v368
          %645 = vmatpush1.msra.mxu0 %v367
          %646 = vmatprep.subr.mxu0 %v364
          %647 = vmatpush1.msra.mxu0 %v363
          %648 = vmatprep.subr.mxu0 %v360
          %649 = vmatpush1.msra.mxu0 %v359
          %650 = vmatprep.subr.mxu0 %v356
          %651 = vmatpush1.msra.mxu0 %v355
          %652 = vmatprep.subr.mxu0 %v352
          %653 = vmatpush1.msra.mxu0 %v351
          %654 = vmatprep.subr.mxu0 %v348
          %655 = vmatpush1.msra.mxu0 %v347
          %656 = vmatprep.subr.mxu0 %v344
          %657 = vmatpush1.msra.mxu0 %v343
          %658 = vmatprep.subr.mxu0 %v340
          %659 = vmatpush1.msra.mxu0 %v339
          %660 = vmatprep.subr.mxu0 %v336
          %661 = vmatpush1.msra.mxu0 %v335
          %662 = vmatprep.subr.mxu0 %v332
          %663 = vmatpush1.msra.mxu0 %v331
          %664 = vmatprep.subr.mxu0 %v328
          %665 = vmatpush1.msra.mxu0 %v327
          %666 = vmatprep.subr.mxu0 %v324
          %667 = vmatpush1.msra.mxu0 %v323
          %668 = vmatprep.subr.mxu0 %v320
          %669 = vmatpush1.msra.mxu0 %v319
          %670 = vmatprep.subr.mxu0 %v316
          %671 = vmatpush1.msra.mxu0 %v315
          %672 = vmatprep.subr.mxu0 %v312
          %673 = vmatpush1.msra.mxu0 %v311
          %674 = vmatprep.subr.mxu0 %v308
          %675 = vmatpush1.msra.mxu0 %v307
          %676 = vmatprep.subr.mxu0 0.0
          %677 = vmatpush2.msra.mxu0 0.0
          %678 = vmatprep.subr.mxu0 0.0
          %679 = vmatpush2.msra.mxu0 0.0
          %680 = vmatprep.subr.mxu0 0.0
          %681 = vmatpush2.msra.mxu0 0.0
          %682 = vmatprep.subr.mxu0 0.0
          %683 = vmatpush2.msra.mxu0 0.0
          %684 = vmatprep.subr.mxu0 0.0
          %685 = vmatpush2.msra.mxu0 0.0
          %686 = vmatprep.subr.mxu0 0.0
          %687 = vmatpush2.msra.mxu0 0.0
          %688 = vmatprep.subr.mxu0 0.0
          %689 = vmatpush2.msra.mxu0 0.0
          %690 = vmatprep.subr.mxu0 0.0
          %691 = vmatpush2.msra.mxu0 0.0
          %692 = vmatprep.subr.mxu0 0.0
          %693 = vmatpush2.msra.mxu0 0.0
          %694 = vmatprep.subr.mxu0 0.0
          %695 = vmatpush2.msra.mxu0 0.0
          %696 = vmatprep.subr.mxu0 0.0
          %697 = vmatpush2.msra.mxu0 0.0
          %698 = vmatprep.subr.mxu0 0.0
          %699 = vmatpush2.msra.mxu0 0.0
          %700 = vmatprep.subr.mxu0 0.0
          %701 = vmatpush2.msra.mxu0 0.0
          %702 = vmatprep.subr.mxu0 0.0
          %703 = vmatpush2.msra.mxu0 0.0
          %704 = vmatprep.subr.mxu0 0.0
          %705 = vmatpush2.msra.mxu0 0.0
          %706 = vmatprep.subr.mxu0 0.0
          %707 = vmatpush2.msra.mxu0 0.0
          %708 = vmatprep.mubr.f32.mxu0 0.0
          %709 = vmatmul.mubr.f32.gmra.mxu0 %v625
          %v710 = vpop.f32.mrf.mxu0
          %v711 = vadd.f32 0.0, %v710
          %v712 = vpop.f32.mrf.mxu0
          %v713 = vadd.f32 0.0, %v712
          %714 = vmatprep.mubr.f32.mxu0 0.0
          %715 = vmatmul.mubr.f32.gmra.mxu0 %v626
          %v716 = vpop.f32.mrf.mxu0
          %v717 = vadd.f32 0.0, %v716
          %v718 = vpop.f32.mrf.mxu0
          %v719 = vadd.f32 0.0, %v718
          %720 = vdwg.mxu0
          %721 = vmatprep.subr.mxu0 %v370
          %722 = vmatpush1.msra.mxu0 %v369
          %723 = vmatprep.subr.mxu0 %v366
          %724 = vmatpush1.msra.mxu0 %v365
          %725 = vmatprep.subr.mxu0 %v362
          %726 = vmatpush1.msra.mxu0 %v361
          %727 = vmatprep.subr.mxu0 %v358
          %728 = vmatpush1.msra.mxu0 %v357
          %729 = vmatprep.subr.mxu0 %v354
          %730 = vmatpush1.msra.mxu0 %v353
          %731 = vmatprep.subr.mxu0 %v350
          %732 = vmatpush1.msra.mxu0 %v349
          %733 = vmatprep.subr.mxu0 %v346
          %734 = vmatpush1.msra.mxu0 %v345
          %735 = vmatprep.subr.mxu0 %v342
          %736 = vmatpush1.msra.mxu0 %v341
          %737 = vmatprep.subr.mxu0 %v338
          %738 = vmatpush1.msra.mxu0 %v337
          %739 = vmatprep.subr.mxu0 %v334
          %740 = vmatpush1.msra.mxu0 %v333
          %741 = vmatprep.subr.mxu0 %v330
          %742 = vmatpush1.msra.mxu0 %v329
          %743 = vmatprep.subr.mxu0 %v326
          %744 = vmatpush1.msra.mxu0 %v325
          %745 = vmatprep.subr.mxu0 %v322
          %746 = vmatpush1.msra.mxu0 %v321
          %747 = vmatprep.subr.mxu0 %v318
          %748 = vmatpush1.msra.mxu0 %v317
          %749 = vmatprep.subr.mxu0 %v314
          %750 = vmatpush1.msra.mxu0 %v313
          %751 = vmatprep.subr.mxu0 %v310
          %752 = vmatpush1.msra.mxu0 %v309
          %753 = vmatprep.subr.mxu0 0.0
          %754 = vmatpush2.msra.mxu0 0.0
          %755 = vmatprep.subr.mxu0 0.0
          %756 = vmatpush2.msra.mxu0 0.0
          %757 = vmatprep.subr.mxu0 0.0
          %758 = vmatpush2.msra.mxu0 0.0
          %759 = vmatprep.subr.mxu0 0.0
          %760 = vmatpush2.msra.mxu0 0.0
          %761 = vmatprep.subr.mxu0 0.0
          %762 = vmatpush2.msra.mxu0 0.0
          %763 = vmatprep.subr.mxu0 0.0
          %764 = vmatpush2.msra.mxu0 0.0
          %765 = vmatprep.subr.mxu0 0.0
          %766 = vmatpush2.msra.mxu0 0.0
          %767 = vmatprep.subr.mxu0 0.0
          %768 = vmatpush2.msra.mxu0 0.0
          %769 = vmatprep.subr.mxu0 0.0
          %770 = vmatpush2.msra.mxu0 0.0
          %771 = vmatprep.subr.mxu0 0.0
          %772 = vmatpush2.msra.mxu0 0.0
          %773 = vmatprep.subr.mxu0 0.0
          %774 = vmatpush2.msra.mxu0 0.0
          %775 = vmatprep.subr.mxu0 0.0
          %776 = vmatpush2.msra.mxu0 0.0
          %777 = vmatprep.subr.mxu0 0.0
          %778 = vmatpush2.msra.mxu0 0.0
          %779 = vmatprep.subr.mxu0 0.0
          %780 = vmatpush2.msra.mxu0 0.0
          %781 = vmatprep.subr.mxu0 0.0
          %782 = vmatpush2.msra.mxu0 0.0
          %783 = vmatprep.subr.mxu0 0.0
          %784 = vmatpush2.msra.mxu0 0.0
          %785 = vmatprep.mubr.f32.mxu0 0.0
          %786 = vmatmul.mubr.f32.gmra.mxu0 %v625
          %v787 = vpop.f32.mrf.mxu0
          %v788 = vadd.f32 0.0, %v787
          %v789 = vpop.f32.mrf.mxu0
          %v790 = vadd.f32 0.0, %v789
          %791 = vmatprep.mubr.f32.mxu0 0.0
          %792 = vmatmul.mubr.f32.gmra.mxu0 %v626
          %v793 = vpop.f32.mrf.mxu0
          %v794 = vadd.f32 0.0, %v793
          %v795 = vpop.f32.mrf.mxu0
          %v796 = vadd.f32 0.0, %v795
          %797 = vdwg.mxu0
          %v798 = vadd.f32 %v636, %v711
          %v799 = vadd.f32 %v637, %v713
          %v800 = vadd.f32 %v638, %v788
          %v801 = vadd.f32 %v639, %v790
          %v802 = vadd.f32 %v640, %v717
          %v803 = vadd.f32 %v641, %v719
          %v804 = vadd.f32 %v642, %v794
          %v805 = vadd.f32 %v643, %v796
          %v806 = vxor.u32 %v798, 2147483648
          %v807 = vxor.u32 %v802, 2147483648
          %v808 = vmul.f32 %v806, 1.442695
          %v809 = vpow.pop %v808
          %v810 = vmul.f32 %v807, 1.442695
          %v811 = vpow.pop %v810
          %v812 = vadd.f32 %v809, 1.0
          %v813 = vadd.f32 %v811, 1.0
          %v814 = vrcp.pop %v812
          %v815 = vmul.f32 1.0, %v814
          %v816 = vrcp.pop %v813
          %v817 = vmul.f32 1.0, %v816
          %v818 = vxor.u32 %v799, 2147483648
          %v819 = vxor.u32 %v803, 2147483648
          %v820 = vmul.f32 %v818, 1.442695
          %v821 = vpow.pop %v820
          %v822 = vmul.f32 %v819, 1.442695
          %v823 = vpow.pop %v822
          %v824 = vadd.f32 %v821, 1.0
          %v825 = vadd.f32 %v823, 1.0
          %v826 = vrcp.pop %v824
          %v827 = vmul.f32 1.0, %v826
          %v828 = vrcp.pop %v825
          %v829 = vmul.f32 1.0, %v828
          %v830 = vtanh.pop %v800
          %v831 = vtanh.pop %v804
          %v832 = vxor.u32 %v801, 2147483648
          %v833 = vxor.u32 %v805, 2147483648
          %v834 = vmul.f32 %v832, 1.442695
          %v835 = vpow.pop %v834
          %v836 = vmul.f32 %v833, 1.442695
          %v837 = vpow.pop %v836
          %v838 = vadd.f32 %v835, 1.0
          %v839 = vadd.f32 %v837, 1.0
          %v840 = vrcp.pop %v838
          %v841 = vmul.f32 1.0, %v840
          %v842 = vrcp.pop %v839
          %v843 = vmul.f32 1.0, %v842
          %v844 = vmul.f32 %v827, %v621
          %v845 = vmul.f32 %v829, %v622
          %v846 = vmul.f32 %v815, %v830
          %v847 = vmul.f32 %v817, %v831
          %v848 = vadd.f32 %v844, %v846
          %v849 = vadd.f32 %v845, %v847
          %v850 = vtanh.pop %v848
          %v851 = vtanh.pop %v849
          %v852 = vmul.f32 %v841, %v850
          %v853 = vmul.f32 %v843, %v851
          %s854 = scalar_lea.vmem %s262, 128 [#allocation4]
          %v855 = vld [vmem:[%s854] sm:$0xff]
          %v856 = vld [vmem:[%s854 + $0x8] sm:$0xff]
          %v857 = vld [vmem:[%s854 + $0x10] sm:$0xff]
          %v858 = vld [vmem:[%s854 + $0x18] sm:$0xff]
          %v859 = vld [vmem:[%s854 + $0x20] sm:$0xff]
          %v860 = vld [vmem:[%s854 + $0x28] sm:$0xff]
          %v861 = vld [vmem:[%s854 + $0x30] sm:$0xff]
          %v862 = vld [vmem:[%s854 + $0x38] sm:$0xff]
          %v863 = vadd.f32 %v855, %v392
          %v864 = vadd.f32 %v856, %v396
          %v865 = vadd.f32 %v857, %v400
          %v866 = vadd.f32 %v858, %v404
          %v867 = vadd.f32 %v859, %v392
          %v868 = vadd.f32 %v860, %v396
          %v869 = vadd.f32 %v861, %v400
          %v870 = vadd.f32 %v862, %v404
          %871 = vmatprep.subr.mxu0 %v368
          %872 = vmatpush1.msra.mxu0 %v367
          %873 = vmatprep.subr.mxu0 %v364
          %874 = vmatpush1.msra.mxu0 %v363
          %875 = vmatprep.subr.mxu0 %v360
          %876 = vmatpush1.msra.mxu0 %v359
          %877 = vmatprep.subr.mxu0 %v356
          %878 = vmatpush1.msra.mxu0 %v355
          %879 = vmatprep.subr.mxu0 %v352
          %880 = vmatpush1.msra.mxu0 %v351
          %881 = vmatprep.subr.mxu0 %v348
          %882 = vmatpush1.msra.mxu0 %v347
          %883 = vmatprep.subr.mxu0 %v344
          %884 = vmatpush1.msra.mxu0 %v343
          %885 = vmatprep.subr.mxu0 %v340
          %886 = vmatpush1.msra.mxu0 %v339
          %887 = vmatprep.subr.mxu0 %v336
          %888 = vmatpush1.msra.mxu0 %v335
          %889 = vmatprep.subr.mxu0 %v332
          %890 = vmatpush1.msra.mxu0 %v331
          %891 = vmatprep.subr.mxu0 %v328
          %892 = vmatpush1.msra.mxu0 %v327
          %893 = vmatprep.subr.mxu0 %v324
          %894 = vmatpush1.msra.mxu0 %v323
          %895 = vmatprep.subr.mxu0 %v320
          %896 = vmatpush1.msra.mxu0 %v319
          %897 = vmatprep.subr.mxu0 %v316
          %898 = vmatpush1.msra.mxu0 %v315
          %899 = vmatprep.subr.mxu0 %v312
          %900 = vmatpush1.msra.mxu0 %v311
          %901 = vmatprep.subr.mxu0 %v308
          %902 = vmatpush1.msra.mxu0 %v307
          %903 = vmatprep.subr.mxu0 0.0
          %904 = vmatpush2.msra.mxu0 0.0
          %905 = vmatprep.subr.mxu0 0.0
          %906 = vmatpush2.msra.mxu0 0.0
          %907 = vmatprep.subr.mxu0 0.0
          %908 = vmatpush2.msra.mxu0 0.0
          %909 = vmatprep.subr.mxu0 0.0
          %910 = vmatpush2.msra.mxu0 0.0
          %911 = vmatprep.subr.mxu0 0.0
          %912 = vmatpush2.msra.mxu0 0.0
          %913 = vmatprep.subr.mxu0 0.0
          %914 = vmatpush2.msra.mxu0 0.0
          %915 = vmatprep.subr.mxu0 0.0
          %916 = vmatpush2.msra.mxu0 0.0
          %917 = vmatprep.subr.mxu0 0.0
          %918 = vmatpush2.msra.mxu0 0.0
          %919 = vmatprep.subr.mxu0 0.0
          %920 = vmatpush2.msra.mxu0 0.0
          %921 = vmatprep.subr.mxu0 0.0
          %922 = vmatpush2.msra.mxu0 0.0
          %923 = vmatprep.subr.mxu0 0.0
          %924 = vmatpush2.msra.mxu0 0.0
          %925 = vmatprep.subr.mxu0 0.0
          %926 = vmatpush2.msra.mxu0 0.0
          %927 = vmatprep.subr.mxu0 0.0
          %928 = vmatpush2.msra.mxu0 0.0
          %929 = vmatprep.subr.mxu0 0.0
          %930 = vmatpush2.msra.mxu0 0.0
          %931 = vmatprep.subr.mxu0 0.0
          %932 = vmatpush2.msra.mxu0 0.0
          %933 = vmatprep.subr.mxu0 0.0
          %934 = vmatpush2.msra.mxu0 0.0
          %935 = vmatprep.mubr.f32.mxu0 0.0
          %936 = vmatmul.mubr.f32.gmra.mxu0 %v852
          %v937 = vpop.f32.mrf.mxu0
          %v938 = vadd.f32 0.0, %v937
          %v939 = vpop.f32.mrf.mxu0
          %v940 = vadd.f32 0.0, %v939
          %941 = vmatprep.mubr.f32.mxu0 0.0
          %942 = vmatmul.mubr.f32.gmra.mxu0 %v853
          %v943 = vpop.f32.mrf.mxu0
          %v944 = vadd.f32 0.0, %v943
          %v945 = vpop.f32.mrf.mxu0
          %v946 = vadd.f32 0.0, %v945
          %947 = vdwg.mxu0
          %948 = vmatprep.subr.mxu0 %v370
          %949 = vmatpush1.msra.mxu0 %v369
          %950 = vmatprep.subr.mxu0 %v366
          %951 = vmatpush1.msra.mxu0 %v365
          %952 = vmatprep.subr.mxu0 %v362
          %953 = vmatpush1.msra.mxu0 %v361
          %954 = vmatprep.subr.mxu0 %v358
          %955 = vmatpush1.msra.mxu0 %v357
          %956 = vmatprep.subr.mxu0 %v354
          %957 = vmatpush1.msra.mxu0 %v353
          %958 = vmatprep.subr.mxu0 %v350
          %959 = vmatpush1.msra.mxu0 %v349
          %960 = vmatprep.subr.mxu0 %v346
          %961 = vmatpush1.msra.mxu0 %v345
          %962 = vmatprep.subr.mxu0 %v342
          %963 = vmatpush1.msra.mxu0 %v341
          %964 = vmatprep.subr.mxu0 %v338
          %965 = vmatpush1.msra.mxu0 %v337
          %966 = vmatprep.subr.mxu0 %v334
          %967 = vmatpush1.msra.mxu0 %v333
          %968 = vmatprep.subr.mxu0 %v330
          %969 = vmatpush1.msra.mxu0 %v329
          %970 = vmatprep.subr.mxu0 %v326
          %971 = vmatpush1.msra.mxu0 %v325
          %972 = vmatprep.subr.mxu0 %v322
          %973 = vmatpush1.msra.mxu0 %v321
          %974 = vmatprep.subr.mxu0 %v318
          %975 = vmatpush1.msra.mxu0 %v317
          %976 = vmatprep.subr.mxu0 %v314
          %977 = vmatpush1.msra.mxu0 %v313
          %978 = vmatprep.subr.mxu0 %v310
          %979 = vmatpush1.msra.mxu0 %v309
          %980 = vmatprep.subr.mxu0 0.0
          %981 = vmatpush2.msra.mxu0 0.0
          %982 = vmatprep.subr.mxu0 0.0
          %983 = vmatpush2.msra.mxu0 0.0
          %984 = vmatprep.subr.mxu0 0.0
          %985 = vmatpush2.msra.mxu0 0.0
          %986 = vmatprep.subr.mxu0 0.0
          %987 = vmatpush2.msra.mxu0 0.0
          %988 = vmatprep.subr.mxu0 0.0
          %989 = vmatpush2.msra.mxu0 0.0
          %990 = vmatprep.subr.mxu0 0.0
          %991 = vmatpush2.msra.mxu0 0.0
          %992 = vmatprep.subr.mxu0 0.0
          %993 = vmatpush2.msra.mxu0 0.0
          %994 = vmatprep.subr.mxu0 0.0
          %995 = vmatpush2.msra.mxu0 0.0
          %996 = vmatprep.subr.mxu0 0.0
          %997 = vmatpush2.msra.mxu0 0.0
          %998 = vmatprep.subr.mxu0 0.0
          %999 = vmatpush2.msra.mxu0 0.0
          %1000 = vmatprep.subr.mxu0 0.0
          %1001 = vmatpush2.msra.mxu0 0.0
          %1002 = vmatprep.subr.mxu0 0.0
          %1003 = vmatpush2.msra.mxu0 0.0
          %1004 = vmatprep.subr.mxu0 0.0
          %1005 = vmatpush2.msra.mxu0 0.0
          %1006 = vmatprep.subr.mxu0 0.0
          %1007 = vmatpush2.msra.mxu0 0.0
          %1008 = vmatprep.subr.mxu0 0.0
          %1009 = vmatpush2.msra.mxu0 0.0
          %1010 = vmatprep.subr.mxu0 0.0
          %1011 = vmatpush2.msra.mxu0 0.0
          %1012 = vmatprep.mubr.f32.mxu0 0.0
          %1013 = vmatmul.mubr.f32.gmra.mxu0 %v852
          %v1014 = vpop.f32.mrf.mxu0
          %v1015 = vadd.f32 0.0, %v1014
          %v1016 = vpop.f32.mrf.mxu0
          %v1017 = vadd.f32 0.0, %v1016
          %1018 = vmatprep.mubr.f32.mxu0 0.0
          %1019 = vmatmul.mubr.f32.gmra.mxu0 %v853
          %v1020 = vpop.f32.mrf.mxu0
          %v1021 = vadd.f32 0.0, %v1020
          %v1022 = vpop.f32.mrf.mxu0
          %v1023 = vadd.f32 0.0, %v1022
          %1024 = vdwg.mxu0
          %v1025 = vadd.f32 %v863, %v938
          %v1026 = vadd.f32 %v864, %v940
          %v1027 = vadd.f32 %v865, %v1015
          %v1028 = vadd.f32 %v866, %v1017
          %v1029 = vadd.f32 %v867, %v944
          %v1030 = vadd.f32 %v868, %v946
          %v1031 = vadd.f32 %v869, %v1021
          %v1032 = vadd.f32 %v870, %v1023
          %v1033 = vxor.u32 %v1025, 2147483648
          %v1034 = vxor.u32 %v1029, 2147483648
          %v1035 = vmul.f32 %v1033, 1.442695
          %v1036 = vpow.pop %v1035
          %v1037 = vmul.f32 %v1034, 1.442695
          %v1038 = vpow.pop %v1037
          %v1039 = vadd.f32 %v1036, 1.0
          %v1040 = vadd.f32 %v1038, 1.0
          %v1041 = vrcp.pop %v1039
          %v1042 = vmul.f32 1.0, %v1041
          %v1043 = vrcp.pop %v1040
          %v1044 = vmul.f32 1.0, %v1043
          %v1045 = vxor.u32 %v1026, 2147483648
          %v1046 = vxor.u32 %v1030, 2147483648
          %v1047 = vmul.f32 %v1045, 1.442695
          %v1048 = vpow.pop %v1047
          %v1049 = vmul.f32 %v1046, 1.442695
          %v1050 = vpow.pop %v1049
          %v1051 = vadd.f32 %v1048, 1.0
          %v1052 = vadd.f32 %v1050, 1.0
          %v1053 = vrcp.pop %v1051
          %v1054 = vmul.f32 1.0, %v1053
          %v1055 = vrcp.pop %v1052
          %v1056 = vmul.f32 1.0, %v1055
          %v1057 = vtanh.pop %v1027
          %v1058 = vtanh.pop %v1031
          %v1059 = vxor.u32 %v1028, 2147483648
          %v1060 = vxor.u32 %v1032, 2147483648
          %v1061 = vmul.f32 %v1059, 1.442695
          %v1062 = vpow.pop %v1061
          %v1063 = vmul.f32 %v1060, 1.442695
          %v1064 = vpow.pop %v1063
          %v1065 = vadd.f32 %v1062, 1.0
          %v1066 = vadd.f32 %v1064, 1.0
          %v1067 = vrcp.pop %v1065
          %v1068 = vmul.f32 1.0, %v1067
          %v1069 = vrcp.pop %v1066
          %v1070 = vmul.f32 1.0, %v1069
          %v1071 = vmul.f32 %v1054, %v848
          %v1072 = vmul.f32 %v1056, %v849
          %v1073 = vmul.f32 %v1042, %v1057
          %v1074 = vmul.f32 %v1044, %v1058
          %v1075 = vadd.f32 %v1071, %v1073
          %v1076 = vadd.f32 %v1072, %v1074
          %v1077 = vtanh.pop %v1075
          %v1078 = vtanh.pop %v1076
          %v1079 = vmul.f32 %v1068, %v1077
          %v1080 = vmul.f32 %v1070, %v1078
          %s1081 = scalar_lea.vmem %s262, 192 [#allocation4]
          %v1082 = vld [vmem:[%s1081] sm:$0xff]
          %v1083 = vld [vmem:[%s1081 + $0x8] sm:$0xff]
          %v1084 = vld [vmem:[%s1081 + $0x10] sm:$0xff]
          %v1085 = vld [vmem:[%s1081 + $0x18] sm:$0xff]
          %v1086 = vld [vmem:[%s1081 + $0x20] sm:$0xff]
          %v1087 = vld [vmem:[%s1081 + $0x28] sm:$0xff]
          %v1088 = vld [vmem:[%s1081 + $0x30] sm:$0xff]
          %v1089 = vld [vmem:[%s1081 + $0x38] sm:$0xff]
          %v1090 = vadd.f32 %v1082, %v392
          %v1091 = vadd.f32 %v1083, %v396
          %v1092 = vadd.f32 %v1084, %v400
          %v1093 = vadd.f32 %v1085, %v404
          %v1094 = vadd.f32 %v1086, %v392
          %v1095 = vadd.f32 %v1087, %v396
          %v1096 = vadd.f32 %v1088, %v400
          %v1097 = vadd.f32 %v1089, %v404
          %1098 = vmatprep.subr.mxu0 %v368
          %1099 = vmatpush1.msra.mxu0 %v367
          %1100 = vmatprep.subr.mxu0 %v364
          %1101 = vmatpush1.msra.mxu0 %v363
          %1102 = vmatprep.subr.mxu0 %v360
          %1103 = vmatpush1.msra.mxu0 %v359
          %1104 = vmatprep.subr.mxu0 %v356
          %1105 = vmatpush1.msra.mxu0 %v355
          %1106 = vmatprep.subr.mxu0 %v352
          %1107 = vmatpush1.msra.mxu0 %v351
          %1108 = vmatprep.subr.mxu0 %v348
          %1109 = vmatpush1.msra.mxu0 %v347
          %1110 = vmatprep.subr.mxu0 %v344
          %1111 = vmatpush1.msra.mxu0 %v343
          %1112 = vmatprep.subr.mxu0 %v340
          %1113 = vmatpush1.msra.mxu0 %v339
          %1114 = vmatprep.subr.mxu0 %v336
          %1115 = vmatpush1.msra.mxu0 %v335
          %1116 = vmatprep.subr.mxu0 %v332
          %1117 = vmatpush1.msra.mxu0 %v331
          %1118 = vmatprep.subr.mxu0 %v328
          %1119 = vmatpush1.msra.mxu0 %v327
          %1120 = vmatprep.subr.mxu0 %v324
          %1121 = vmatpush1.msra.mxu0 %v323
          %1122 = vmatprep.subr.mxu0 %v320
          %1123 = vmatpush1.msra.mxu0 %v319
          %1124 = vmatprep.subr.mxu0 %v316
          %1125 = vmatpush1.msra.mxu0 %v315
          %1126 = vmatprep.subr.mxu0 %v312
          %1127 = vmatpush1.msra.mxu0 %v311
          %1128 = vmatprep.subr.mxu0 %v308
          %1129 = vmatpush1.msra.mxu0 %v307
          %1130 = vmatprep.subr.mxu0 0.0
          %1131 = vmatpush2.msra.mxu0 0.0
          %1132 = vmatprep.subr.mxu0 0.0
          %1133 = vmatpush2.msra.mxu0 0.0
          %1134 = vmatprep.subr.mxu0 0.0
          %1135 = vmatpush2.msra.mxu0 0.0
          %1136 = vmatprep.subr.mxu0 0.0
          %1137 = vmatpush2.msra.mxu0 0.0
          %1138 = vmatprep.subr.mxu0 0.0
          %1139 = vmatpush2.msra.mxu0 0.0
          %1140 = vmatprep.subr.mxu0 0.0
          %1141 = vmatpush2.msra.mxu0 0.0
          %1142 = vmatprep.subr.mxu0 0.0
          %1143 = vmatpush2.msra.mxu0 0.0
          %1144 = vmatprep.subr.mxu0 0.0
          %1145 = vmatpush2.msra.mxu0 0.0
          %1146 = vmatprep.subr.mxu0 0.0
          %1147 = vmatpush2.msra.mxu0 0.0
          %1148 = vmatprep.subr.mxu0 0.0
          %1149 = vmatpush2.msra.mxu0 0.0
          %1150 = vmatprep.subr.mxu0 0.0
          %1151 = vmatpush2.msra.mxu0 0.0
          %1152 = vmatprep.subr.mxu0 0.0
          %1153 = vmatpush2.msra.mxu0 0.0
          %1154 = vmatprep.subr.mxu0 0.0
          %1155 = vmatpush2.msra.mxu0 0.0
          %1156 = vmatprep.subr.mxu0 0.0
          %1157 = vmatpush2.msra.mxu0 0.0
          %1158 = vmatprep.subr.mxu0 0.0
          %1159 = vmatpush2.msra.mxu0 0.0
          %1160 = vmatprep.subr.mxu0 0.0
          %1161 = vmatpush2.msra.mxu0 0.0
          %1162 = vmatprep.mubr.f32.mxu0 0.0
          %1163 = vmatmul.mubr.f32.gmra.mxu0 %v1079
          %v1164 = vpop.f32.mrf.mxu0
          %v1165 = vadd.f32 0.0, %v1164
          %v1166 = vpop.f32.mrf.mxu0
          %v1167 = vadd.f32 0.0, %v1166
          %1168 = vmatprep.mubr.f32.mxu0 0.0
          %1169 = vmatmul.mubr.f32.gmra.mxu0 %v1080
          %v1170 = vpop.f32.mrf.mxu0
          %v1171 = vadd.f32 0.0, %v1170
          %v1172 = vpop.f32.mrf.mxu0
          %v1173 = vadd.f32 0.0, %v1172
          %1174 = vdwg.mxu0
          %1175 = vmatprep.subr.mxu0 %v370
          %1176 = vmatpush1.msra.mxu0 %v369
          %1177 = vmatprep.subr.mxu0 %v366
          %1178 = vmatpush1.msra.mxu0 %v365
          %1179 = vmatprep.subr.mxu0 %v362
          %1180 = vmatpush1.msra.mxu0 %v361
          %1181 = vmatprep.subr.mxu0 %v358
          %1182 = vmatpush1.msra.mxu0 %v357
          %1183 = vmatprep.subr.mxu0 %v354
          %1184 = vmatpush1.msra.mxu0 %v353
          %1185 = vmatprep.subr.mxu0 %v350
          %1186 = vmatpush1.msra.mxu0 %v349
          %1187 = vmatprep.subr.mxu0 %v346
          %1188 = vmatpush1.msra.mxu0 %v345
          %1189 = vmatprep.subr.mxu0 %v342
          %1190 = vmatpush1.msra.mxu0 %v341
          %1191 = vmatprep.subr.mxu0 %v338
          %1192 = vmatpush1.msra.mxu0 %v337
          %1193 = vmatprep.subr.mxu0 %v334
          %1194 = vmatpush1.msra.mxu0 %v333
          %1195 = vmatprep.subr.mxu0 %v330
          %1196 = vmatpush1.msra.mxu0 %v329
          %1197 = vmatprep.subr.mxu0 %v326
          %1198 = vmatpush1.msra.mxu0 %v325
          %1199 = vmatprep.subr.mxu0 %v322
          %1200 = vmatpush1.msra.mxu0 %v321
          %1201 = vmatprep.subr.mxu0 %v318
          %1202 = vmatpush1.msra.mxu0 %v317
          %1203 = vmatprep.subr.mxu0 %v314
          %1204 = vmatpush1.msra.mxu0 %v313
          %1205 = vmatprep.subr.mxu0 %v310
          %1206 = vmatpush1.msra.mxu0 %v309
          %1207 = vmatprep.subr.mxu0 0.0
          %1208 = vmatpush2.msra.mxu0 0.0
          %1209 = vmatprep.subr.mxu0 0.0
          %1210 = vmatpush2.msra.mxu0 0.0
          %1211 = vmatprep.subr.mxu0 0.0
          %1212 = vmatpush2.msra.mxu0 0.0
          %1213 = vmatprep.subr.mxu0 0.0
          %1214 = vmatpush2.msra.mxu0 0.0
          %1215 = vmatprep.subr.mxu0 0.0
          %1216 = vmatpush2.msra.mxu0 0.0
          %1217 = vmatprep.subr.mxu0 0.0
          %1218 = vmatpush2.msra.mxu0 0.0
          %1219 = vmatprep.subr.mxu0 0.0
          %1220 = vmatpush2.msra.mxu0 0.0
          %1221 = vmatprep.subr.mxu0 0.0
          %1222 = vmatpush2.msra.mxu0 0.0
          %1223 = vmatprep.subr.mxu0 0.0
          %1224 = vmatpush2.msra.mxu0 0.0
          %1225 = vmatprep.subr.mxu0 0.0
          %1226 = vmatpush2.msra.mxu0 0.0
          %1227 = vmatprep.subr.mxu0 0.0
          %1228 = vmatpush2.msra.mxu0 0.0
          %1229 = vmatprep.subr.mxu0 0.0
          %1230 = vmatpush2.msra.mxu0 0.0
          %1231 = vmatprep.subr.mxu0 0.0
          %1232 = vmatpush2.msra.mxu0 0.0
          %1233 = vmatprep.subr.mxu0 0.0
          %1234 = vmatpush2.msra.mxu0 0.0
          %1235 = vmatprep.subr.mxu0 0.0
          %1236 = vmatpush2.msra.mxu0 0.0
          %1237 = vmatprep.subr.mxu0 0.0
          %1238 = vmatpush2.msra.mxu0 0.0
          %1239 = vmatprep.mubr.f32.mxu0 0.0
          %1240 = vmatmul.mubr.f32.gmra.mxu0 %v1079
          %v1241 = vpop.f32.mrf.mxu0
          %v1242 = vadd.f32 0.0, %v1241
          %v1243 = vpop.f32.mrf.mxu0
          %v1244 = vadd.f32 0.0, %v1243
          %1245 = vmatprep.mubr.f32.mxu0 0.0
          %1246 = vmatmul.mubr.f32.gmra.mxu0 %v1080
          %v1247 = vpop.f32.mrf.mxu0
          %v1248 = vadd.f32 0.0, %v1247
          %v1249 = vpop.f32.mrf.mxu0
          %v1250 = vadd.f32 0.0, %v1249
          %1251 = vdwg.mxu0
          %v1252 = vadd.f32 %v1090, %v1165
          %v1253 = vadd.f32 %v1091, %v1167
          %v1254 = vadd.f32 %v1092, %v1242
          %v1255 = vadd.f32 %v1093, %v1244
          %v1256 = vadd.f32 %v1094, %v1171
          %v1257 = vadd.f32 %v1095, %v1173
          %v1258 = vadd.f32 %v1096, %v1248
          %v1259 = vadd.f32 %v1097, %v1250
          %v1260 = vxor.u32 %v1252, 2147483648
          %v1261 = vxor.u32 %v1256, 2147483648
          %v1262 = vmul.f32 %v1260, 1.442695
          %v1263 = vpow.pop %v1262
          %v1264 = vmul.f32 %v1261, 1.442695
          %v1265 = vpow.pop %v1264
          %v1266 = vadd.f32 %v1263, 1.0
          %v1267 = vadd.f32 %v1265, 1.0
          %v1268 = vrcp.pop %v1266
          %v1269 = vmul.f32 1.0, %v1268
          %v1270 = vrcp.pop %v1267
          %v1271 = vmul.f32 1.0, %v1270
          %v1272 = vxor.u32 %v1253, 2147483648
          %v1273 = vxor.u32 %v1257, 2147483648
          %v1274 = vmul.f32 %v1272, 1.442695
          %v1275 = vpow.pop %v1274
          %v1276 = vmul.f32 %v1273, 1.442695
          %v1277 = vpow.pop %v1276
          %v1278 = vadd.f32 %v1275, 1.0
          %v1279 = vadd.f32 %v1277, 1.0
          %v1280 = vrcp.pop %v1278
          %v1281 = vmul.f32 1.0, %v1280
          %v1282 = vrcp.pop %v1279
          %v1283 = vmul.f32 1.0, %v1282
          %v1284 = vtanh.pop %v1254
          %v1285 = vtanh.pop %v1258
          %v1286 = vxor.u32 %v1255, 2147483648
          %v1287 = vxor.u32 %v1259, 2147483648
          %v1288 = vmul.f32 %v1286, 1.442695
          %v1289 = vpow.pop %v1288
          %v1290 = vmul.f32 %v1287, 1.442695
          %v1291 = vpow.pop %v1290
          %v1292 = vadd.f32 %v1289, 1.0
          %v1293 = vadd.f32 %v1291, 1.0
          %v1294 = vrcp.pop %v1292
          %v1295 = vmul.f32 1.0, %v1294
          %v1296 = vrcp.pop %v1293
          %v1297 = vmul.f32 1.0, %v1296
          %v1298 = vmul.f32 %v1281, %v1075
          %v1299 = vmul.f32 %v1283, %v1076
          %v1300 = vmul.f32 %v1269, %v1284
          %v1301 = vmul.f32 %v1271, %v1285
          %v1302 = vadd.f32 %v1298, %v1300
          %v1303 = vadd.f32 %v1299, %v1301
          %v1304 = vtanh.pop %v1302
          %v1305 = vtanh.pop %v1303
          %v1306 = vmul.f32 %v1295, %v1304
          %v1307 = vmul.f32 %v1297, %v1305
          %s1308 = scalar_lea.vmem %s262, 256 [#allocation4]
          %v1309 = vld [vmem:[%s1308] sm:$0xff]
          %v1310 = vld [vmem:[%s1308 + $0x8] sm:$0xff]
          %v1311 = vld [vmem:[%s1308 + $0x10] sm:$0xff]
          %v1312 = vld [vmem:[%s1308 + $0x18] sm:$0xff]
          %v1313 = vld [vmem:[%s1308 + $0x20] sm:$0xff]
          %v1314 = vld [vmem:[%s1308 + $0x28] sm:$0xff]
          %v1315 = vld [vmem:[%s1308 + $0x30] sm:$0xff]
          %v1316 = vld [vmem:[%s1308 + $0x38] sm:$0xff]
          %v1317 = vadd.f32 %v1309, %v392
          %v1318 = vadd.f32 %v1310, %v396
          %v1319 = vadd.f32 %v1311, %v400
          %v1320 = vadd.f32 %v1312, %v404
          %v1321 = vadd.f32 %v1313, %v392
          %v1322 = vadd.f32 %v1314, %v396
          %v1323 = vadd.f32 %v1315, %v400
          %v1324 = vadd.f32 %v1316, %v404
          %1325 = vmatprep.subr.mxu0 %v368
          %1326 = vmatpush1.msra.mxu0 %v367
          %1327 = vmatprep.subr.mxu0 %v364
          %1328 = vmatpush1.msra.mxu0 %v363
          %1329 = vmatprep.subr.mxu0 %v360
          %1330 = vmatpush1.msra.mxu0 %v359
          %1331 = vmatprep.subr.mxu0 %v356
          %1332 = vmatpush1.msra.mxu0 %v355
          %1333 = vmatprep.subr.mxu0 %v352
          %1334 = vmatpush1.msra.mxu0 %v351
          %1335 = vmatprep.subr.mxu0 %v348
          %1336 = vmatpush1.msra.mxu0 %v347
          %1337 = vmatprep.subr.mxu0 %v344
          %1338 = vmatpush1.msra.mxu0 %v343
          %1339 = vmatprep.subr.mxu0 %v340
          %1340 = vmatpush1.msra.mxu0 %v339
          %1341 = vmatprep.subr.mxu0 %v336
          %1342 = vmatpush1.msra.mxu0 %v335
          %1343 = vmatprep.subr.mxu0 %v332
          %1344 = vmatpush1.msra.mxu0 %v331
          %1345 = vmatprep.subr.mxu0 %v328
          %1346 = vmatpush1.msra.mxu0 %v327
          %1347 = vmatprep.subr.mxu0 %v324
          %1348 = vmatpush1.msra.mxu0 %v323
          %1349 = vmatprep.subr.mxu0 %v320
          %1350 = vmatpush1.msra.mxu0 %v319
          %1351 = vmatprep.subr.mxu0 %v316
          %1352 = vmatpush1.msra.mxu0 %v315
          %1353 = vmatprep.subr.mxu0 %v312
          %1354 = vmatpush1.msra.mxu0 %v311
          %1355 = vmatprep.subr.mxu0 %v308
          %1356 = vmatpush1.msra.mxu0 %v307
          %1357 = vmatprep.subr.mxu0 0.0
          %1358 = vmatpush2.msra.mxu0 0.0
          %1359 = vmatprep.subr.mxu0 0.0
          %1360 = vmatpush2.msra.mxu0 0.0
          %1361 = vmatprep.subr.mxu0 0.0
          %1362 = vmatpush2.msra.mxu0 0.0
          %1363 = vmatprep.subr.mxu0 0.0
          %1364 = vmatpush2.msra.mxu0 0.0
          %1365 = vmatprep.subr.mxu0 0.0
          %1366 = vmatpush2.msra.mxu0 0.0
          %1367 = vmatprep.subr.mxu0 0.0
          %1368 = vmatpush2.msra.mxu0 0.0
          %1369 = vmatprep.subr.mxu0 0.0
          %1370 = vmatpush2.msra.mxu0 0.0
          %1371 = vmatprep.subr.mxu0 0.0
          %1372 = vmatpush2.msra.mxu0 0.0
          %1373 = vmatprep.subr.mxu0 0.0
          %1374 = vmatpush2.msra.mxu0 0.0
          %1375 = vmatprep.subr.mxu0 0.0
          %1376 = vmatpush2.msra.mxu0 0.0
          %1377 = vmatprep.subr.mxu0 0.0
          %1378 = vmatpush2.msra.mxu0 0.0
          %1379 = vmatprep.subr.mxu0 0.0
          %1380 = vmatpush2.msra.mxu0 0.0
          %1381 = vmatprep.subr.mxu0 0.0
          %1382 = vmatpush2.msra.mxu0 0.0
          %1383 = vmatprep.subr.mxu0 0.0
          %1384 = vmatpush2.msra.mxu0 0.0
          %1385 = vmatprep.subr.mxu0 0.0
          %1386 = vmatpush2.msra.mxu0 0.0
          %1387 = vmatprep.subr.mxu0 0.0
          %1388 = vmatpush2.msra.mxu0 0.0
          %1389 = vmatprep.mubr.f32.mxu0 0.0
          %1390 = vmatmul.mubr.f32.gmra.mxu0 %v1306
          %v1391 = vpop.f32.mrf.mxu0
          %v1392 = vadd.f32 0.0, %v1391
          %v1393 = vpop.f32.mrf.mxu0
          %v1394 = vadd.f32 0.0, %v1393
          %1395 = vmatprep.mubr.f32.mxu0 0.0
          %1396 = vmatmul.mubr.f32.gmra.mxu0 %v1307
          %v1397 = vpop.f32.mrf.mxu0
          %v1398 = vadd.f32 0.0, %v1397
          %v1399 = vpop.f32.mrf.mxu0
          %v1400 = vadd.f32 0.0, %v1399
          %1401 = vdwg.mxu0
          %1402 = vmatprep.subr.mxu0 %v370
          %1403 = vmatpush1.msra.mxu0 %v369
          %1404 = vmatprep.subr.mxu0 %v366
          %1405 = vmatpush1.msra.mxu0 %v365
          %1406 = vmatprep.subr.mxu0 %v362
          %1407 = vmatpush1.msra.mxu0 %v361
          %1408 = vmatprep.subr.mxu0 %v358
          %1409 = vmatpush1.msra.mxu0 %v357
          %1410 = vmatprep.subr.mxu0 %v354
          %1411 = vmatpush1.msra.mxu0 %v353
          %1412 = vmatprep.subr.mxu0 %v350
          %1413 = vmatpush1.msra.mxu0 %v349
          %1414 = vmatprep.subr.mxu0 %v346
          %1415 = vmatpush1.msra.mxu0 %v345
          %1416 = vmatprep.subr.mxu0 %v342
          %1417 = vmatpush1.msra.mxu0 %v341
          %1418 = vmatprep.subr.mxu0 %v338
          %1419 = vmatpush1.msra.mxu0 %v337
          %1420 = vmatprep.subr.mxu0 %v334
          %1421 = vmatpush1.msra.mxu0 %v333
          %1422 = vmatprep.subr.mxu0 %v330
          %1423 = vmatpush1.msra.mxu0 %v329
          %1424 = vmatprep.subr.mxu0 %v326
          %1425 = vmatpush1.msra.mxu0 %v325
          %1426 = vmatprep.subr.mxu0 %v322
          %1427 = vmatpush1.msra.mxu0 %v321
          %1428 = vmatprep.subr.mxu0 %v318
          %1429 = vmatpush1.msra.mxu0 %v317
          %1430 = vmatprep.subr.mxu0 %v314
          %1431 = vmatpush1.msra.mxu0 %v313
          %1432 = vmatprep.subr.mxu0 %v310
          %1433 = vmatpush1.msra.mxu0 %v309
          %1434 = vmatprep.subr.mxu0 0.0
          %1435 = vmatpush2.msra.mxu0 0.0
          %1436 = vmatprep.subr.mxu0 0.0
          %1437 = vmatpush2.msra.mxu0 0.0
          %1438 = vmatprep.subr.mxu0 0.0
          %1439 = vmatpush2.msra.mxu0 0.0
          %1440 = vmatprep.subr.mxu0 0.0
          %1441 = vmatpush2.msra.mxu0 0.0
          %1442 = vmatprep.subr.mxu0 0.0
          %1443 = vmatpush2.msra.mxu0 0.0
          %1444 = vmatprep.subr.mxu0 0.0
          %1445 = vmatpush2.msra.mxu0 0.0
          %1446 = vmatprep.subr.mxu0 0.0
          %1447 = vmatpush2.msra.mxu0 0.0
          %1448 = vmatprep.subr.mxu0 0.0
          %1449 = vmatpush2.msra.mxu0 0.0
          %1450 = vmatprep.subr.mxu0 0.0
          %1451 = vmatpush2.msra.mxu0 0.0
          %1452 = vmatprep.subr.mxu0 0.0
          %1453 = vmatpush2.msra.mxu0 0.0
          %1454 = vmatprep.subr.mxu0 0.0
          %1455 = vmatpush2.msra.mxu0 0.0
          %1456 = vmatprep.subr.mxu0 0.0
          %1457 = vmatpush2.msra.mxu0 0.0
          %1458 = vmatprep.subr.mxu0 0.0
          %1459 = vmatpush2.msra.mxu0 0.0
          %1460 = vmatprep.subr.mxu0 0.0
          %1461 = vmatpush2.msra.mxu0 0.0
          %1462 = vmatprep.subr.mxu0 0.0
          %1463 = vmatpush2.msra.mxu0 0.0
          %1464 = vmatprep.subr.mxu0 0.0
          %1465 = vmatpush2.msra.mxu0 0.0
          %1466 = vmatprep.mubr.f32.mxu0 0.0
          %1467 = vmatmul.mubr.f32.gmra.mxu0 %v1306
          %v1468 = vpop.f32.mrf.mxu0
          %v1469 = vadd.f32 0.0, %v1468
          %v1470 = vpop.f32.mrf.mxu0
          %v1471 = vadd.f32 0.0, %v1470
          %1472 = vmatprep.mubr.f32.mxu0 0.0
          %1473 = vmatmul.mubr.f32.gmra.mxu0 %v1307
          %v1474 = vpop.f32.mrf.mxu0
          %v1475 = vadd.f32 0.0, %v1474
          %v1476 = vpop.f32.mrf.mxu0
          %v1477 = vadd.f32 0.0, %v1476
          %1478 = vdwg.mxu0
          %v1479 = vadd.f32 %v1317, %v1392
          %v1480 = vadd.f32 %v1318, %v1394
          %v1481 = vadd.f32 %v1319, %v1469
          %v1482 = vadd.f32 %v1320, %v1471
          %v1483 = vadd.f32 %v1321, %v1398
          %v1484 = vadd.f32 %v1322, %v1400
          %v1485 = vadd.f32 %v1323, %v1475
          %v1486 = vadd.f32 %v1324, %v1477
          %v1487 = vxor.u32 %v1479, 2147483648
          %v1488 = vxor.u32 %v1483, 2147483648
          %v1489 = vmul.f32 %v1487, 1.442695
          %v1490 = vpow.pop %v1489
          %v1491 = vmul.f32 %v1488, 1.442695
          %v1492 = vpow.pop %v1491
          %v1493 = vadd.f32 %v1490, 1.0
          %v1494 = vadd.f32 %v1492, 1.0
          %v1495 = vrcp.pop %v1493
          %v1496 = vmul.f32 1.0, %v1495
          %v1497 = vrcp.pop %v1494
          %v1498 = vmul.f32 1.0, %v1497
          %v1499 = vxor.u32 %v1480, 2147483648
          %v1500 = vxor.u32 %v1484, 2147483648
          %v1501 = vmul.f32 %v1499, 1.442695
          %v1502 = vpow.pop %v1501
          %v1503 = vmul.f32 %v1500, 1.442695
          %v1504 = vpow.pop %v1503
          %v1505 = vadd.f32 %v1502, 1.0
          %v1506 = vadd.f32 %v1504, 1.0
          %v1507 = vrcp.pop %v1505
          %v1508 = vmul.f32 1.0, %v1507
          %v1509 = vrcp.pop %v1506
          %v1510 = vmul.f32 1.0, %v1509
          %v1511 = vtanh.pop %v1481
          %v1512 = vtanh.pop %v1485
          %v1513 = vxor.u32 %v1482, 2147483648
          %v1514 = vxor.u32 %v1486, 2147483648
          %v1515 = vmul.f32 %v1513, 1.442695
          %v1516 = vpow.pop %v1515
          %v1517 = vmul.f32 %v1514, 1.442695
          %v1518 = vpow.pop %v1517
          %v1519 = vadd.f32 %v1516, 1.0
          %v1520 = vadd.f32 %v1518, 1.0
          %v1521 = vrcp.pop %v1519
          %v1522 = vmul.f32 1.0, %v1521
          %v1523 = vrcp.pop %v1520
          %v1524 = vmul.f32 1.0, %v1523
          %v1525 = vmul.f32 %v1508, %v1302
          %v1526 = vmul.f32 %v1510, %v1303
          %v1527 = vmul.f32 %v1496, %v1511
          %v1528 = vmul.f32 %v1498, %v1512
          %v1529 = vadd.f32 %v1525, %v1527
          %v1530 = vadd.f32 %v1526, %v1528
          %v1531 = vtanh.pop %v1529
          %v1532 = vtanh.pop %v1530
          %v1533 = vmul.f32 %v1522, %v1531
          %v1534 = vmul.f32 %v1524, %v1532
          %s1535 = scalar_lea.vmem %s262, 320 [#allocation4]
          %v1536 = vld [vmem:[%s1535] sm:$0xff]
          %v1537 = vld [vmem:[%s1535 + $0x8] sm:$0xff]
          %v1538 = vld [vmem:[%s1535 + $0x10] sm:$0xff]
          %v1539 = vld [vmem:[%s1535 + $0x18] sm:$0xff]
          %v1540 = vld [vmem:[%s1535 + $0x20] sm:$0xff]
          %v1541 = vld [vmem:[%s1535 + $0x28] sm:$0xff]
          %v1542 = vld [vmem:[%s1535 + $0x30] sm:$0xff]
          %v1543 = vld [vmem:[%s1535 + $0x38] sm:$0xff]
          %v1544 = vadd.f32 %v1536, %v392
          %v1545 = vadd.f32 %v1537, %v396
          %v1546 = vadd.f32 %v1538, %v400
          %v1547 = vadd.f32 %v1539, %v404
          %v1548 = vadd.f32 %v1540, %v392
          %v1549 = vadd.f32 %v1541, %v396
          %v1550 = vadd.f32 %v1542, %v400
          %v1551 = vadd.f32 %v1543, %v404
          %1552 = vmatprep.subr.mxu0 %v368
          %1553 = vmatpush1.msra.mxu0 %v367
          %1554 = vmatprep.subr.mxu0 %v364
          %1555 = vmatpush1.msra.mxu0 %v363
          %1556 = vmatprep.subr.mxu0 %v360
          %1557 = vmatpush1.msra.mxu0 %v359
          %1558 = vmatprep.subr.mxu0 %v356
          %1559 = vmatpush1.msra.mxu0 %v355
          %1560 = vmatprep.subr.mxu0 %v352
          %1561 = vmatpush1.msra.mxu0 %v351
          %1562 = vmatprep.subr.mxu0 %v348
          %1563 = vmatpush1.msra.mxu0 %v347
          %1564 = vmatprep.subr.mxu0 %v344
          %1565 = vmatpush1.msra.mxu0 %v343
          %1566 = vmatprep.subr.mxu0 %v340
          %1567 = vmatpush1.msra.mxu0 %v339
          %1568 = vmatprep.subr.mxu0 %v336
          %1569 = vmatpush1.msra.mxu0 %v335
          %1570 = vmatprep.subr.mxu0 %v332
          %1571 = vmatpush1.msra.mxu0 %v331
          %1572 = vmatprep.subr.mxu0 %v328
          %1573 = vmatpush1.msra.mxu0 %v327
          %1574 = vmatprep.subr.mxu0 %v324
          %1575 = vmatpush1.msra.mxu0 %v323
          %1576 = vmatprep.subr.mxu0 %v320
          %1577 = vmatpush1.msra.mxu0 %v319
          %1578 = vmatprep.subr.mxu0 %v316
          %1579 = vmatpush1.msra.mxu0 %v315
          %1580 = vmatprep.subr.mxu0 %v312
          %1581 = vmatpush1.msra.mxu0 %v311
          %1582 = vmatprep.subr.mxu0 %v308
          %1583 = vmatpush1.msra.mxu0 %v307
          %1584 = vmatprep.subr.mxu0 0.0
          %1585 = vmatpush2.msra.mxu0 0.0
          %1586 = vmatprep.subr.mxu0 0.0
          %1587 = vmatpush2.msra.mxu0 0.0
          %1588 = vmatprep.subr.mxu0 0.0
          %1589 = vmatpush2.msra.mxu0 0.0
          %1590 = vmatprep.subr.mxu0 0.0
          %1591 = vmatpush2.msra.mxu0 0.0
          %1592 = vmatprep.subr.mxu0 0.0
          %1593 = vmatpush2.msra.mxu0 0.0
          %1594 = vmatprep.subr.mxu0 0.0
          %1595 = vmatpush2.msra.mxu0 0.0
          %1596 = vmatprep.subr.mxu0 0.0
          %1597 = vmatpush2.msra.mxu0 0.0
          %1598 = vmatprep.subr.mxu0 0.0
          %1599 = vmatpush2.msra.mxu0 0.0
          %1600 = vmatprep.subr.mxu0 0.0
          %1601 = vmatpush2.msra.mxu0 0.0
          %1602 = vmatprep.subr.mxu0 0.0
          %1603 = vmatpush2.msra.mxu0 0.0
          %1604 = vmatprep.subr.mxu0 0.0
          %1605 = vmatpush2.msra.mxu0 0.0
          %1606 = vmatprep.subr.mxu0 0.0
          %1607 = vmatpush2.msra.mxu0 0.0
          %1608 = vmatprep.subr.mxu0 0.0
          %1609 = vmatpush2.msra.mxu0 0.0
          %1610 = vmatprep.subr.mxu0 0.0
          %1611 = vmatpush2.msra.mxu0 0.0
          %1612 = vmatprep.subr.mxu0 0.0
          %1613 = vmatpush2.msra.mxu0 0.0
          %1614 = vmatprep.subr.mxu0 0.0
          %1615 = vmatpush2.msra.mxu0 0.0
          %1616 = vmatprep.mubr.f32.mxu0 0.0
          %1617 = vmatmul.mubr.f32.gmra.mxu0 %v1533
          %v1618 = vpop.f32.mrf.mxu0
          %v1619 = vadd.f32 0.0, %v1618
          %v1620 = vpop.f32.mrf.mxu0
          %v1621 = vadd.f32 0.0, %v1620
          %1622 = vmatprep.mubr.f32.mxu0 0.0
          %1623 = vmatmul.mubr.f32.gmra.mxu0 %v1534
          %v1624 = vpop.f32.mrf.mxu0
          %v1625 = vadd.f32 0.0, %v1624
          %v1626 = vpop.f32.mrf.mxu0
          %v1627 = vadd.f32 0.0, %v1626
          %1628 = vdwg.mxu0
          %1629 = vmatprep.subr.mxu0 %v370
          %1630 = vmatpush1.msra.mxu0 %v369
          %1631 = vmatprep.subr.mxu0 %v366
          %1632 = vmatpush1.msra.mxu0 %v365
          %1633 = vmatprep.subr.mxu0 %v362
          %1634 = vmatpush1.msra.mxu0 %v361
          %1635 = vmatprep.subr.mxu0 %v358
          %1636 = vmatpush1.msra.mxu0 %v357
          %1637 = vmatprep.subr.mxu0 %v354
          %1638 = vmatpush1.msra.mxu0 %v353
          %1639 = vmatprep.subr.mxu0 %v350
          %1640 = vmatpush1.msra.mxu0 %v349
          %1641 = vmatprep.subr.mxu0 %v346
          %1642 = vmatpush1.msra.mxu0 %v345
          %1643 = vmatprep.subr.mxu0 %v342
          %1644 = vmatpush1.msra.mxu0 %v341
          %1645 = vmatprep.subr.mxu0 %v338
          %1646 = vmatpush1.msra.mxu0 %v337
          %1647 = vmatprep.subr.mxu0 %v334
          %1648 = vmatpush1.msra.mxu0 %v333
          %1649 = vmatprep.subr.mxu0 %v330
          %1650 = vmatpush1.msra.mxu0 %v329
          %1651 = vmatprep.subr.mxu0 %v326
          %1652 = vmatpush1.msra.mxu0 %v325
          %1653 = vmatprep.subr.mxu0 %v322
          %1654 = vmatpush1.msra.mxu0 %v321
          %1655 = vmatprep.subr.mxu0 %v318
          %1656 = vmatpush1.msra.mxu0 %v317
          %1657 = vmatprep.subr.mxu0 %v314
          %1658 = vmatpush1.msra.mxu0 %v313
          %1659 = vmatprep.subr.mxu0 %v310
          %1660 = vmatpush1.msra.mxu0 %v309
          %1661 = vmatprep.subr.mxu0 0.0
          %1662 = vmatpush2.msra.mxu0 0.0
          %1663 = vmatprep.subr.mxu0 0.0
          %1664 = vmatpush2.msra.mxu0 0.0
          %1665 = vmatprep.subr.mxu0 0.0
          %1666 = vmatpush2.msra.mxu0 0.0
          %1667 = vmatprep.subr.mxu0 0.0
          %1668 = vmatpush2.msra.mxu0 0.0
          %1669 = vmatprep.subr.mxu0 0.0
          %1670 = vmatpush2.msra.mxu0 0.0
          %1671 = vmatprep.subr.mxu0 0.0
          %1672 = vmatpush2.msra.mxu0 0.0
          %1673 = vmatprep.subr.mxu0 0.0
          %1674 = vmatpush2.msra.mxu0 0.0
          %1675 = vmatprep.subr.mxu0 0.0
          %1676 = vmatpush2.msra.mxu0 0.0
          %1677 = vmatprep.subr.mxu0 0.0
          %1678 = vmatpush2.msra.mxu0 0.0
          %1679 = vmatprep.subr.mxu0 0.0
          %1680 = vmatpush2.msra.mxu0 0.0
          %1681 = vmatprep.subr.mxu0 0.0
          %1682 = vmatpush2.msra.mxu0 0.0
          %1683 = vmatprep.subr.mxu0 0.0
          %1684 = vmatpush2.msra.mxu0 0.0
          %1685 = vmatprep.subr.mxu0 0.0
          %1686 = vmatpush2.msra.mxu0 0.0
          %1687 = vmatprep.subr.mxu0 0.0
          %1688 = vmatpush2.msra.mxu0 0.0
          %1689 = vmatprep.subr.mxu0 0.0
          %1690 = vmatpush2.msra.mxu0 0.0
          %1691 = vmatprep.subr.mxu0 0.0
          %1692 = vmatpush2.msra.mxu0 0.0
          %1693 = vmatprep.mubr.f32.mxu0 0.0
          %1694 = vmatmul.mubr.f32.gmra.mxu0 %v1533
          %v1695 = vpop.f32.mrf.mxu0
          %v1696 = vadd.f32 0.0, %v1695
          %v1697 = vpop.f32.mrf.mxu0
          %v1698 = vadd.f32 0.0, %v1697
          %1699 = vmatprep.mubr.f32.mxu0 0.0
          %1700 = vmatmul.mubr.f32.gmra.mxu0 %v1534
          %v1701 = vpop.f32.mrf.mxu0
          %v1702 = vadd.f32 0.0, %v1701
          %v1703 = vpop.f32.mrf.mxu0
          %v1704 = vadd.f32 0.0, %v1703
          %1705 = vdwg.mxu0
          %v1706 = vadd.f32 %v1544, %v1619
          %v1707 = vadd.f32 %v1545, %v1621
          %v1708 = vadd.f32 %v1546, %v1696
          %v1709 = vadd.f32 %v1547, %v1698
          %v1710 = vadd.f32 %v1548, %v1625
          %v1711 = vadd.f32 %v1549, %v1627
          %v1712 = vadd.f32 %v1550, %v1702
          %v1713 = vadd.f32 %v1551, %v1704
          %v1714 = vxor.u32 %v1706, 2147483648
          %v1715 = vxor.u32 %v1710, 2147483648
          %v1716 = vmul.f32 %v1714, 1.442695
          %v1717 = vpow.pop %v1716
          %v1718 = vmul.f32 %v1715, 1.442695
          %v1719 = vpow.pop %v1718
          %v1720 = vadd.f32 %v1717, 1.0
          %v1721 = vadd.f32 %v1719, 1.0
          %v1722 = vrcp.pop %v1720
          %v1723 = vmul.f32 1.0, %v1722
          %v1724 = vrcp.pop %v1721
          %v1725 = vmul.f32 1.0, %v1724
          %v1726 = vxor.u32 %v1707, 2147483648
          %v1727 = vxor.u32 %v1711, 2147483648
          %v1728 = vmul.f32 %v1726, 1.442695
          %v1729 = vpow.pop %v1728
          %v1730 = vmul.f32 %v1727, 1.442695
          %v1731 = vpow.pop %v1730
          %v1732 = vadd.f32 %v1729, 1.0
          %v1733 = vadd.f32 %v1731, 1.0
          %v1734 = vrcp.pop %v1732
          %v1735 = vmul.f32 1.0, %v1734
          %v1736 = vrcp.pop %v1733
          %v1737 = vmul.f32 1.0, %v1736
          %v1738 = vtanh.pop %v1708
          %v1739 = vtanh.pop %v1712
          %v1740 = vxor.u32 %v1709, 2147483648
          %v1741 = vxor.u32 %v1713, 2147483648
          %v1742 = vmul.f32 %v1740, 1.442695
          %v1743 = vpow.pop %v1742
          %v1744 = vmul.f32 %v1741, 1.442695
          %v1745 = vpow.pop %v1744
          %v1746 = vadd.f32 %v1743, 1.0
          %v1747 = vadd.f32 %v1745, 1.0
          %v1748 = vrcp.pop %v1746
          %v1749 = vmul.f32 1.0, %v1748
          %v1750 = vrcp.pop %v1747
          %v1751 = vmul.f32 1.0, %v1750
          %v1752 = vmul.f32 %v1735, %v1529
          %v1753 = vmul.f32 %v1737, %v1530
          %v1754 = vmul.f32 %v1723, %v1738
          %v1755 = vmul.f32 %v1725, %v1739
          %v1756 = vadd.f32 %v1752, %v1754
          %v1757 = vadd.f32 %v1753, %v1755
          %v1758 = vtanh.pop %v1756
          %v1759 = vtanh.pop %v1757
          %v1760 = vmul.f32 %v1749, %v1758
          %v1761 = vmul.f32 %v1751, %v1759
          %s1762 = scalar_lea.vmem %s262, 384 [#allocation4]
          %v1763 = vld [vmem:[%s1762] sm:$0xff]
          %v1764 = vld [vmem:[%s1762 + $0x8] sm:$0xff]
          %v1765 = vld [vmem:[%s1762 + $0x10] sm:$0xff]
          %v1766 = vld [vmem:[%s1762 + $0x18] sm:$0xff]
          %v1767 = vld [vmem:[%s1762 + $0x20] sm:$0xff]
          %v1768 = vld [vmem:[%s1762 + $0x28] sm:$0xff]
          %v1769 = vld [vmem:[%s1762 + $0x30] sm:$0xff]
          %v1770 = vld [vmem:[%s1762 + $0x38] sm:$0xff]
          %v1771 = vadd.f32 %v1763, %v392
          %v1772 = vadd.f32 %v1764, %v396
          %v1773 = vadd.f32 %v1765, %v400
          %v1774 = vadd.f32 %v1766, %v404
          %v1775 = vadd.f32 %v1767, %v392
          %v1776 = vadd.f32 %v1768, %v396
          %v1777 = vadd.f32 %v1769, %v400
          %v1778 = vadd.f32 %v1770, %v404
          %1779 = vmatprep.subr.mxu0 %v368
          %1780 = vmatpush1.msra.mxu0 %v367
          %1781 = vmatprep.subr.mxu0 %v364
          %1782 = vmatpush1.msra.mxu0 %v363
          %1783 = vmatprep.subr.mxu0 %v360
          %1784 = vmatpush1.msra.mxu0 %v359
          %1785 = vmatprep.subr.mxu0 %v356
          %1786 = vmatpush1.msra.mxu0 %v355
          %1787 = vmatprep.subr.mxu0 %v352
          %1788 = vmatpush1.msra.mxu0 %v351
          %1789 = vmatprep.subr.mxu0 %v348
          %1790 = vmatpush1.msra.mxu0 %v347
          %1791 = vmatprep.subr.mxu0 %v344
          %1792 = vmatpush1.msra.mxu0 %v343
          %1793 = vmatprep.subr.mxu0 %v340
          %1794 = vmatpush1.msra.mxu0 %v339
          %1795 = vmatprep.subr.mxu0 %v336
          %1796 = vmatpush1.msra.mxu0 %v335
          %1797 = vmatprep.subr.mxu0 %v332
          %1798 = vmatpush1.msra.mxu0 %v331
          %1799 = vmatprep.subr.mxu0 %v328
          %1800 = vmatpush1.msra.mxu0 %v327
          %1801 = vmatprep.subr.mxu0 %v324
          %1802 = vmatpush1.msra.mxu0 %v323
          %1803 = vmatprep.subr.mxu0 %v320
          %1804 = vmatpush1.msra.mxu0 %v319
          %1805 = vmatprep.subr.mxu0 %v316
          %1806 = vmatpush1.msra.mxu0 %v315
          %1807 = vmatprep.subr.mxu0 %v312
          %1808 = vmatpush1.msra.mxu0 %v311
          %1809 = vmatprep.subr.mxu0 %v308
          %1810 = vmatpush1.msra.mxu0 %v307
          %1811 = vmatprep.subr.mxu0 0.0
          %1812 = vmatpush2.msra.mxu0 0.0
          %1813 = vmatprep.subr.mxu0 0.0
          %1814 = vmatpush2.msra.mxu0 0.0
          %1815 = vmatprep.subr.mxu0 0.0
          %1816 = vmatpush2.msra.mxu0 0.0
          %1817 = vmatprep.subr.mxu0 0.0
          %1818 = vmatpush2.msra.mxu0 0.0
          %1819 = vmatprep.subr.mxu0 0.0
          %1820 = vmatpush2.msra.mxu0 0.0
          %1821 = vmatprep.subr.mxu0 0.0
          %1822 = vmatpush2.msra.mxu0 0.0
          %1823 = vmatprep.subr.mxu0 0.0
          %1824 = vmatpush2.msra.mxu0 0.0
          %1825 = vmatprep.subr.mxu0 0.0
          %1826 = vmatpush2.msra.mxu0 0.0
          %1827 = vmatprep.subr.mxu0 0.0
          %1828 = vmatpush2.msra.mxu0 0.0
          %1829 = vmatprep.subr.mxu0 0.0
          %1830 = vmatpush2.msra.mxu0 0.0
          %1831 = vmatprep.subr.mxu0 0.0
          %1832 = vmatpush2.msra.mxu0 0.0
          %1833 = vmatprep.subr.mxu0 0.0
          %1834 = vmatpush2.msra.mxu0 0.0
          %1835 = vmatprep.subr.mxu0 0.0
          %1836 = vmatpush2.msra.mxu0 0.0
          %1837 = vmatprep.subr.mxu0 0.0
          %1838 = vmatpush2.msra.mxu0 0.0
          %1839 = vmatprep.subr.mxu0 0.0
          %1840 = vmatpush2.msra.mxu0 0.0
          %1841 = vmatprep.subr.mxu0 0.0
          %1842 = vmatpush2.msra.mxu0 0.0
          %1843 = vmatprep.mubr.f32.mxu0 0.0
          %1844 = vmatmul.mubr.f32.gmra.mxu0 %v1760
          %v1845 = vpop.f32.mrf.mxu0
          %v1846 = vadd.f32 0.0, %v1845
          %v1847 = vpop.f32.mrf.mxu0
          %v1848 = vadd.f32 0.0, %v1847
          %1849 = vmatprep.mubr.f32.mxu0 0.0
          %1850 = vmatmul.mubr.f32.gmra.mxu0 %v1761
          %v1851 = vpop.f32.mrf.mxu0
          %v1852 = vadd.f32 0.0, %v1851
          %v1853 = vpop.f32.mrf.mxu0
          %v1854 = vadd.f32 0.0, %v1853
          %1855 = vdwg.mxu0
          %1856 = vmatprep.subr.mxu0 %v370
          %1857 = vmatpush1.msra.mxu0 %v369
          %1858 = vmatprep.subr.mxu0 %v366
          %1859 = vmatpush1.msra.mxu0 %v365
          %1860 = vmatprep.subr.mxu0 %v362
          %1861 = vmatpush1.msra.mxu0 %v361
          %1862 = vmatprep.subr.mxu0 %v358
          %1863 = vmatpush1.msra.mxu0 %v357
          %1864 = vmatprep.subr.mxu0 %v354
          %1865 = vmatpush1.msra.mxu0 %v353
          %1866 = vmatprep.subr.mxu0 %v350
          %1867 = vmatpush1.msra.mxu0 %v349
          %1868 = vmatprep.subr.mxu0 %v346
          %1869 = vmatpush1.msra.mxu0 %v345
          %1870 = vmatprep.subr.mxu0 %v342
          %1871 = vmatpush1.msra.mxu0 %v341
          %1872 = vmatprep.subr.mxu0 %v338
          %1873 = vmatpush1.msra.mxu0 %v337
          %1874 = vmatprep.subr.mxu0 %v334
          %1875 = vmatpush1.msra.mxu0 %v333
          %1876 = vmatprep.subr.mxu0 %v330
          %1877 = vmatpush1.msra.mxu0 %v329
          %1878 = vmatprep.subr.mxu0 %v326
          %1879 = vmatpush1.msra.mxu0 %v325
          %1880 = vmatprep.subr.mxu0 %v322
          %1881 = vmatpush1.msra.mxu0 %v321
          %1882 = vmatprep.subr.mxu0 %v318
          %1883 = vmatpush1.msra.mxu0 %v317
          %1884 = vmatprep.subr.mxu0 %v314
          %1885 = vmatpush1.msra.mxu0 %v313
          %1886 = vmatprep.subr.mxu0 %v310
          %1887 = vmatpush1.msra.mxu0 %v309
          %1888 = vmatprep.subr.mxu0 0.0
          %1889 = vmatpush2.msra.mxu0 0.0
          %1890 = vmatprep.subr.mxu0 0.0
          %1891 = vmatpush2.msra.mxu0 0.0
          %1892 = vmatprep.subr.mxu0 0.0
          %1893 = vmatpush2.msra.mxu0 0.0
          %1894 = vmatprep.subr.mxu0 0.0
          %1895 = vmatpush2.msra.mxu0 0.0
          %1896 = vmatprep.subr.mxu0 0.0
          %1897 = vmatpush2.msra.mxu0 0.0
          %1898 = vmatprep.subr.mxu0 0.0
          %1899 = vmatpush2.msra.mxu0 0.0
          %1900 = vmatprep.subr.mxu0 0.0
          %1901 = vmatpush2.msra.mxu0 0.0
          %1902 = vmatprep.subr.mxu0 0.0
          %1903 = vmatpush2.msra.mxu0 0.0
          %1904 = vmatprep.subr.mxu0 0.0
          %1905 = vmatpush2.msra.mxu0 0.0
          %1906 = vmatprep.subr.mxu0 0.0
          %1907 = vmatpush2.msra.mxu0 0.0
          %1908 = vmatprep.subr.mxu0 0.0
          %1909 = vmatpush2.msra.mxu0 0.0
          %1910 = vmatprep.subr.mxu0 0.0
          %1911 = vmatpush2.msra.mxu0 0.0
          %1912 = vmatprep.subr.mxu0 0.0
          %1913 = vmatpush2.msra.mxu0 0.0
          %1914 = vmatprep.subr.mxu0 0.0
          %1915 = vmatpush2.msra.mxu0 0.0
          %1916 = vmatprep.subr.mxu0 0.0
          %1917 = vmatpush2.msra.mxu0 0.0
          %1918 = vmatprep.subr.mxu0 0.0
          %1919 = vmatpush2.msra.mxu0 0.0
          %1920 = vmatprep.mubr.f32.mxu0 0.0
          %1921 = vmatmul.mubr.f32.gmra.mxu0 %v1760
          %v1922 = vpop.f32.mrf.mxu0
          %v1923 = vadd.f32 0.0, %v1922
          %v1924 = vpop.f32.mrf.mxu0
          %v1925 = vadd.f32 0.0, %v1924
          %1926 = vmatprep.mubr.f32.mxu0 0.0
          %1927 = vmatmul.mubr.f32.gmra.mxu0 %v1761
          %v1928 = vpop.f32.mrf.mxu0
          %v1929 = vadd.f32 0.0, %v1928
          %v1930 = vpop.f32.mrf.mxu0
          %v1931 = vadd.f32 0.0, %v1930
          %1932 = vdwg.mxu0
          %v1933 = vadd.f32 %v1771, %v1846
          %v1934 = vadd.f32 %v1772, %v1848
          %v1935 = vadd.f32 %v1773, %v1923
          %v1936 = vadd.f32 %v1774, %v1925
          %v1937 = vadd.f32 %v1775, %v1852
          %v1938 = vadd.f32 %v1776, %v1854
          %v1939 = vadd.f32 %v1777, %v1929
          %v1940 = vadd.f32 %v1778, %v1931
          %v1941 = vxor.u32 %v1933, 2147483648
          %v1942 = vxor.u32 %v1937, 2147483648
          %v1943 = vmul.f32 %v1941, 1.442695
          %v1944 = vpow.pop %v1943
          %v1945 = vmul.f32 %v1942, 1.442695
          %v1946 = vpow.pop %v1945
          %v1947 = vadd.f32 %v1944, 1.0
          %v1948 = vadd.f32 %v1946, 1.0
          %v1949 = vrcp.pop %v1947
          %v1950 = vmul.f32 1.0, %v1949
          %v1951 = vrcp.pop %v1948
          %v1952 = vmul.f32 1.0, %v1951
          %v1953 = vxor.u32 %v1934, 2147483648
          %v1954 = vxor.u32 %v1938, 2147483648
          %v1955 = vmul.f32 %v1953, 1.442695
          %v1956 = vpow.pop %v1955
          %v1957 = vmul.f32 %v1954, 1.442695
          %v1958 = vpow.pop %v1957
          %v1959 = vadd.f32 %v1956, 1.0
          %v1960 = vadd.f32 %v1958, 1.0
          %v1961 = vrcp.pop %v1959
          %v1962 = vmul.f32 1.0, %v1961
          %v1963 = vrcp.pop %v1960
          %v1964 = vmul.f32 1.0, %v1963
          %v1965 = vtanh.pop %v1935
          %v1966 = vtanh.pop %v1939
          %v1967 = vxor.u32 %v1936, 2147483648
          %v1968 = vxor.u32 %v1940, 2147483648
          %v1969 = vmul.f32 %v1967, 1.442695
          %v1970 = vpow.pop %v1969
          %v1971 = vmul.f32 %v1968, 1.442695
          %v1972 = vpow.pop %v1971
          %v1973 = vadd.f32 %v1970, 1.0
          %v1974 = vadd.f32 %v1972, 1.0
          %v1975 = vrcp.pop %v1973
          %v1976 = vmul.f32 1.0, %v1975
          %v1977 = vrcp.pop %v1974
          %v1978 = vmul.f32 1.0, %v1977
          %v1979 = vmul.f32 %v1962, %v1756
          %v1980 = vmul.f32 %v1964, %v1757
          %v1981 = vmul.f32 %v1950, %v1965
          %v1982 = vmul.f32 %v1952, %v1966
          %v1983 = vadd.f32 %v1979, %v1981
          %v1984 = vadd.f32 %v1980, %v1982
          %v1985 = vtanh.pop %v1983
          %v1986 = vtanh.pop %v1984
          %v1987 = vmul.f32 %v1976, %v1985
          %v1988 = vmul.f32 %v1978, %v1986
          %s1989 = scalar_lea.vmem %s262, 448 [#allocation4]
          %v1990 = vld [vmem:[%s1989] sm:$0xff]
          %v1991 = vld [vmem:[%s1989 + $0x8] sm:$0xff]
          %v1992 = vld [vmem:[%s1989 + $0x10] sm:$0xff]
          %v1993 = vld [vmem:[%s1989 + $0x18] sm:$0xff]
          %v1994 = vld [vmem:[%s1989 + $0x20] sm:$0xff]
          %v1995 = vld [vmem:[%s1989 + $0x28] sm:$0xff]
          %v1996 = vld [vmem:[%s1989 + $0x30] sm:$0xff]
          %v1997 = vld [vmem:[%s1989 + $0x38] sm:$0xff]
          %v1998 = vadd.f32 %v1990, %v392
          %v1999 = vadd.f32 %v1991, %v396
          %v2000 = vadd.f32 %v1992, %v400
          %v2001 = vadd.f32 %v1993, %v404
          %v2002 = vadd.f32 %v1994, %v392
          %v2003 = vadd.f32 %v1995, %v396
          %v2004 = vadd.f32 %v1996, %v400
          %v2005 = vadd.f32 %v1997, %v404
          %2006 = vmatprep.subr.mxu0 %v368
          %2007 = vmatpush1.msra.mxu0 %v367
          %2008 = vmatprep.subr.mxu0 %v364
          %2009 = vmatpush1.msra.mxu0 %v363
          %2010 = vmatprep.subr.mxu0 %v360
          %2011 = vmatpush1.msra.mxu0 %v359
          %2012 = vmatprep.subr.mxu0 %v356
          %2013 = vmatpush1.msra.mxu0 %v355
          %2014 = vmatprep.subr.mxu0 %v352
          %2015 = vmatpush1.msra.mxu0 %v351
          %2016 = vmatprep.subr.mxu0 %v348
          %2017 = vmatpush1.msra.mxu0 %v347
          %2018 = vmatprep.subr.mxu0 %v344
          %2019 = vmatpush1.msra.mxu0 %v343
          %2020 = vmatprep.subr.mxu0 %v340
          %2021 = vmatpush1.msra.mxu0 %v339
          %2022 = vmatprep.subr.mxu0 %v336
          %2023 = vmatpush1.msra.mxu0 %v335
          %2024 = vmatprep.subr.mxu0 %v332
          %2025 = vmatpush1.msra.mxu0 %v331
          %2026 = vmatprep.subr.mxu0 %v328
          %2027 = vmatpush1.msra.mxu0 %v327
          %2028 = vmatprep.subr.mxu0 %v324
          %2029 = vmatpush1.msra.mxu0 %v323
          %2030 = vmatprep.subr.mxu0 %v320
          %2031 = vmatpush1.msra.mxu0 %v319
          %2032 = vmatprep.subr.mxu0 %v316
          %2033 = vmatpush1.msra.mxu0 %v315
          %2034 = vmatprep.subr.mxu0 %v312
          %2035 = vmatpush1.msra.mxu0 %v311
          %2036 = vmatprep.subr.mxu0 %v308
          %2037 = vmatpush1.msra.mxu0 %v307
          %2038 = vmatprep.subr.mxu0 0.0
          %2039 = vmatpush2.msra.mxu0 0.0
          %2040 = vmatprep.subr.mxu0 0.0
          %2041 = vmatpush2.msra.mxu0 0.0
          %2042 = vmatprep.subr.mxu0 0.0
          %2043 = vmatpush2.msra.mxu0 0.0
          %2044 = vmatprep.subr.mxu0 0.0
          %2045 = vmatpush2.msra.mxu0 0.0
          %2046 = vmatprep.subr.mxu0 0.0
          %2047 = vmatpush2.msra.mxu0 0.0
          %2048 = vmatprep.subr.mxu0 0.0
          %2049 = vmatpush2.msra.mxu0 0.0
          %2050 = vmatprep.subr.mxu0 0.0
          %2051 = vmatpush2.msra.mxu0 0.0
          %2052 = vmatprep.subr.mxu0 0.0
          %2053 = vmatpush2.msra.mxu0 0.0
          %2054 = vmatprep.subr.mxu0 0.0
          %2055 = vmatpush2.msra.mxu0 0.0
          %2056 = vmatprep.subr.mxu0 0.0
          %2057 = vmatpush2.msra.mxu0 0.0
          %2058 = vmatprep.subr.mxu0 0.0
          %2059 = vmatpush2.msra.mxu0 0.0
          %2060 = vmatprep.subr.mxu0 0.0
          %2061 = vmatpush2.msra.mxu0 0.0
          %2062 = vmatprep.subr.mxu0 0.0
          %2063 = vmatpush2.msra.mxu0 0.0
          %2064 = vmatprep.subr.mxu0 0.0
          %2065 = vmatpush2.msra.mxu0 0.0
          %2066 = vmatprep.subr.mxu0 0.0
          %2067 = vmatpush2.msra.mxu0 0.0
          %2068 = vmatprep.subr.mxu0 0.0
          %2069 = vmatpush2.msra.mxu0 0.0
          %2070 = vmatprep.mubr.f32.mxu0 0.0
          %2071 = vmatmul.mubr.f32.gmra.mxu0 %v1987
          %v2072 = vpop.f32.mrf.mxu0
          %v2073 = vadd.f32 0.0, %v2072
          %v2074 = vpop.f32.mrf.mxu0
          %v2075 = vadd.f32 0.0, %v2074
          %2076 = vmatprep.mubr.f32.mxu0 0.0
          %2077 = vmatmul.mubr.f32.gmra.mxu0 %v1988
          %v2078 = vpop.f32.mrf.mxu0
          %v2079 = vadd.f32 0.0, %v2078
          %v2080 = vpop.f32.mrf.mxu0
          %v2081 = vadd.f32 0.0, %v2080
          %2082 = vdwg.mxu0
          %2083 = vmatprep.subr.mxu0 %v370
          %2084 = vmatpush1.msra.mxu0 %v369
          %2085 = vmatprep.subr.mxu0 %v366
          %2086 = vmatpush1.msra.mxu0 %v365
          %2087 = vmatprep.subr.mxu0 %v362
          %2088 = vmatpush1.msra.mxu0 %v361
          %2089 = vmatprep.subr.mxu0 %v358
          %2090 = vmatpush1.msra.mxu0 %v357
          %2091 = vmatprep.subr.mxu0 %v354
          %2092 = vmatpush1.msra.mxu0 %v353
          %2093 = vmatprep.subr.mxu0 %v350
          %2094 = vmatpush1.msra.mxu0 %v349
          %2095 = vmatprep.subr.mxu0 %v346
          %2096 = vmatpush1.msra.mxu0 %v345
          %2097 = vmatprep.subr.mxu0 %v342
          %2098 = vmatpush1.msra.mxu0 %v341
          %2099 = vmatprep.subr.mxu0 %v338
          %2100 = vmatpush1.msra.mxu0 %v337
          %2101 = vmatprep.subr.mxu0 %v334
          %2102 = vmatpush1.msra.mxu0 %v333
          %2103 = vmatprep.subr.mxu0 %v330
          %2104 = vmatpush1.msra.mxu0 %v329
          %2105 = vmatprep.subr.mxu0 %v326
          %2106 = vmatpush1.msra.mxu0 %v325
          %2107 = vmatprep.subr.mxu0 %v322
          %2108 = vmatpush1.msra.mxu0 %v321
          %2109 = vmatprep.subr.mxu0 %v318
          %2110 = vmatpush1.msra.mxu0 %v317
          %2111 = vmatprep.subr.mxu0 %v314
          %2112 = vmatpush1.msra.mxu0 %v313
          %2113 = vmatprep.subr.mxu0 %v310
          %2114 = vmatpush1.msra.mxu0 %v309
          %2115 = vmatprep.subr.mxu0 0.0
          %2116 = vmatpush2.msra.mxu0 0.0
          %2117 = vmatprep.subr.mxu0 0.0
          %2118 = vmatpush2.msra.mxu0 0.0
          %2119 = vmatprep.subr.mxu0 0.0
          %2120 = vmatpush2.msra.mxu0 0.0
          %2121 = vmatprep.subr.mxu0 0.0
          %2122 = vmatpush2.msra.mxu0 0.0
          %2123 = vmatprep.subr.mxu0 0.0
          %2124 = vmatpush2.msra.mxu0 0.0
          %2125 = vmatprep.subr.mxu0 0.0
          %2126 = vmatpush2.msra.mxu0 0.0
          %2127 = vmatprep.subr.mxu0 0.0
          %2128 = vmatpush2.msra.mxu0 0.0
          %2129 = vmatprep.subr.mxu0 0.0
          %2130 = vmatpush2.msra.mxu0 0.0
          %2131 = vmatprep.subr.mxu0 0.0
          %2132 = vmatpush2.msra.mxu0 0.0
          %2133 = vmatprep.subr.mxu0 0.0
          %2134 = vmatpush2.msra.mxu0 0.0
          %2135 = vmatprep.subr.mxu0 0.0
          %2136 = vmatpush2.msra.mxu0 0.0
          %2137 = vmatprep.subr.mxu0 0.0
          %2138 = vmatpush2.msra.mxu0 0.0
          %2139 = vmatprep.subr.mxu0 0.0
          %2140 = vmatpush2.msra.mxu0 0.0
          %2141 = vmatprep.subr.mxu0 0.0
          %2142 = vmatpush2.msra.mxu0 0.0
          %2143 = vmatprep.subr.mxu0 0.0
          %2144 = vmatpush2.msra.mxu0 0.0
          %2145 = vmatprep.subr.mxu0 0.0
          %2146 = vmatpush2.msra.mxu0 0.0
          %2147 = vmatprep.mubr.f32.mxu0 0.0
          %2148 = vmatmul.mubr.f32.gmra.mxu0 %v1987
          %v2149 = vpop.f32.mrf.mxu0
          %v2150 = vadd.f32 0.0, %v2149
          %v2151 = vpop.f32.mrf.mxu0
          %v2152 = vadd.f32 0.0, %v2151
          %2153 = vmatprep.mubr.f32.mxu0 0.0
          %2154 = vmatmul.mubr.f32.gmra.mxu0 %v1988
          %v2155 = vpop.f32.mrf.mxu0
          %v2156 = vadd.f32 0.0, %v2155
          %v2157 = vpop.f32.mrf.mxu0
          %v2158 = vadd.f32 0.0, %v2157
          %2159 = vdwg.mxu0
          %v2160 = vadd.f32 %v1998, %v2073
          %v2161 = vadd.f32 %v1999, %v2075
          %v2162 = vadd.f32 %v2000, %v2150
          %v2163 = vadd.f32 %v2001, %v2152
          %v2164 = vadd.f32 %v2002, %v2079
          %v2165 = vadd.f32 %v2003, %v2081
          %v2166 = vadd.f32 %v2004, %v2156
          %v2167 = vadd.f32 %v2005, %v2158
          %v2168 = vxor.u32 %v2160, 2147483648
          %v2169 = vxor.u32 %v2164, 2147483648
          %v2170 = vmul.f32 %v2168, 1.442695
          %v2171 = vpow.pop %v2170
          %v2172 = vmul.f32 %v2169, 1.442695
          %v2173 = vpow.pop %v2172
          %v2174 = vadd.f32 %v2171, 1.0
          %v2175 = vadd.f32 %v2173, 1.0
          %v2176 = vrcp.pop %v2174
          %v2177 = vmul.f32 1.0, %v2176
          %v2178 = vrcp.pop %v2175
          %v2179 = vmul.f32 1.0, %v2178
          %v2180 = vxor.u32 %v2161, 2147483648
          %v2181 = vxor.u32 %v2165, 2147483648
          %v2182 = vmul.f32 %v2180, 1.442695
          %v2183 = vpow.pop %v2182
          %v2184 = vmul.f32 %v2181, 1.442695
          %v2185 = vpow.pop %v2184
          %v2186 = vadd.f32 %v2183, 1.0
          %v2187 = vadd.f32 %v2185, 1.0
          %v2188 = vrcp.pop %v2186
          %v2189 = vmul.f32 1.0, %v2188
          %v2190 = vrcp.pop %v2187
          %v2191 = vmul.f32 1.0, %v2190
          %v2192 = vtanh.pop %v2162
          %v2193 = vtanh.pop %v2166
          %v2194 = vxor.u32 %v2163, 2147483648
          %v2195 = vxor.u32 %v2167, 2147483648
          %v2196 = vmul.f32 %v2194, 1.442695
          %v2197 = vpow.pop %v2196
          %v2198 = vmul.f32 %v2195, 1.442695
          %v2199 = vpow.pop %v2198
          %v2200 = vadd.f32 %v2197, 1.0
          %v2201 = vadd.f32 %v2199, 1.0
          %v2202 = vrcp.pop %v2200
          %v2203 = vmul.f32 1.0, %v2202
          %v2204 = vrcp.pop %v2201
          %v2205 = vmul.f32 1.0, %v2204
          %v2206 = vmul.f32 %v2189, %v1983
          %v2207 = vmul.f32 %v2191, %v1984
          %v2208 = vmul.f32 %v2177, %v2192
          %v2209 = vmul.f32 %v2179, %v2193
          %v2210 = vadd.f32 %v2206, %v2208
          %v2211 = vadd.f32 %v2207, %v2209
          %v2212 = vtanh.pop %v2210
          %v2213 = vtanh.pop %v2211
          %v2214 = vmul.f32 %v2203, %v2212
          %v2215 = vmul.f32 %v2205, %v2213
          %2216 = vst [vmem:[#allocation2] sm:$0xff] %v2214
          %2217 = vst [vmem:[#allocation2 + $0x8] sm:$0xff] %v2215
          %2218 = vst [vmem:[#allocation3] sm:$0xff] %v2210
          %2219 = vst [vmem:[#allocation3 + $0x8] sm:$0xff] %v2211
        $region64: #{tpu_custom_call.1} parent=39 // pred_fallthru
          _
        %p2220 = scmp.eq.s32.totalorder %s27, 1
        // Predicated region
        $region65: #{tpu_custom_call.1} parent=39 // pred_check
          %p2221 = pneg %p2220
        $region66: #{tpu_custom_call.1} parent=39 // pred_check_branch
          %2223 = sbr.rel (%p2221) target = $region68
        $region67: #{tpu_custom_call.1} parent=39 // pred_region
          %v2224 = vld [vmem:[#allocation2] sm:$0xff]
          %v2225 = vld [vmem:[#allocation2 + $0x8] sm:$0xff]
          %v2226 = vld [vmem:[#allocation3] sm:$0xff]
          %v2227 = vld [vmem:[#allocation3 + $0x8] sm:$0xff]
          %v2228 = vld [vmem:[%s262] sm:$0xff]
          %v2229 = vld [vmem:[%s262 + $0x8] sm:$0xff]
          %v2230 = vld [vmem:[%s262 + $0x10] sm:$0xff]
          %v2231 = vld [vmem:[%s262 + $0x18] sm:$0xff]
          %v2232 = vld [vmem:[%s262 + $0x20] sm:$0xff]
          %v2233 = vld [vmem:[%s262 + $0x28] sm:$0xff]
          %v2234 = vld [vmem:[%s262 + $0x30] sm:$0xff]
          %v2235 = vld [vmem:[%s262 + $0x38] sm:$0xff]
          %v2237 = vlaneseq
          %v2238 = vshrl.u32 %v2237, 7
          %v2239 = vsub.s32 0, %v2238
          %v2240 = vrot.slane %v371, %v2239
          %v2241 = vlaneseq
          %v2242 = vshrl.u32 %v2241, 7
          %v2243 = vsub.s32 1, %v2242
          %v2244 = vrot.slane %v371, %v2243
          %v2245 = vlaneseq
          %v2246 = vshrl.u32 %v2245, 7
          %v2247 = vsub.s32 2, %v2246
          %v2248 = vrot.slane %v371, %v2247
          %v2249 = vlaneseq
          %v2250 = vshrl.u32 %v2249, 7
          %v2251 = vsub.s32 3, %v2250
          %v2252 = vrot.slane %v371, %v2251
          %v2257 = vadd.f32 %v2228, %v2240
          %v2258 = vadd.f32 %v2229, %v2244
          %v2259 = vadd.f32 %v2230, %v2248
          %v2260 = vadd.f32 %v2231, %v2252
          %v2261 = vadd.f32 %v2232, %v2240
          %v2262 = vadd.f32 %v2233, %v2244
          %v2263 = vadd.f32 %v2234, %v2248
          %v2264 = vadd.f32 %v2235, %v2252
          %2265 = vmatprep.subr.mxu0 %v368
          %2266 = vmatpush1.msra.mxu0 %v367
          %2267 = vmatprep.subr.mxu0 %v364
          %2268 = vmatpush1.msra.mxu0 %v363
          %2269 = vmatprep.subr.mxu0 %v360
          %2270 = vmatpush1.msra.mxu0 %v359
          %2271 = vmatprep.subr.mxu0 %v356
          %2272 = vmatpush1.msra.mxu0 %v355
          %2273 = vmatprep.subr.mxu0 %v352
          %2274 = vmatpush1.msra.mxu0 %v351
          %2275 = vmatprep.subr.mxu0 %v348
          %2276 = vmatpush1.msra.mxu0 %v347
          %2277 = vmatprep.subr.mxu0 %v344
          %2278 = vmatpush1.msra.mxu0 %v343
          %2279 = vmatprep.subr.mxu0 %v340
          %2280 = vmatpush1.msra.mxu0 %v339
          %2281 = vmatprep.subr.mxu0 %v336
          %2282 = vmatpush1.msra.mxu0 %v335
          %2283 = vmatprep.subr.mxu0 %v332
          %2284 = vmatpush1.msra.mxu0 %v331
          %2285 = vmatprep.subr.mxu0 %v328
          %2286 = vmatpush1.msra.mxu0 %v327
          %2287 = vmatprep.subr.mxu0 %v324
          %2288 = vmatpush1.msra.mxu0 %v323
          %2289 = vmatprep.subr.mxu0 %v320
          %2290 = vmatpush1.msra.mxu0 %v319
          %2291 = vmatprep.subr.mxu0 %v316
          %2292 = vmatpush1.msra.mxu0 %v315
          %2293 = vmatprep.subr.mxu0 %v312
          %2294 = vmatpush1.msra.mxu0 %v311
          %2295 = vmatprep.subr.mxu0 %v308
          %2296 = vmatpush1.msra.mxu0 %v307
          %2297 = vmatprep.subr.mxu0 0.0
          %2298 = vmatpush2.msra.mxu0 0.0
          %2299 = vmatprep.subr.mxu0 0.0
          %2300 = vmatpush2.msra.mxu0 0.0
          %2301 = vmatprep.subr.mxu0 0.0
          %2302 = vmatpush2.msra.mxu0 0.0
          %2303 = vmatprep.subr.mxu0 0.0
          %2304 = vmatpush2.msra.mxu0 0.0
          %2305 = vmatprep.subr.mxu0 0.0
          %2306 = vmatpush2.msra.mxu0 0.0
          %2307 = vmatprep.subr.mxu0 0.0
          %2308 = vmatpush2.msra.mxu0 0.0
          %2309 = vmatprep.subr.mxu0 0.0
          %2310 = vmatpush2.msra.mxu0 0.0
          %2311 = vmatprep.subr.mxu0 0.0
          %2312 = vmatpush2.msra.mxu0 0.0
          %2313 = vmatprep.subr.mxu0 0.0
          %2314 = vmatpush2.msra.mxu0 0.0
          %2315 = vmatprep.subr.mxu0 0.0
          %2316 = vmatpush2.msra.mxu0 0.0
          %2317 = vmatprep.subr.mxu0 0.0
          %2318 = vmatpush2.msra.mxu0 0.0
          %2319 = vmatprep.subr.mxu0 0.0
          %2320 = vmatpush2.msra.mxu0 0.0
          %2321 = vmatprep.subr.mxu0 0.0
          %2322 = vmatpush2.msra.mxu0 0.0
          %2323 = vmatprep.subr.mxu0 0.0
          %2324 = vmatpush2.msra.mxu0 0.0
          %2325 = vmatprep.subr.mxu0 0.0
          %2326 = vmatpush2.msra.mxu0 0.0
          %2327 = vmatprep.subr.mxu0 0.0
          %2328 = vmatpush2.msra.mxu0 0.0
          %2329 = vmatprep.mubr.f32.mxu0 0.0
          %2330 = vmatmul.mubr.f32.gmra.mxu0 %v2224
          %v2331 = vpop.f32.mrf.mxu0
          %v2332 = vadd.f32 0.0, %v2331
          %v2333 = vpop.f32.mrf.mxu0
          %v2334 = vadd.f32 0.0, %v2333
          %2335 = vmatprep.mubr.f32.mxu0 0.0
          %2336 = vmatmul.mubr.f32.gmra.mxu0 %v2225
          %v2337 = vpop.f32.mrf.mxu0
          %v2338 = vadd.f32 0.0, %v2337
          %v2339 = vpop.f32.mrf.mxu0
          %v2340 = vadd.f32 0.0, %v2339
          %2341 = vdwg.mxu0
          %2342 = vmatprep.subr.mxu0 %v370
          %2343 = vmatpush1.msra.mxu0 %v369
          %2344 = vmatprep.subr.mxu0 %v366
          %2345 = vmatpush1.msra.mxu0 %v365
          %2346 = vmatprep.subr.mxu0 %v362
          %2347 = vmatpush1.msra.mxu0 %v361
          %2348 = vmatprep.subr.mxu0 %v358
          %2349 = vmatpush1.msra.mxu0 %v357
          %2350 = vmatprep.subr.mxu0 %v354
          %2351 = vmatpush1.msra.mxu0 %v353
          %2352 = vmatprep.subr.mxu0 %v350
          %2353 = vmatpush1.msra.mxu0 %v349
          %2354 = vmatprep.subr.mxu0 %v346
          %2355 = vmatpush1.msra.mxu0 %v345
          %2356 = vmatprep.subr.mxu0 %v342
          %2357 = vmatpush1.msra.mxu0 %v341
          %2358 = vmatprep.subr.mxu0 %v338
          %2359 = vmatpush1.msra.mxu0 %v337
          %2360 = vmatprep.subr.mxu0 %v334
          %2361 = vmatpush1.msra.mxu0 %v333
          %2362 = vmatprep.subr.mxu0 %v330
          %2363 = vmatpush1.msra.mxu0 %v329
          %2364 = vmatprep.subr.mxu0 %v326
          %2365 = vmatpush1.msra.mxu0 %v325
          %2366 = vmatprep.subr.mxu0 %v322
          %2367 = vmatpush1.msra.mxu0 %v321
          %2368 = vmatprep.subr.mxu0 %v318
          %2369 = vmatpush1.msra.mxu0 %v317
          %2370 = vmatprep.subr.mxu0 %v314
          %2371 = vmatpush1.msra.mxu0 %v313
          %2372 = vmatprep.subr.mxu0 %v310
          %2373 = vmatpush1.msra.mxu0 %v309
          %2374 = vmatprep.subr.mxu0 0.0
          %2375 = vmatpush2.msra.mxu0 0.0
          %2376 = vmatprep.subr.mxu0 0.0
          %2377 = vmatpush2.msra.mxu0 0.0
          %2378 = vmatprep.subr.mxu0 0.0
          %2379 = vmatpush2.msra.mxu0 0.0
          %2380 = vmatprep.subr.mxu0 0.0
          %2381 = vmatpush2.msra.mxu0 0.0
          %2382 = vmatprep.subr.mxu0 0.0
          %2383 = vmatpush2.msra.mxu0 0.0
          %2384 = vmatprep.subr.mxu0 0.0
          %2385 = vmatpush2.msra.mxu0 0.0
          %2386 = vmatprep.subr.mxu0 0.0
          %2387 = vmatpush2.msra.mxu0 0.0
          %2388 = vmatprep.subr.mxu0 0.0
          %2389 = vmatpush2.msra.mxu0 0.0
          %2390 = vmatprep.subr.mxu0 0.0
          %2391 = vmatpush2.msra.mxu0 0.0
          %2392 = vmatprep.subr.mxu0 0.0
          %2393 = vmatpush2.msra.mxu0 0.0
          %2394 = vmatprep.subr.mxu0 0.0
          %2395 = vmatpush2.msra.mxu0 0.0
          %2396 = vmatprep.subr.mxu0 0.0
          %2397 = vmatpush2.msra.mxu0 0.0
          %2398 = vmatprep.subr.mxu0 0.0
          %2399 = vmatpush2.msra.mxu0 0.0
          %2400 = vmatprep.subr.mxu0 0.0
          %2401 = vmatpush2.msra.mxu0 0.0
          %2402 = vmatprep.subr.mxu0 0.0
          %2403 = vmatpush2.msra.mxu0 0.0
          %2404 = vmatprep.subr.mxu0 0.0
          %2405 = vmatpush2.msra.mxu0 0.0
          %2406 = vmatprep.mubr.f32.mxu0 0.0
          %2407 = vmatmul.mubr.f32.gmra.mxu0 %v2224
          %v2408 = vpop.f32.mrf.mxu0
          %v2409 = vadd.f32 0.0, %v2408
          %v2410 = vpop.f32.mrf.mxu0
          %v2411 = vadd.f32 0.0, %v2410
          %2412 = vmatprep.mubr.f32.mxu0 0.0
          %2413 = vmatmul.mubr.f32.gmra.mxu0 %v2225
          %v2414 = vpop.f32.mrf.mxu0
          %v2415 = vadd.f32 0.0, %v2414
          %v2416 = vpop.f32.mrf.mxu0
          %v2417 = vadd.f32 0.0, %v2416
          %2418 = vdwg.mxu0
          %v2419 = vadd.f32 %v2257, %v2332
          %v2420 = vadd.f32 %v2258, %v2334
          %v2421 = vadd.f32 %v2259, %v2409
          %v2422 = vadd.f32 %v2260, %v2411
          %v2423 = vadd.f32 %v2261, %v2338
          %v2424 = vadd.f32 %v2262, %v2340
          %v2425 = vadd.f32 %v2263, %v2415
          %v2426 = vadd.f32 %v2264, %v2417
          %v2427 = vxor.u32 %v2419, 2147483648
          %v2428 = vxor.u32 %v2423, 2147483648
          %v2429 = vmul.f32 %v2427, 1.442695
          %v2430 = vpow.pop %v2429
          %v2431 = vmul.f32 %v2428, 1.442695
          %v2432 = vpow.pop %v2431
          %v2433 = vadd.f32 %v2430, 1.0
          %v2434 = vadd.f32 %v2432, 1.0
          %v2435 = vrcp.pop %v2433
          %v2436 = vmul.f32 1.0, %v2435
          %v2437 = vrcp.pop %v2434
          %v2438 = vmul.f32 1.0, %v2437
          %v2439 = vxor.u32 %v2420, 2147483648
          %v2440 = vxor.u32 %v2424, 2147483648
          %v2441 = vmul.f32 %v2439, 1.442695
          %v2442 = vpow.pop %v2441
          %v2443 = vmul.f32 %v2440, 1.442695
          %v2444 = vpow.pop %v2443
          %v2445 = vadd.f32 %v2442, 1.0
          %v2446 = vadd.f32 %v2444, 1.0
          %v2447 = vrcp.pop %v2445
          %v2448 = vmul.f32 1.0, %v2447
          %v2449 = vrcp.pop %v2446
          %v2450 = vmul.f32 1.0, %v2449
          %v2451 = vtanh.pop %v2421
          %v2452 = vtanh.pop %v2425
          %v2453 = vxor.u32 %v2422, 2147483648
          %v2454 = vxor.u32 %v2426, 2147483648
          %v2455 = vmul.f32 %v2453, 1.442695
          %v2456 = vpow.pop %v2455
          %v2457 = vmul.f32 %v2454, 1.442695
          %v2458 = vpow.pop %v2457
          %v2459 = vadd.f32 %v2456, 1.0
          %v2460 = vadd.f32 %v2458, 1.0
          %v2461 = vrcp.pop %v2459
          %v2462 = vmul.f32 1.0, %v2461
          %v2463 = vrcp.pop %v2460
          %v2464 = vmul.f32 1.0, %v2463
          %v2465 = vmul.f32 %v2448, %v2226
          %v2466 = vmul.f32 %v2450, %v2227
          %v2467 = vmul.f32 %v2436, %v2451
          %v2468 = vmul.f32 %v2438, %v2452
          %v2469 = vadd.f32 %v2465, %v2467
          %v2470 = vadd.f32 %v2466, %v2468
          %v2471 = vtanh.pop %v2469
          %v2472 = vtanh.pop %v2470
          %v2473 = vmul.f32 %v2462, %v2471
          %v2474 = vmul.f32 %v2464, %v2472
          %s2475 = scalar_lea.vmem %s262, 64 [#allocation4]
          %v2476 = vld [vmem:[%s2475] sm:$0xff]
          %v2477 = vld [vmem:[%s2475 + $0x8] sm:$0xff]
          %v2478 = vld [vmem:[%s2475 + $0x10] sm:$0xff]
          %v2479 = vld [vmem:[%s2475 + $0x18] sm:$0xff]
          %v2480 = vld [vmem:[%s2475 + $0x20] sm:$0xff]
          %v2481 = vld [vmem:[%s2475 + $0x28] sm:$0xff]
          %v2482 = vld [vmem:[%s2475 + $0x30] sm:$0xff]
          %v2483 = vld [vmem:[%s2475 + $0x38] sm:$0xff]
          %v2484 = vadd.f32 %v2476, %v2240
          %v2485 = vadd.f32 %v2477, %v2244
          %v2486 = vadd.f32 %v2478, %v2248
          %v2487 = vadd.f32 %v2479, %v2252
          %v2488 = vadd.f32 %v2480, %v2240
          %v2489 = vadd.f32 %v2481, %v2244
          %v2490 = vadd.f32 %v2482, %v2248
          %v2491 = vadd.f32 %v2483, %v2252
          %2492 = vmatprep.subr.mxu0 %v368
          %2493 = vmatpush1.msra.mxu0 %v367
          %2494 = vmatprep.subr.mxu0 %v364
          %2495 = vmatpush1.msra.mxu0 %v363
          %2496 = vmatprep.subr.mxu0 %v360
          %2497 = vmatpush1.msra.mxu0 %v359
          %2498 = vmatprep.subr.mxu0 %v356
          %2499 = vmatpush1.msra.mxu0 %v355
          %2500 = vmatprep.subr.mxu0 %v352
          %2501 = vmatpush1.msra.mxu0 %v351
          %2502 = vmatprep.subr.mxu0 %v348
          %2503 = vmatpush1.msra.mxu0 %v347
          %2504 = vmatprep.subr.mxu0 %v344
          %2505 = vmatpush1.msra.mxu0 %v343
          %2506 = vmatprep.subr.mxu0 %v340
          %2507 = vmatpush1.msra.mxu0 %v339
          %2508 = vmatprep.subr.mxu0 %v336
          %2509 = vmatpush1.msra.mxu0 %v335
          %2510 = vmatprep.subr.mxu0 %v332
          %2511 = vmatpush1.msra.mxu0 %v331
          %2512 = vmatprep.subr.mxu0 %v328
          %2513 = vmatpush1.msra.mxu0 %v327
          %2514 = vmatprep.subr.mxu0 %v324
          %2515 = vmatpush1.msra.mxu0 %v323
          %2516 = vmatprep.subr.mxu0 %v320
          %2517 = vmatpush1.msra.mxu0 %v319
          %2518 = vmatprep.subr.mxu0 %v316
          %2519 = vmatpush1.msra.mxu0 %v315
          %2520 = vmatprep.subr.mxu0 %v312
          %2521 = vmatpush1.msra.mxu0 %v311
          %2522 = vmatprep.subr.mxu0 %v308
          %2523 = vmatpush1.msra.mxu0 %v307
          %2524 = vmatprep.subr.mxu0 0.0
          %2525 = vmatpush2.msra.mxu0 0.0
          %2526 = vmatprep.subr.mxu0 0.0
          %2527 = vmatpush2.msra.mxu0 0.0
          %2528 = vmatprep.subr.mxu0 0.0
          %2529 = vmatpush2.msra.mxu0 0.0
          %2530 = vmatprep.subr.mxu0 0.0
          %2531 = vmatpush2.msra.mxu0 0.0
          %2532 = vmatprep.subr.mxu0 0.0
          %2533 = vmatpush2.msra.mxu0 0.0
          %2534 = vmatprep.subr.mxu0 0.0
          %2535 = vmatpush2.msra.mxu0 0.0
          %2536 = vmatprep.subr.mxu0 0.0
          %2537 = vmatpush2.msra.mxu0 0.0
          %2538 = vmatprep.subr.mxu0 0.0
          %2539 = vmatpush2.msra.mxu0 0.0
          %2540 = vmatprep.subr.mxu0 0.0
          %2541 = vmatpush2.msra.mxu0 0.0
          %2542 = vmatprep.subr.mxu0 0.0
          %2543 = vmatpush2.msra.mxu0 0.0
          %2544 = vmatprep.subr.mxu0 0.0
          %2545 = vmatpush2.msra.mxu0 0.0
          %2546 = vmatprep.subr.mxu0 0.0
          %2547 = vmatpush2.msra.mxu0 0.0
          %2548 = vmatprep.subr.mxu0 0.0
          %2549 = vmatpush2.msra.mxu0 0.0
          %2550 = vmatprep.subr.mxu0 0.0
          %2551 = vmatpush2.msra.mxu0 0.0
          %2552 = vmatprep.subr.mxu0 0.0
          %2553 = vmatpush2.msra.mxu0 0.0
          %2554 = vmatprep.subr.mxu0 0.0
          %2555 = vmatpush2.msra.mxu0 0.0
          %2556 = vmatprep.mubr.f32.mxu0 0.0
          %2557 = vmatmul.mubr.f32.gmra.mxu0 %v2473
          %v2558 = vpop.f32.mrf.mxu0
          %v2559 = vadd.f32 0.0, %v2558
          %v2560 = vpop.f32.mrf.mxu0
          %v2561 = vadd.f32 0.0, %v2560
          %2562 = vmatprep.mubr.f32.mxu0 0.0
          %2563 = vmatmul.mubr.f32.gmra.mxu0 %v2474
          %v2564 = vpop.f32.mrf.mxu0
          %v2565 = vadd.f32 0.0, %v2564
          %v2566 = vpop.f32.mrf.mxu0
          %v2567 = vadd.f32 0.0, %v2566
          %2568 = vdwg.mxu0
          %2569 = vmatprep.subr.mxu0 %v370
          %2570 = vmatpush1.msra.mxu0 %v369
          %2571 = vmatprep.subr.mxu0 %v366
          %2572 = vmatpush1.msra.mxu0 %v365
          %2573 = vmatprep.subr.mxu0 %v362
          %2574 = vmatpush1.msra.mxu0 %v361
          %2575 = vmatprep.subr.mxu0 %v358
          %2576 = vmatpush1.msra.mxu0 %v357
          %2577 = vmatprep.subr.mxu0 %v354
          %2578 = vmatpush1.msra.mxu0 %v353
          %2579 = vmatprep.subr.mxu0 %v350
          %2580 = vmatpush1.msra.mxu0 %v349
          %2581 = vmatprep.subr.mxu0 %v346
          %2582 = vmatpush1.msra.mxu0 %v345
          %2583 = vmatprep.subr.mxu0 %v342
          %2584 = vmatpush1.msra.mxu0 %v341
          %2585 = vmatprep.subr.mxu0 %v338
          %2586 = vmatpush1.msra.mxu0 %v337
          %2587 = vmatprep.subr.mxu0 %v334
          %2588 = vmatpush1.msra.mxu0 %v333
          %2589 = vmatprep.subr.mxu0 %v330
          %2590 = vmatpush1.msra.mxu0 %v329
          %2591 = vmatprep.subr.mxu0 %v326
          %2592 = vmatpush1.msra.mxu0 %v325
          %2593 = vmatprep.subr.mxu0 %v322
          %2594 = vmatpush1.msra.mxu0 %v321
          %2595 = vmatprep.subr.mxu0 %v318
          %2596 = vmatpush1.msra.mxu0 %v317
          %2597 = vmatprep.subr.mxu0 %v314
          %2598 = vmatpush1.msra.mxu0 %v313
          %2599 = vmatprep.subr.mxu0 %v310
          %2600 = vmatpush1.msra.mxu0 %v309
          %2601 = vmatprep.subr.mxu0 0.0
          %2602 = vmatpush2.msra.mxu0 0.0
          %2603 = vmatprep.subr.mxu0 0.0
          %2604 = vmatpush2.msra.mxu0 0.0
          %2605 = vmatprep.subr.mxu0 0.0
          %2606 = vmatpush2.msra.mxu0 0.0
          %2607 = vmatprep.subr.mxu0 0.0
          %2608 = vmatpush2.msra.mxu0 0.0
          %2609 = vmatprep.subr.mxu0 0.0
          %2610 = vmatpush2.msra.mxu0 0.0
          %2611 = vmatprep.subr.mxu0 0.0
          %2612 = vmatpush2.msra.mxu0 0.0
          %2613 = vmatprep.subr.mxu0 0.0
          %2614 = vmatpush2.msra.mxu0 0.0
          %2615 = vmatprep.subr.mxu0 0.0
          %2616 = vmatpush2.msra.mxu0 0.0
          %2617 = vmatprep.subr.mxu0 0.0
          %2618 = vmatpush2.msra.mxu0 0.0
          %2619 = vmatprep.subr.mxu0 0.0
          %2620 = vmatpush2.msra.mxu0 0.0
          %2621 = vmatprep.subr.mxu0 0.0
          %2622 = vmatpush2.msra.mxu0 0.0
          %2623 = vmatprep.subr.mxu0 0.0
          %2624 = vmatpush2.msra.mxu0 0.0
          %2625 = vmatprep.subr.mxu0 0.0
          %2626 = vmatpush2.msra.mxu0 0.0
          %2627 = vmatprep.subr.mxu0 0.0
          %2628 = vmatpush2.msra.mxu0 0.0
          %2629 = vmatprep.subr.mxu0 0.0
          %2630 = vmatpush2.msra.mxu0 0.0
          %2631 = vmatprep.subr.mxu0 0.0
          %2632 = vmatpush2.msra.mxu0 0.0
          %2633 = vmatprep.mubr.f32.mxu0 0.0
          %2634 = vmatmul.mubr.f32.gmra.mxu0 %v2473
          %v2635 = vpop.f32.mrf.mxu0
          %v2636 = vadd.f32 0.0, %v2635
          %v2637 = vpop.f32.mrf.mxu0
          %v2638 = vadd.f32 0.0, %v2637
          %2639 = vmatprep.mubr.f32.mxu0 0.0
          %2640 = vmatmul.mubr.f32.gmra.mxu0 %v2474
          %v2641 = vpop.f32.mrf.mxu0
          %v2642 = vadd.f32 0.0, %v2641
          %v2643 = vpop.f32.mrf.mxu0
          %v2644 = vadd.f32 0.0, %v2643
          %2645 = vdwg.mxu0
          %v2646 = vadd.f32 %v2484, %v2559
          %v2647 = vadd.f32 %v2485, %v2561
          %v2648 = vadd.f32 %v2486, %v2636
          %v2649 = vadd.f32 %v2487, %v2638
          %v2650 = vadd.f32 %v2488, %v2565
          %v2651 = vadd.f32 %v2489, %v2567
          %v2652 = vadd.f32 %v2490, %v2642
          %v2653 = vadd.f32 %v2491, %v2644
          %v2654 = vxor.u32 %v2646, 2147483648
          %v2655 = vxor.u32 %v2650, 2147483648
          %v2656 = vmul.f32 %v2654, 1.442695
          %v2657 = vpow.pop %v2656
          %v2658 = vmul.f32 %v2655, 1.442695
          %v2659 = vpow.pop %v2658
          %v2660 = vadd.f32 %v2657, 1.0
          %v2661 = vadd.f32 %v2659, 1.0
          %v2662 = vrcp.pop %v2660
          %v2663 = vmul.f32 1.0, %v2662
          %v2664 = vrcp.pop %v2661
          %v2665 = vmul.f32 1.0, %v2664
          %v2666 = vxor.u32 %v2647, 2147483648
          %v2667 = vxor.u32 %v2651, 2147483648
          %v2668 = vmul.f32 %v2666, 1.442695
          %v2669 = vpow.pop %v2668
          %v2670 = vmul.f32 %v2667, 1.442695
          %v2671 = vpow.pop %v2670
          %v2672 = vadd.f32 %v2669, 1.0
          %v2673 = vadd.f32 %v2671, 1.0
          %v2674 = vrcp.pop %v2672
          %v2675 = vmul.f32 1.0, %v2674
          %v2676 = vrcp.pop %v2673
          %v2677 = vmul.f32 1.0, %v2676
          %v2678 = vtanh.pop %v2648
          %v2679 = vtanh.pop %v2652
          %v2680 = vxor.u32 %v2649, 2147483648
          %v2681 = vxor.u32 %v2653, 2147483648
          %v2682 = vmul.f32 %v2680, 1.442695
          %v2683 = vpow.pop %v2682
          %v2684 = vmul.f32 %v2681, 1.442695
          %v2685 = vpow.pop %v2684
          %v2686 = vadd.f32 %v2683, 1.0
          %v2687 = vadd.f32 %v2685, 1.0
          %v2688 = vrcp.pop %v2686
          %v2689 = vmul.f32 1.0, %v2688
          %v2690 = vrcp.pop %v2687
          %v2691 = vmul.f32 1.0, %v2690
          %v2692 = vmul.f32 %v2675, %v2469
          %v2693 = vmul.f32 %v2677, %v2470
          %v2694 = vmul.f32 %v2663, %v2678
          %v2695 = vmul.f32 %v2665, %v2679
          %v2696 = vadd.f32 %v2692, %v2694
          %v2697 = vadd.f32 %v2693, %v2695
          %v2698 = vtanh.pop %v2696
          %v2699 = vtanh.pop %v2697
          %v2700 = vmul.f32 %v2689, %v2698
          %v2701 = vmul.f32 %v2691, %v2699
          %s2702 = scalar_lea.vmem %s262, 128 [#allocation4]
          %v2703 = vld [vmem:[%s2702] sm:$0xff]
          %v2704 = vld [vmem:[%s2702 + $0x8] sm:$0xff]
          %v2705 = vld [vmem:[%s2702 + $0x10] sm:$0xff]
          %v2706 = vld [vmem:[%s2702 + $0x18] sm:$0xff]
          %v2707 = vld [vmem:[%s2702 + $0x20] sm:$0xff]
          %v2708 = vld [vmem:[%s2702 + $0x28] sm:$0xff]
          %v2709 = vld [vmem:[%s2702 + $0x30] sm:$0xff]
          %v2710 = vld [vmem:[%s2702 + $0x38] sm:$0xff]
          %v2711 = vadd.f32 %v2703, %v2240
          %v2712 = vadd.f32 %v2704, %v2244
          %v2713 = vadd.f32 %v2705, %v2248
          %v2714 = vadd.f32 %v2706, %v2252
          %v2715 = vadd.f32 %v2707, %v2240
          %v2716 = vadd.f32 %v2708, %v2244
          %v2717 = vadd.f32 %v2709, %v2248
          %v2718 = vadd.f32 %v2710, %v2252
          %2719 = vmatprep.subr.mxu0 %v368
          %2720 = vmatpush1.msra.mxu0 %v367
          %2721 = vmatprep.subr.mxu0 %v364
          %2722 = vmatpush1.msra.mxu0 %v363
          %2723 = vmatprep.subr.mxu0 %v360
          %2724 = vmatpush1.msra.mxu0 %v359
          %2725 = vmatprep.subr.mxu0 %v356
          %2726 = vmatpush1.msra.mxu0 %v355
          %2727 = vmatprep.subr.mxu0 %v352
          %2728 = vmatpush1.msra.mxu0 %v351
          %2729 = vmatprep.subr.mxu0 %v348
          %2730 = vmatpush1.msra.mxu0 %v347
          %2731 = vmatprep.subr.mxu0 %v344
          %2732 = vmatpush1.msra.mxu0 %v343
          %2733 = vmatprep.subr.mxu0 %v340
          %2734 = vmatpush1.msra.mxu0 %v339
          %2735 = vmatprep.subr.mxu0 %v336
          %2736 = vmatpush1.msra.mxu0 %v335
          %2737 = vmatprep.subr.mxu0 %v332
          %2738 = vmatpush1.msra.mxu0 %v331
          %2739 = vmatprep.subr.mxu0 %v328
          %2740 = vmatpush1.msra.mxu0 %v327
          %2741 = vmatprep.subr.mxu0 %v324
          %2742 = vmatpush1.msra.mxu0 %v323
          %2743 = vmatprep.subr.mxu0 %v320
          %2744 = vmatpush1.msra.mxu0 %v319
          %2745 = vmatprep.subr.mxu0 %v316
          %2746 = vmatpush1.msra.mxu0 %v315
          %2747 = vmatprep.subr.mxu0 %v312
          %2748 = vmatpush1.msra.mxu0 %v311
          %2749 = vmatprep.subr.mxu0 %v308
          %2750 = vmatpush1.msra.mxu0 %v307
          %2751 = vmatprep.subr.mxu0 0.0
          %2752 = vmatpush2.msra.mxu0 0.0
          %2753 = vmatprep.subr.mxu0 0.0
          %2754 = vmatpush2.msra.mxu0 0.0
          %2755 = vmatprep.subr.mxu0 0.0
          %2756 = vmatpush2.msra.mxu0 0.0
          %2757 = vmatprep.subr.mxu0 0.0
          %2758 = vmatpush2.msra.mxu0 0.0
          %2759 = vmatprep.subr.mxu0 0.0
          %2760 = vmatpush2.msra.mxu0 0.0
          %2761 = vmatprep.subr.mxu0 0.0
          %2762 = vmatpush2.msra.mxu0 0.0
          %2763 = vmatprep.subr.mxu0 0.0
          %2764 = vmatpush2.msra.mxu0 0.0
          %2765 = vmatprep.subr.mxu0 0.0
          %2766 = vmatpush2.msra.mxu0 0.0
          %2767 = vmatprep.subr.mxu0 0.0
          %2768 = vmatpush2.msra.mxu0 0.0
          %2769 = vmatprep.subr.mxu0 0.0
          %2770 = vmatpush2.msra.mxu0 0.0
          %2771 = vmatprep.subr.mxu0 0.0
          %2772 = vmatpush2.msra.mxu0 0.0
          %2773 = vmatprep.subr.mxu0 0.0
          %2774 = vmatpush2.msra.mxu0 0.0
          %2775 = vmatprep.subr.mxu0 0.0
          %2776 = vmatpush2.msra.mxu0 0.0
          %2777 = vmatprep.subr.mxu0 0.0
          %2778 = vmatpush2.msra.mxu0 0.0
          %2779 = vmatprep.subr.mxu0 0.0
          %2780 = vmatpush2.msra.mxu0 0.0
          %2781 = vmatprep.subr.mxu0 0.0
          %2782 = vmatpush2.msra.mxu0 0.0
          %2783 = vmatprep.mubr.f32.mxu0 0.0
          %2784 = vmatmul.mubr.f32.gmra.mxu0 %v2700
          %v2785 = vpop.f32.mrf.mxu0
          %v2786 = vadd.f32 0.0, %v2785
          %v2787 = vpop.f32.mrf.mxu0
          %v2788 = vadd.f32 0.0, %v2787
          %2789 = vmatprep.mubr.f32.mxu0 0.0
          %2790 = vmatmul.mubr.f32.gmra.mxu0 %v2701
          %v2791 = vpop.f32.mrf.mxu0
          %v2792 = vadd.f32 0.0, %v2791
          %v2793 = vpop.f32.mrf.mxu0
          %v2794 = vadd.f32 0.0, %v2793
          %2795 = vdwg.mxu0
          %2796 = vmatprep.subr.mxu0 %v370
          %2797 = vmatpush1.msra.mxu0 %v369
          %2798 = vmatprep.subr.mxu0 %v366
          %2799 = vmatpush1.msra.mxu0 %v365
          %2800 = vmatprep.subr.mxu0 %v362
          %2801 = vmatpush1.msra.mxu0 %v361
          %2802 = vmatprep.subr.mxu0 %v358
          %2803 = vmatpush1.msra.mxu0 %v357
          %2804 = vmatprep.subr.mxu0 %v354
          %2805 = vmatpush1.msra.mxu0 %v353
          %2806 = vmatprep.subr.mxu0 %v350
          %2807 = vmatpush1.msra.mxu0 %v349
          %2808 = vmatprep.subr.mxu0 %v346
          %2809 = vmatpush1.msra.mxu0 %v345
          %2810 = vmatprep.subr.mxu0 %v342
          %2811 = vmatpush1.msra.mxu0 %v341
          %2812 = vmatprep.subr.mxu0 %v338
          %2813 = vmatpush1.msra.mxu0 %v337
          %2814 = vmatprep.subr.mxu0 %v334
          %2815 = vmatpush1.msra.mxu0 %v333
          %2816 = vmatprep.subr.mxu0 %v330
          %2817 = vmatpush1.msra.mxu0 %v329
          %2818 = vmatprep.subr.mxu0 %v326
          %2819 = vmatpush1.msra.mxu0 %v325
          %2820 = vmatprep.subr.mxu0 %v322
          %2821 = vmatpush1.msra.mxu0 %v321
          %2822 = vmatprep.subr.mxu0 %v318
          %2823 = vmatpush1.msra.mxu0 %v317
          %2824 = vmatprep.subr.mxu0 %v314
          %2825 = vmatpush1.msra.mxu0 %v313
          %2826 = vmatprep.subr.mxu0 %v310
          %2827 = vmatpush1.msra.mxu0 %v309
          %2828 = vmatprep.subr.mxu0 0.0
          %2829 = vmatpush2.msra.mxu0 0.0
          %2830 = vmatprep.subr.mxu0 0.0
          %2831 = vmatpush2.msra.mxu0 0.0
          %2832 = vmatprep.subr.mxu0 0.0
          %2833 = vmatpush2.msra.mxu0 0.0
          %2834 = vmatprep.subr.mxu0 0.0
          %2835 = vmatpush2.msra.mxu0 0.0
          %2836 = vmatprep.subr.mxu0 0.0
          %2837 = vmatpush2.msra.mxu0 0.0
          %2838 = vmatprep.subr.mxu0 0.0
          %2839 = vmatpush2.msra.mxu0 0.0
          %2840 = vmatprep.subr.mxu0 0.0
          %2841 = vmatpush2.msra.mxu0 0.0
          %2842 = vmatprep.subr.mxu0 0.0
          %2843 = vmatpush2.msra.mxu0 0.0
          %2844 = vmatprep.subr.mxu0 0.0
          %2845 = vmatpush2.msra.mxu0 0.0
          %2846 = vmatprep.subr.mxu0 0.0
          %2847 = vmatpush2.msra.mxu0 0.0
          %2848 = vmatprep.subr.mxu0 0.0
          %2849 = vmatpush2.msra.mxu0 0.0
          %2850 = vmatprep.subr.mxu0 0.0
          %2851 = vmatpush2.msra.mxu0 0.0
          %2852 = vmatprep.subr.mxu0 0.0
          %2853 = vmatpush2.msra.mxu0 0.0
          %2854 = vmatprep.subr.mxu0 0.0
          %2855 = vmatpush2.msra.mxu0 0.0
          %2856 = vmatprep.subr.mxu0 0.0
          %2857 = vmatpush2.msra.mxu0 0.0
          %2858 = vmatprep.subr.mxu0 0.0
          %2859 = vmatpush2.msra.mxu0 0.0
          %2860 = vmatprep.mubr.f32.mxu0 0.0
          %2861 = vmatmul.mubr.f32.gmra.mxu0 %v2700
          %v2862 = vpop.f32.mrf.mxu0
          %v2863 = vadd.f32 0.0, %v2862
          %v2864 = vpop.f32.mrf.mxu0
          %v2865 = vadd.f32 0.0, %v2864
          %2866 = vmatprep.mubr.f32.mxu0 0.0
          %2867 = vmatmul.mubr.f32.gmra.mxu0 %v2701
          %v2868 = vpop.f32.mrf.mxu0
          %v2869 = vadd.f32 0.0, %v2868
          %v2870 = vpop.f32.mrf.mxu0
          %v2871 = vadd.f32 0.0, %v2870
          %2872 = vdwg.mxu0
          %v2873 = vadd.f32 %v2711, %v2786
          %v2874 = vadd.f32 %v2712, %v2788
          %v2875 = vadd.f32 %v2713, %v2863
          %v2876 = vadd.f32 %v2714, %v2865
          %v2877 = vadd.f32 %v2715, %v2792
          %v2878 = vadd.f32 %v2716, %v2794
          %v2879 = vadd.f32 %v2717, %v2869
          %v2880 = vadd.f32 %v2718, %v2871
          %v2881 = vxor.u32 %v2873, 2147483648
          %v2882 = vxor.u32 %v2877, 2147483648
          %v2883 = vmul.f32 %v2881, 1.442695
          %v2884 = vpow.pop %v2883
          %v2885 = vmul.f32 %v2882, 1.442695
          %v2886 = vpow.pop %v2885
          %v2887 = vadd.f32 %v2884, 1.0
          %v2888 = vadd.f32 %v2886, 1.0
          %v2889 = vrcp.pop %v2887
          %v2890 = vmul.f32 1.0, %v2889
          %v2891 = vrcp.pop %v2888
          %v2892 = vmul.f32 1.0, %v2891
          %v2893 = vxor.u32 %v2874, 2147483648
          %v2894 = vxor.u32 %v2878, 2147483648
          %v2895 = vmul.f32 %v2893, 1.442695
          %v2896 = vpow.pop %v2895
          %v2897 = vmul.f32 %v2894, 1.442695
          %v2898 = vpow.pop %v2897
          %v2899 = vadd.f32 %v2896, 1.0
          %v2900 = vadd.f32 %v2898, 1.0
          %v2901 = vrcp.pop %v2899
          %v2902 = vmul.f32 1.0, %v2901
          %v2903 = vrcp.pop %v2900
          %v2904 = vmul.f32 1.0, %v2903
          %v2905 = vtanh.pop %v2875
          %v2906 = vtanh.pop %v2879
          %v2907 = vxor.u32 %v2876, 2147483648
          %v2908 = vxor.u32 %v2880, 2147483648
          %v2909 = vmul.f32 %v2907, 1.442695
          %v2910 = vpow.pop %v2909
          %v2911 = vmul.f32 %v2908, 1.442695
          %v2912 = vpow.pop %v2911
          %v2913 = vadd.f32 %v2910, 1.0
          %v2914 = vadd.f32 %v2912, 1.0
          %v2915 = vrcp.pop %v2913
          %v2916 = vmul.f32 1.0, %v2915
          %v2917 = vrcp.pop %v2914
          %v2918 = vmul.f32 1.0, %v2917
          %v2919 = vmul.f32 %v2902, %v2696
          %v2920 = vmul.f32 %v2904, %v2697
          %v2921 = vmul.f32 %v2890, %v2905
          %v2922 = vmul.f32 %v2892, %v2906
          %v2923 = vadd.f32 %v2919, %v2921
          %v2924 = vadd.f32 %v2920, %v2922
          %v2925 = vtanh.pop %v2923
          %v2926 = vtanh.pop %v2924
          %v2927 = vmul.f32 %v2916, %v2925
          %v2928 = vmul.f32 %v2918, %v2926
          %s2929 = scalar_lea.vmem %s262, 192 [#allocation4]
          %v2930 = vld [vmem:[%s2929] sm:$0xff]
          %v2931 = vld [vmem:[%s2929 + $0x8] sm:$0xff]
          %v2932 = vld [vmem:[%s2929 + $0x10] sm:$0xff]
          %v2933 = vld [vmem:[%s2929 + $0x18] sm:$0xff]
          %v2934 = vld [vmem:[%s2929 + $0x20] sm:$0xff]
          %v2935 = vld [vmem:[%s2929 + $0x28] sm:$0xff]
          %v2936 = vld [vmem:[%s2929 + $0x30] sm:$0xff]
          %v2937 = vld [vmem:[%s2929 + $0x38] sm:$0xff]
          %v2938 = vadd.f32 %v2930, %v2240
          %v2939 = vadd.f32 %v2931, %v2244
          %v2940 = vadd.f32 %v2932, %v2248
          %v2941 = vadd.f32 %v2933, %v2252
          %v2942 = vadd.f32 %v2934, %v2240
          %v2943 = vadd.f32 %v2935, %v2244
          %v2944 = vadd.f32 %v2936, %v2248
          %v2945 = vadd.f32 %v2937, %v2252
          %2946 = vmatprep.subr.mxu0 %v368
          %2947 = vmatpush1.msra.mxu0 %v367
          %2948 = vmatprep.subr.mxu0 %v364
          %2949 = vmatpush1.msra.mxu0 %v363
          %2950 = vmatprep.subr.mxu0 %v360
          %2951 = vmatpush1.msra.mxu0 %v359
          %2952 = vmatprep.subr.mxu0 %v356
          %2953 = vmatpush1.msra.mxu0 %v355
          %2954 = vmatprep.subr.mxu0 %v352
          %2955 = vmatpush1.msra.mxu0 %v351
          %2956 = vmatprep.subr.mxu0 %v348
          %2957 = vmatpush1.msra.mxu0 %v347
          %2958 = vmatprep.subr.mxu0 %v344
          %2959 = vmatpush1.msra.mxu0 %v343
          %2960 = vmatprep.subr.mxu0 %v340
          %2961 = vmatpush1.msra.mxu0 %v339
          %2962 = vmatprep.subr.mxu0 %v336
          %2963 = vmatpush1.msra.mxu0 %v335
          %2964 = vmatprep.subr.mxu0 %v332
          %2965 = vmatpush1.msra.mxu0 %v331
          %2966 = vmatprep.subr.mxu0 %v328
          %2967 = vmatpush1.msra.mxu0 %v327
          %2968 = vmatprep.subr.mxu0 %v324
          %2969 = vmatpush1.msra.mxu0 %v323
          %2970 = vmatprep.subr.mxu0 %v320
          %2971 = vmatpush1.msra.mxu0 %v319
          %2972 = vmatprep.subr.mxu0 %v316
          %2973 = vmatpush1.msra.mxu0 %v315
          %2974 = vmatprep.subr.mxu0 %v312
          %2975 = vmatpush1.msra.mxu0 %v311
          %2976 = vmatprep.subr.mxu0 %v308
          %2977 = vmatpush1.msra.mxu0 %v307
          %2978 = vmatprep.subr.mxu0 0.0
          %2979 = vmatpush2.msra.mxu0 0.0
          %2980 = vmatprep.subr.mxu0 0.0
          %2981 = vmatpush2.msra.mxu0 0.0
          %2982 = vmatprep.subr.mxu0 0.0
          %2983 = vmatpush2.msra.mxu0 0.0
          %2984 = vmatprep.subr.mxu0 0.0
          %2985 = vmatpush2.msra.mxu0 0.0
          %2986 = vmatprep.subr.mxu0 0.0
          %2987 = vmatpush2.msra.mxu0 0.0
          %2988 = vmatprep.subr.mxu0 0.0
          %2989 = vmatpush2.msra.mxu0 0.0
          %2990 = vmatprep.subr.mxu0 0.0
          %2991 = vmatpush2.msra.mxu0 0.0
          %2992 = vmatprep.subr.mxu0 0.0
          %2993 = vmatpush2.msra.mxu0 0.0
          %2994 = vmatprep.subr.mxu0 0.0
          %2995 = vmatpush2.msra.mxu0 0.0
          %2996 = vmatprep.subr.mxu0 0.0
          %2997 = vmatpush2.msra.mxu0 0.0
          %2998 = vmatprep.subr.mxu0 0.0
          %2999 = vmatpush2.msra.mxu0 0.0
          %3000 = vmatprep.subr.mxu0 0.0
          %3001 = vmatpush2.msra.mxu0 0.0
          %3002 = vmatprep.subr.mxu0 0.0
          %3003 = vmatpush2.msra.mxu0 0.0
          %3004 = vmatprep.subr.mxu0 0.0
          %3005 = vmatpush2.msra.mxu0 0.0
          %3006 = vmatprep.subr.mxu0 0.0
          %3007 = vmatpush2.msra.mxu0 0.0
          %3008 = vmatprep.subr.mxu0 0.0
          %3009 = vmatpush2.msra.mxu0 0.0
          %3010 = vmatprep.mubr.f32.mxu0 0.0
          %3011 = vmatmul.mubr.f32.gmra.mxu0 %v2927
          %v3012 = vpop.f32.mrf.mxu0
          %v3013 = vadd.f32 0.0, %v3012
          %v3014 = vpop.f32.mrf.mxu0
          %v3015 = vadd.f32 0.0, %v3014
          %3016 = vmatprep.mubr.f32.mxu0 0.0
          %3017 = vmatmul.mubr.f32.gmra.mxu0 %v2928
          %v3018 = vpop.f32.mrf.mxu0
          %v3019 = vadd.f32 0.0, %v3018
          %v3020 = vpop.f32.mrf.mxu0
          %v3021 = vadd.f32 0.0, %v3020
          %3022 = vdwg.mxu0
          %3023 = vmatprep.subr.mxu0 %v370
          %3024 = vmatpush1.msra.mxu0 %v369
          %3025 = vmatprep.subr.mxu0 %v366
          %3026 = vmatpush1.msra.mxu0 %v365
          %3027 = vmatprep.subr.mxu0 %v362
          %3028 = vmatpush1.msra.mxu0 %v361
          %3029 = vmatprep.subr.mxu0 %v358
          %3030 = vmatpush1.msra.mxu0 %v357
          %3031 = vmatprep.subr.mxu0 %v354
          %3032 = vmatpush1.msra.mxu0 %v353
          %3033 = vmatprep.subr.mxu0 %v350
          %3034 = vmatpush1.msra.mxu0 %v349
          %3035 = vmatprep.subr.mxu0 %v346
          %3036 = vmatpush1.msra.mxu0 %v345
          %3037 = vmatprep.subr.mxu0 %v342
          %3038 = vmatpush1.msra.mxu0 %v341
          %3039 = vmatprep.subr.mxu0 %v338
          %3040 = vmatpush1.msra.mxu0 %v337
          %3041 = vmatprep.subr.mxu0 %v334
          %3042 = vmatpush1.msra.mxu0 %v333
          %3043 = vmatprep.subr.mxu0 %v330
          %3044 = vmatpush1.msra.mxu0 %v329
          %3045 = vmatprep.subr.mxu0 %v326
          %3046 = vmatpush1.msra.mxu0 %v325
          %3047 = vmatprep.subr.mxu0 %v322
          %3048 = vmatpush1.msra.mxu0 %v321
          %3049 = vmatprep.subr.mxu0 %v318
          %3050 = vmatpush1.msra.mxu0 %v317
          %3051 = vmatprep.subr.mxu0 %v314
          %3052 = vmatpush1.msra.mxu0 %v313
          %3053 = vmatprep.subr.mxu0 %v310
          %3054 = vmatpush1.msra.mxu0 %v309
          %3055 = vmatprep.subr.mxu0 0.0
          %3056 = vmatpush2.msra.mxu0 0.0
          %3057 = vmatprep.subr.mxu0 0.0
          %3058 = vmatpush2.msra.mxu0 0.0
          %3059 = vmatprep.subr.mxu0 0.0
          %3060 = vmatpush2.msra.mxu0 0.0
          %3061 = vmatprep.subr.mxu0 0.0
          %3062 = vmatpush2.msra.mxu0 0.0
          %3063 = vmatprep.subr.mxu0 0.0
          %3064 = vmatpush2.msra.mxu0 0.0
          %3065 = vmatprep.subr.mxu0 0.0
          %3066 = vmatpush2.msra.mxu0 0.0
          %3067 = vmatprep.subr.mxu0 0.0
          %3068 = vmatpush2.msra.mxu0 0.0
          %3069 = vmatprep.subr.mxu0 0.0
          %3070 = vmatpush2.msra.mxu0 0.0
          %3071 = vmatprep.subr.mxu0 0.0
          %3072 = vmatpush2.msra.mxu0 0.0
          %3073 = vmatprep.subr.mxu0 0.0
          %3074 = vmatpush2.msra.mxu0 0.0
          %3075 = vmatprep.subr.mxu0 0.0
          %3076 = vmatpush2.msra.mxu0 0.0
          %3077 = vmatprep.subr.mxu0 0.0
          %3078 = vmatpush2.msra.mxu0 0.0
          %3079 = vmatprep.subr.mxu0 0.0
          %3080 = vmatpush2.msra.mxu0 0.0
          %3081 = vmatprep.subr.mxu0 0.0
          %3082 = vmatpush2.msra.mxu0 0.0
          %3083 = vmatprep.subr.mxu0 0.0
          %3084 = vmatpush2.msra.mxu0 0.0
          %3085 = vmatprep.subr.mxu0 0.0
          %3086 = vmatpush2.msra.mxu0 0.0
          %3087 = vmatprep.mubr.f32.mxu0 0.0
          %3088 = vmatmul.mubr.f32.gmra.mxu0 %v2927
          %v3089 = vpop.f32.mrf.mxu0
          %v3090 = vadd.f32 0.0, %v3089
          %v3091 = vpop.f32.mrf.mxu0
          %v3092 = vadd.f32 0.0, %v3091
          %3093 = vmatprep.mubr.f32.mxu0 0.0
          %3094 = vmatmul.mubr.f32.gmra.mxu0 %v2928
          %v3095 = vpop.f32.mrf.mxu0
          %v3096 = vadd.f32 0.0, %v3095
          %v3097 = vpop.f32.mrf.mxu0
          %v3098 = vadd.f32 0.0, %v3097
          %3099 = vdwg.mxu0
          %v3100 = vadd.f32 %v2938, %v3013
          %v3101 = vadd.f32 %v2939, %v3015
          %v3102 = vadd.f32 %v2940, %v3090
          %v3103 = vadd.f32 %v2941, %v3092
          %v3104 = vadd.f32 %v2942, %v3019
          %v3105 = vadd.f32 %v2943, %v3021
          %v3106 = vadd.f32 %v2944, %v3096
          %v3107 = vadd.f32 %v2945, %v3098
          %v3108 = vxor.u32 %v3100, 2147483648
          %v3109 = vxor.u32 %v3104, 2147483648
          %v3110 = vmul.f32 %v3108, 1.442695
          %v3111 = vpow.pop %v3110
          %v3112 = vmul.f32 %v3109, 1.442695
          %v3113 = vpow.pop %v3112
          %v3114 = vadd.f32 %v3111, 1.0
          %v3115 = vadd.f32 %v3113, 1.0
          %v3116 = vrcp.pop %v3114
          %v3117 = vmul.f32 1.0, %v3116
          %v3118 = vrcp.pop %v3115
          %v3119 = vmul.f32 1.0, %v3118
          %v3120 = vxor.u32 %v3101, 2147483648
          %v3121 = vxor.u32 %v3105, 2147483648
          %v3122 = vmul.f32 %v3120, 1.442695
          %v3123 = vpow.pop %v3122
          %v3124 = vmul.f32 %v3121, 1.442695
          %v3125 = vpow.pop %v3124
          %v3126 = vadd.f32 %v3123, 1.0
          %v3127 = vadd.f32 %v3125, 1.0
          %v3128 = vrcp.pop %v3126
          %v3129 = vmul.f32 1.0, %v3128
          %v3130 = vrcp.pop %v3127
          %v3131 = vmul.f32 1.0, %v3130
          %v3132 = vtanh.pop %v3102
          %v3133 = vtanh.pop %v3106
          %v3134 = vxor.u32 %v3103, 2147483648
          %v3135 = vxor.u32 %v3107, 2147483648
          %v3136 = vmul.f32 %v3134, 1.442695
          %v3137 = vpow.pop %v3136
          %v3138 = vmul.f32 %v3135, 1.442695
          %v3139 = vpow.pop %v3138
          %v3140 = vadd.f32 %v3137, 1.0
          %v3141 = vadd.f32 %v3139, 1.0
          %v3142 = vrcp.pop %v3140
          %v3143 = vmul.f32 1.0, %v3142
          %v3144 = vrcp.pop %v3141
          %v3145 = vmul.f32 1.0, %v3144
          %v3146 = vmul.f32 %v3129, %v2923
          %v3147 = vmul.f32 %v3131, %v2924
          %v3148 = vmul.f32 %v3117, %v3132
          %v3149 = vmul.f32 %v3119, %v3133
          %v3150 = vadd.f32 %v3146, %v3148
          %v3151 = vadd.f32 %v3147, %v3149
          %v3152 = vtanh.pop %v3150
          %v3153 = vtanh.pop %v3151
          %v3154 = vmul.f32 %v3143, %v3152
          %v3155 = vmul.f32 %v3145, %v3153
          %3156 = vst [vmem:[#allocation2] sm:$0xff] %v3154
          %3157 = vst [vmem:[#allocation2 + $0x8] sm:$0xff] %v3155
          %3158 = vst [vmem:[#allocation3] sm:$0xff] %v3150
          %3159 = vst [vmem:[#allocation3 + $0x8] sm:$0xff] %v3151
          %v3160 = vld [vmem:[#allocation2] sm:$0xff]
          %v3161 = vld [vmem:[#allocation2 + $0x8] sm:$0xff]
          %v3162 = vld [vmem:[#allocation10] sm:$0xff]
          %v3163 = vld [vmem:[#allocation10 + $0x8] sm:$0xff]
          %v3164 = vld [vmem:[#allocation10 + $0x10] sm:$0xff]
          %v3165 = vld [vmem:[#allocation10 + $0x18] sm:$0xff]
          %v3166 = vld [vmem:[#allocation10 + $0x20] sm:$0xff]
          %v3167 = vld [vmem:[#allocation10 + $0x28] sm:$0xff]
          %v3168 = vld [vmem:[#allocation10 + $0x30] sm:$0xff]
          %v3169 = vld [vmem:[#allocation10 + $0x38] sm:$0xff]
          %v3170 = vld [vmem:[#allocation10 + $0x40] sm:$0xff]
          %v3171 = vld [vmem:[#allocation10 + $0x48] sm:$0xff]
          %v3172 = vld [vmem:[#allocation10 + $0x50] sm:$0xff]
          %v3173 = vld [vmem:[#allocation10 + $0x58] sm:$0xff]
          %v3174 = vld [vmem:[#allocation10 + $0x60] sm:$0xff]
          %v3175 = vld [vmem:[#allocation10 + $0x68] sm:$0xff]
          %v3176 = vld [vmem:[#allocation10 + $0x70] sm:$0xff]
          %v3177 = vld [vmem:[#allocation10 + $0x78] sm:$0xff]
          %v3178 = vld [vmem:[%s4] sm:$0x1]
          %v3180 = vlaneseq
          %v3181 = vshrl.u32 %v3180, 7
          %v3182 = vsub.s32 0, %v3181
          %v3183 = vrot.slane %v3178, %v3182
          %3185 = vmatprep.subr.mxu0 0.0
          %3186 = vmatpush1.msra.mxu0 %v3177
          %3187 = vmatprep.subr.mxu0 0.0
          %3188 = vmatpush1.msra.mxu0 %v3176
          %3189 = vmatprep.subr.mxu0 0.0
          %3190 = vmatpush1.msra.mxu0 %v3175
          %3191 = vmatprep.subr.mxu0 0.0
          %3192 = vmatpush1.msra.mxu0 %v3174
          %3193 = vmatprep.subr.mxu0 0.0
          %3194 = vmatpush1.msra.mxu0 %v3173
          %3195 = vmatprep.subr.mxu0 0.0
          %3196 = vmatpush1.msra.mxu0 %v3172
          %3197 = vmatprep.subr.mxu0 0.0
          %3198 = vmatpush1.msra.mxu0 %v3171
          %3199 = vmatprep.subr.mxu0 0.0
          %3200 = vmatpush1.msra.mxu0 %v3170
          %3201 = vmatprep.subr.mxu0 0.0
          %3202 = vmatpush1.msra.mxu0 %v3169
          %3203 = vmatprep.subr.mxu0 0.0
          %3204 = vmatpush1.msra.mxu0 %v3168
          %3205 = vmatprep.subr.mxu0 0.0
          %3206 = vmatpush1.msra.mxu0 %v3167
          %3207 = vmatprep.subr.mxu0 0.0
          %3208 = vmatpush1.msra.mxu0 %v3166
          %3209 = vmatprep.subr.mxu0 0.0
          %3210 = vmatpush1.msra.mxu0 %v3165
          %3211 = vmatprep.subr.mxu0 0.0
          %3212 = vmatpush1.msra.mxu0 %v3164
          %3213 = vmatprep.subr.mxu0 0.0
          %3214 = vmatpush1.msra.mxu0 %v3163
          %3215 = vmatprep.subr.mxu0 0.0
          %3216 = vmatpush1.msra.mxu0 %v3162
          %3217 = vmatprep.subr.mxu0 0.0
          %3218 = vmatpush2.msra.mxu0 0.0
          %3219 = vmatprep.subr.mxu0 0.0
          %3220 = vmatpush2.msra.mxu0 0.0
          %3221 = vmatprep.subr.mxu0 0.0
          %3222 = vmatpush2.msra.mxu0 0.0
          %3223 = vmatprep.subr.mxu0 0.0
          %3224 = vmatpush2.msra.mxu0 0.0
          %3225 = vmatprep.subr.mxu0 0.0
          %3226 = vmatpush2.msra.mxu0 0.0
          %3227 = vmatprep.subr.mxu0 0.0
          %3228 = vmatpush2.msra.mxu0 0.0
          %3229 = vmatprep.subr.mxu0 0.0
          %3230 = vmatpush2.msra.mxu0 0.0
          %3231 = vmatprep.subr.mxu0 0.0
          %3232 = vmatpush2.msra.mxu0 0.0
          %3233 = vmatprep.subr.mxu0 0.0
          %3234 = vmatpush2.msra.mxu0 0.0
          %3235 = vmatprep.subr.mxu0 0.0
          %3236 = vmatpush2.msra.mxu0 0.0
          %3237 = vmatprep.subr.mxu0 0.0
          %3238 = vmatpush2.msra.mxu0 0.0
          %3239 = vmatprep.subr.mxu0 0.0
          %3240 = vmatpush2.msra.mxu0 0.0
          %3241 = vmatprep.subr.mxu0 0.0
          %3242 = vmatpush2.msra.mxu0 0.0
          %3243 = vmatprep.subr.mxu0 0.0
          %3244 = vmatpush2.msra.mxu0 0.0
          %3245 = vmatprep.subr.mxu0 0.0
          %3246 = vmatpush2.msra.mxu0 0.0
          %3247 = vmatprep.subr.mxu0 0.0
          %3248 = vmatpush2.msra.mxu0 0.0
          %3249 = vmatprep.mubr.f32.mxu0 0.0
          %3250 = vmatmul.mubr.f32.gmra.mxu0 %v3160
          %v3251 = vpop.f32.mrf.mxu0
          %v3252 = vadd.f32 %v3183, %v3251
          %v3253 = vpop.f32.mrf.mxu0
          %3254 = vmatprep.mubr.f32.mxu0 0.0
          %3255 = vmatmul.mubr.f32.gmra.mxu0 %v3161
          %v3256 = vpop.f32.mrf.mxu0
          %v3257 = vadd.f32 %v3183, %v3256
          %v3258 = vpop.f32.mrf.mxu0
          %3259 = vdwg.mxu0
          %3260 = vst [vmem:[#allocation12] sm:$0xff] %v3252
          %3261 = vst [vmem:[#allocation12 + $0x8] sm:$0xff] %v3257
        $region68: #{tpu_custom_call.1} parent=39 // pred_fallthru
          _
        // Predicated region
        $region69: #{tpu_custom_call.1} parent=39 // pred_check
          %p3262 = pneg %p164
        $region70: #{tpu_custom_call.1} parent=39 // pred_check_branch
          %3264 = sbr.rel (%p3262) target = $region72
        $region71: #{tpu_custom_call.1} parent=39 // pred_region
          %s3265 = smul.u32 2, %s26
          %s3267 = ssub.s32 256, 256
          %3268 = vsyncadd [#allocation6], %s3267
          %s3269 = smul.addr %s3265, 128
          %s3270 = scalar_lea.hbm %s5, %s3269
          %s3271 = sshll.u32 [#allocation12], 4
          %s3272 = int_to_ptr.vmem [resolvable:$true] %s3271
          %3277 = dma.vmem_to_hbm [thread:$0]  %s3272, 256, %s3270, [#allocation6], 128, 128, 8
        $region72: #{tpu_custom_call.1} parent=39 // pred_fallthru
          _
        // Predicated region
        $region73: #{tpu_custom_call.1} parent=39 // pred_check
          %p3278 = pneg %p164
        $region74: #{tpu_custom_call.1} parent=39 // pred_check_branch
          %3280 = sbr.rel (%p3278) target = $region76
        $region75: #{tpu_custom_call.1} parent=39 // pred_region
          %3281 = dma.done [#allocation6], 256
        $region76: #{tpu_custom_call.1} parent=39 // pred_fallthru
          _
      $region40: #{tpu_custom_call.1} parent=5 // pred_fallthru
        _
      %p3282 = scmp.le.s32.totalorder 2, %s17
      // Predicated region
      $region77: #{tpu_custom_call.1} parent=5 // pred_check
        %p3283 = pneg %p3282
      $region78: #{tpu_custom_call.1} parent=5 // pred_check_branch
        %3285 = sbr.rel (%p3283) target = $region80
      $region79: #{tpu_custom_call.1} parent=5 // pred_region
        %s3286 = ssub.s32 %s17, 2
      $region80: #{tpu_custom_call.1} parent=5 // pred_fallthru
        _
    $region6: #{tpu_custom_call.1} parent=1 // loop_footer
      %s21 = sadd.s32 1, %s17
    $region7: #{tpu_custom_call.1} parent=1 // loop_footer_branch
      %16 = sbr.rel target = $region3
    $region8: #{tpu_custom_call.1} parent=1 // loop_exit
      _
    %3287 = vsyncpa [#allocation5], 1
    %s3288 = scalar_lea.sflag [#allocation5], 1
    %3289 = vsyncpa %s3288, 1
    %3290 = vsyncpa [#allocation8], 1
    %3291 = vsyncpa [#allocation11], 1
    %3292 = vsyncpa [#allocation6], 1
    %s3293 = scalar_lea.sflag [#allocation6], 1
    %3294 = vsyncpa %s3293, 1

</llo_original>
